<compile_context>
chip_gen: v7x
topology: tpu7x:2x2x1
jax: 0.10.0
libtpu: 0.0.40
codegen_flags: <defaults>
</compile_context>

<pallas_src>
import functools

import jax
import jax.numpy as jnp
import numpy as np
from jax import lax
from jax.experimental import pallas as pl
from jax.experimental.pallas import tpu as pltpu

NUM_CORES = 2  # v7x has 2 TensorCores/chip; on v5e/v6e this axis just serializes.


def _round_up(x, m):
    return ((x + m - 1) // m) * m


def _mlp_pool_kernel(x_ref, w1_ref, b1_ref, w2_ref, b2_ref,
                     psum_ref, pmax_ref, sum_acc, max_acc,
                     *, n_nodes, tile_n, tiles_per_core, hidden, padded):
    t = pl.program_id(1)

    @pl.when(t == 0)
    def _init():
        sum_acc[...] = jnp.zeros_like(sum_acc)
        max_acc[...] = jnp.full_like(max_acc, -jnp.inf)

    # in_mlp on this node tile: Linear -> ReLU -> Linear -> ReLU.
    # bf16 operands feed the MXU at native rate; accumulation stays f32.
    h = jnp.dot(x_ref[...], w1_ref[...], preferred_element_type=jnp.float32) + b1_ref[...]
    h = jnp.maximum(h, 0.0)
    h = jnp.dot(h.astype(jnp.bfloat16), w2_ref[...],
                preferred_element_type=jnp.float32) + b2_ref[...]
    h = jnp.maximum(h, 0.0)                                          # [tile_n, H] f32

    sub = tile_n // 8

    def _accumulate(h_sum, h_max):
        # Per-sublane partials: [tile_n, H] -> [8, H] using cross-vreg VALU adds/maxes
        # only; the 8 -> 1 cross-sublane (XLU) reduce is deferred to the finalize kernel.
        sum_acc[...] = sum_acc[...] + jnp.sum(h_sum.reshape(sub, 8, hidden), axis=0)
        max_acc[...] = jnp.maximum(max_acc[...],
                                   jnp.max(h_max.reshape(sub, 8, hidden), axis=0))

    if padded:
        # Only tiles hanging past the end of the node array pay for the mask
        # (must be applied post-MLP: relu(garbage @ W + b) is non-negative).
        g = pl.program_id(0) * tiles_per_core + t        # global (unclamped) tile index
        is_full = (g + 1) * tile_n <= n_nodes

        @pl.when(is_full)
        def _full():
            _accumulate(h, h)

        @pl.when(jnp.logical_not(is_full))
        def _tail():
            row = g * tile_n + lax.broadcasted_iota(jnp.int32, (tile_n, 1), 0)
            valid = row < n_nodes                        # [tile_n, 1]
            _accumulate(jnp.where(valid, h, 0.0), jnp.where(valid, h, -jnp.inf))
    else:
        _accumulate(h, h)

    @pl.when(t == tiles_per_core - 1)
    def _flush():
        psum_ref[...] = sum_acc[...]
        pmax_ref[...] = max_acc[...]


def _finalize_kernel(psum_ref, pmax_ref, wo_ref, bo_ref, z_ref, logits_ref,
                     *, n_nodes, hidden):
    # Combine per-core / per-sublane partials (tiny, runs once).
    mean = jnp.sum(psum_ref[...], axis=0, keepdims=True) * (1.0 / float(n_nodes))  # [1, H]
    mx = jnp.max(pmax_ref[...], axis=0, keepdims=True)                             # [1, H]
    # z = concat([mean, max]) written as two static-slice stores (no lane concat).
    z_ref[:, :hidden] = mean.astype(z_ref.dtype)
    z_ref[:, hidden:] = mx.astype(z_ref.dtype)
    # out_linear folded as split matmul: z @ Wo + bo = mean @ Wo[:H] + max @ Wo[H:] + bo
    logits = (jnp.dot(mean, wo_ref[:hidden, :], preferred_element_type=jnp.float32)
              + jnp.dot(mx, wo_ref[hidden:, :], preferred_element_type=jnp.float32)
              + bo_ref[...])
    logits_ref[...] = logits.astype(logits_ref.dtype)


def readout_forward(x, w1, b1, w2, b2, wo, bo, *, tile_n=1024, num_cores=NUM_CORES):
    # TODO(synk): batch != None (segment pooling over multiple graphs) not implemented.
    N, H = x.shape
    C = wo.shape[1]
    assert N >= 1, "empty graph (N=0) not supported"

    # bf16 MXU operands (f32 accumulation); halves HBM traffic for x.
    x_bf = x.astype(jnp.bfloat16)
    w1_bf = w1.astype(jnp.bfloat16)
    w2_bf = w2.astype(jnp.bfloat16)

    # Keep tile_n a multiple of 8 (vreg sublanes) and no larger than needed.
    tile_n = max(8, (tile_n // 8) * 8)
    tile_n = min(tile_n, _round_up(N, 8))
    total_tiles = pl.cdiv(N, tile_n)
    tiles_per_core = pl.cdiv(total_tiles, num_cores)
    # Any tile (partial last tile or fully-out-of-range tile) that hangs past N?
    padded = (num_cores * tiles_per_core * tile_n != N)

    # VMEM budget: double-buffered bf16 x tile + resident weights + outputs + scratch.
    working_set = (
        2 * tile_n * H * 2            # x tile (bf16), double-buffered
        + 2 * H * H * 2               # W1, W2 (bf16), resident
        + 2 * H * 4                   # b1, b2 (f32), resident
        + 2 * 2 * 8 * H * 4           # psum / pmax output blocks (double-buffered)
        + 2 * 8 * H * 4               # sum / max accumulators
    )
    vmem_limit = int(min(max(2 * working_set + (2 << 20), 8 << 20), 32 << 20))

    kernel = functools.partial(
        _mlp_pool_kernel, n_nodes=N, tile_n=tile_n,
        tiles_per_core=tiles_per_core, hidden=H, padded=padded)

    def x_index_map(c, t):
        # Clamp so fully-out-of-range tiles (odd tile counts) re-read a valid block;
        # their rows are masked out inside the kernel.
        return (jnp.minimum(c * tiles_per_core + t, total_tiles - 1), 0)

    psum, pmax = pl.pallas_call(
        kernel,
        out_shape=(
            jax.ShapeDtypeStruct((num_cores * 8, H), jnp.float32),   # per-core sum partials
            jax.ShapeDtypeStruct((num_cores * 8, H), jnp.float32),   # per-core max partials
        ),
        grid_spec=pltpu.PrefetchScalarGridSpec(
            num_scalar_prefetch=0,
            grid=(num_cores, tiles_per_core),
            in_specs=[
                pl.BlockSpec((tile_n, H), x_index_map),        # x: tiled over N, split by core
                pl.BlockSpec((H, H), lambda c, t: (0, 0)),     # W1 (bf16): resident
                pl.BlockSpec((1, H), lambda c, t: (0, 0)),     # b1: resident
                pl.BlockSpec((H, H), lambda c, t: (0, 0)),     # W2 (bf16): resident
                pl.BlockSpec((1, H), lambda c, t: (0, 0)),     # b2: resident
            ],
            out_specs=(
                pl.BlockSpec((8, H), lambda c, t: (c, 0)),     # per-core sum slab
                pl.BlockSpec((8, H), lambda c, t: (c, 0)),     # per-core max slab
            ),
            scratch_shapes=[
                pltpu.VMEM((8, H), jnp.float32),               # running sum (per-sublane)
                pltpu.VMEM((8, H), jnp.float32),               # running max (per-sublane)
            ],
        ),
        compiler_params=pltpu.CompilerParams(
            dimension_semantics=("parallel", "arbitrary"),     # core split, node reduction
            vmem_limit_bytes=vmem_limit,
        ),
    )(x_bf, w1_bf, b1, w2_bf, b2)

    # Tiny single-shot finalize kernel: combine partials, mean-divide, concat, out_linear.
    z, logits = pl.pallas_call(
        functools.partial(_finalize_kernel, n_nodes=N, hidden=H),
        out_shape=(
            jax.ShapeDtypeStruct((1, 2 * H), jnp.float32),
            jax.ShapeDtypeStruct((1, C), jnp.float32),
        ),
    )(psum, pmax, wo, bo)
    return z, logits


def readout_reference(x, w1, b1, w2, b2, wo, bo):
    h = jnp.maximum(x @ w1 + b1, 0.0)
    h = jnp.maximum(h @ w2 + b2, 0.0)
    z = jnp.concatenate(
        [jnp.mean(h, axis=0, keepdims=True), jnp.max(h, axis=0, keepdims=True)],
        axis=-1,
    )
    return z, z @ wo + bo


if __name__ == "__main__":
    # N deliberately NOT a multiple of the tile and tile-count odd, so the full,
    # masked-tail, and fully-empty-tile paths (and the 2-core split) all run.
    N, H, C = 2500, 128, 8  # num_nodes, hidden_channels, out_channels

    key = jax.random.PRNGKey(0)
    k_x, k_w1, k_b1, k_w2, k_b2, k_wo, k_bo = jax.random.split(key, 7)

    x = jax.random.normal(k_x, (N, H), dtype=jnp.float32)
    # deterministic parameter init (uniform like torch.nn.Linear default scale)
    w1 = jax.random.uniform(k_w1, (H, H), jnp.float32, -1.0, 1.0) / jnp.sqrt(H)
    b1 = jax.random.uniform(k_b1, (1, H), jnp.float32, -1.0, 1.0) / jnp.sqrt(H)
    w2 = jax.random.uniform(k_w2, (H, H), jnp.float32, -1.0, 1.0) / jnp.sqrt(H)
    b2 = jax.random.uniform(k_b2, (1, H), jnp.float32, -1.0, 1.0) / jnp.sqrt(H)
    wo = jax.random.uniform(k_wo, (2 * H, C), jnp.float32, -1.0, 1.0) / jnp.sqrt(2 * H)
    bo = jax.random.uniform(k_bo, (1, C), jnp.float32, -1.0, 1.0) / jnp.sqrt(2 * H)

    z, logits = readout_forward(x, w1, b1, w2, b2, wo, bo)
    jax.block_until_ready((z, logits))

    z_ref, logits_ref = readout_reference(x, w1, b1, w2, b2, wo, bo)
    # bf16 MXU operands (f32 accumulation) vs f32 reference -> looser tolerance.
    np.testing.assert_allclose(np.asarray(z), np.asarray(z_ref), rtol=3e-2, atol=3e-2)
    np.testing.assert_allclose(np.asarray(logits), np.asarray(logits_ref),
                               rtol=3e-2, atol=3e-2)

    print("KERNEL_OK")
</pallas_src>

<mosaic_0001>
module attributes {stable_mosaic.version = 11 : i64} {
  func.func @_mlp_pool_kernel(%arg0: i32, %arg1: i32, %arg2: memref<1024x128xbf16, #tpu.memory_space<vmem>>, %arg3: memref<128x128xbf16, #tpu.memory_space<vmem>>, %arg4: memref<1x128xf32, #tpu.memory_space<vmem>>, %arg5: memref<128x128xbf16, #tpu.memory_space<vmem>>, %arg6: memref<1x128xf32, #tpu.memory_space<vmem>>, %arg7: memref<8x128xf32, #tpu.memory_space<vmem>>, %arg8: memref<8x128xf32, #tpu.memory_space<vmem>>, %arg9: memref<8x128xf32, #tpu.memory_space<vmem>>, %arg10: memref<8x128xf32, #tpu.memory_space<vmem>>) attributes {dimension_semantics = [#tpu.dimension_semantics<parallel>, #tpu.dimension_semantics<arbitrary>], iteration_bounds = array<i64: 2, 2>, scalar_prefetch = 0 : i64, scratch_operands = 2 : i64, tpu.core_type = #tpu.core_type<tc>, window_params = [{transform_indices = @transform_0, window_bounds = array<i64: 1024, 128>}, {pipeline_mode = #tpu.pipeline_mode<synchronous>, transform_indices = @transform_1, window_bounds = array<i64: 128, 128>}, {pipeline_mode = #tpu.pipeline_mode<synchronous>, transform_indices = @transform_2, window_bounds = array<i64: 1, 128>}, {pipeline_mode = #tpu.pipeline_mode<synchronous>, transform_indices = @transform_3, window_bounds = array<i64: 128, 128>}, {pipeline_mode = #tpu.pipeline_mode<synchronous>, transform_indices = @transform_4, window_bounds = array<i64: 1, 128>}, {transform_indices = @transform_5, window_bounds = array<i64: 8, 128>}, {transform_indices = @transform_6, window_bounds = array<i64: 8, 128>}]} {
    %c0_i32 = arith.constant 0 : i32
    %0 = arith.cmpi eq, %arg1, %c0_i32 : i32
    %1 = arith.extui %0 : i1 to i32
    %c0_i32_0 = arith.constant 0 : i32
    %2 = arith.cmpi ne, %1, %c0_i32_0 : i32
    scf.if %2 {
      %cst_17 = arith.constant 0.000000e+00 : f32
      %32 = vector.broadcast %cst_17 : f32 to vector<8x128xf32>
      %c0_18 = arith.constant 0 : index
      %c0_19 = arith.constant 0 : index
      %33 = vector.load %arg9[%c0_18, %c0_19] : memref<8x128xf32, #tpu.memory_space<vmem>>, vector<8x128xf32>
      tpu.vector_store %arg9[%c0_18, %c0_19], %32 {strides = array<i32>} : memref<8x128xf32, #tpu.memory_space<vmem>>, vector<8x128xf32>,
      %cst_20 = arith.constant 0xFF800000 : f32
      %34 = vector.broadcast %cst_20 : f32 to vector<8x128xf32>
      %c0_21 = arith.constant 0 : index
      %c0_22 = arith.constant 0 : index
      %35 = vector.load %arg10[%c0_21, %c0_22] : memref<8x128xf32, #tpu.memory_space<vmem>>, vector<8x128xf32>
      tpu.vector_store %arg10[%c0_21, %c0_22], %34 {strides = array<i32>} : memref<8x128xf32, #tpu.memory_space<vmem>>, vector<8x128xf32>,
    } else {
    }
    %c0 = arith.constant 0 : index
    %c0_1 = arith.constant 0 : index
    %3 = vector.load %arg2[%c0, %c0_1] : memref<1024x128xbf16, #tpu.memory_space<vmem>>, vector<1024x128xbf16>
    %c0_2 = arith.constant 0 : index
    %c0_3 = arith.constant 0 : index
    %4 = vector.load %arg3[%c0_2, %c0_3] : memref<128x128xbf16, #tpu.memory_space<vmem>>, vector<128x128xbf16>
    %cst = arith.constant dense<0.000000e+00> : vector<1024x128xf32>
    %5 = tpu.matmul %3, %4, %cst {dimension_numbers = #tpu.dot_dimension_numbers<[1], [0], [0], [1], [0, 0, 1, 1], [], []>} : vector<1024x128xbf16>, vector<128x128xbf16>, vector<1024x128xf32> -> vector<1024x128xf32>
    %c0_4 = arith.constant 0 : index
    %c0_5 = arith.constant 0 : index
    %6 = vector.load %arg4[%c0_4, %c0_5] : memref<1x128xf32, #tpu.memory_space<vmem>>, vector<1x128xf32>
    %7 = vector.broadcast %6 : vector<1x128xf32> to vector<1024x128xf32>
    %8 = arith.addf %5, %7 : vector<1024x128xf32>
    %cst_6 = arith.constant 0.000000e+00 : f32
    %9 = vector.broadcast %cst_6 : f32 to vector<1024x128xf32>
    %10 = arith.maximumf %8, %9 : vector<1024x128xf32>
    %11 = arith.truncf %10 : vector<1024x128xf32> to vector<1024x128xbf16>
    %c0_7 = arith.constant 0 : index
    %c0_8 = arith.constant 0 : index
    %12 = vector.load %arg5[%c0_7, %c0_8] : memref<128x128xbf16, #tpu.memory_space<vmem>>, vector<128x128xbf16>
    %cst_9 = arith.constant dense<0.000000e+00> : vector<1024x128xf32>
    %13 = tpu.matmul %11, %12, %cst_9 {dimension_numbers = #tpu.dot_dimension_numbers<[1], [0], [0], [1], [0, 0, 1, 1], [], []>} : vector<1024x128xbf16>, vector<128x128xbf16>, vector<1024x128xf32> -> vector<1024x128xf32>
    %c0_10 = arith.constant 0 : index
    %c0_11 = arith.constant 0 : index
    %14 = vector.load %arg6[%c0_10, %c0_11] : memref<1x128xf32, #tpu.memory_space<vmem>>, vector<1x128xf32>
    %15 = vector.broadcast %14 : vector<1x128xf32> to vector<1024x128xf32>
    %16 = arith.addf %13, %15 : vector<1024x128xf32>
    %cst_12 = arith.constant 0.000000e+00 : f32
    %17 = vector.broadcast %cst_12 : f32 to vector<1024x128xf32>
    %18 = arith.maximumf %16, %17 : vector<1024x128xf32>
    %c2_i32 = arith.constant 2 : i32
    %19 = arith.muli %arg0, %c2_i32 : i32
    %20 = arith.addi %19, %arg1 : i32
    %c1_i32 = arith.constant 1 : i32
    %21 = arith.addi %20, %c1_i32 : i32
    %c1024_i32 = arith.constant 1024 : i32
    %22 = arith.muli %21, %c1024_i32 : i32
    %c2500_i32 = arith.constant 2500 : i32
    %23 = arith.cmpi sle, %22, %c2500_i32 : i32
    %24 = arith.extui %23 : i1 to i32
    %c0_i32_13 = arith.constant 0 : i32
    %25 = arith.cmpi ne, %24, %c0_i32_13 : i32
    scf.if %25 {
      %c0_17 = arith.constant 0 : index
      %c0_18 = arith.constant 0 : index
      %32 = vector.load %arg9[%c0_17, %c0_18] : memref<8x128xf32, #tpu.memory_space<vmem>>, vector<8x128xf32>
      %33 = vector.shape_cast %18 : vector<1024x128xf32> to vector<128x8x128xf32>
      %cst_19 = arith.constant dense<0.000000e+00> : vector<8x128xf32>
      %34 = vector.multi_reduction <add>, %33, %cst_19 [0] : vector<128x8x128xf32> to vector<8x128xf32>
      %35 = arith.addf %32, %34 : vector<8x128xf32>
      %c0_20 = arith.constant 0 : index
      %c0_21 = arith.constant 0 : index
      %36 = vector.load %arg9[%c0_20, %c0_21] : memref<8x128xf32, #tpu.memory_space<vmem>>, vector<8x128xf32>
      tpu.vector_store %arg9[%c0_20, %c0_21], %35 {strides = array<i32>} : memref<8x128xf32, #tpu.memory_space<vmem>>, vector<8x128xf32>,
      %c0_22 = arith.constant 0 : index
      %c0_23 = arith.constant 0 : index
      %37 = vector.load %arg10[%c0_22, %c0_23] : memref<8x128xf32, #tpu.memory_space<vmem>>, vector<8x128xf32>
      %38 = vector.shape_cast %18 : vector<1024x128xf32> to vector<128x8x128xf32>
      %cst_24 = arith.constant dense<0xFF800000> : vector<8x128xf32>
      %39 = vector.multi_reduction <maximumf>, %38, %cst_24 [0] : vector<128x8x128xf32> to vector<8x128xf32>
      %40 = arith.maximumf %37, %39 : vector<8x128xf32>
      %c0_25 = arith.constant 0 : index
      %c0_26 = arith.constant 0 : index
      %41 = vector.load %arg10[%c0_25, %c0_26] : memref<8x128xf32, #tpu.memory_space<vmem>>, vector<8x128xf32>
      tpu.vector_store %arg10[%c0_25, %c0_26], %40 {strides = array<i32>} : memref<8x128xf32, #tpu.memory_space<vmem>>, vector<8x128xf32>,
    } else {
    }
    %true = arith.constant true
    %26 = arith.xori %23, %true : i1
    %27 = arith.extui %26 : i1 to i32
    %c0_i32_14 = arith.constant 0 : i32
    %28 = arith.cmpi ne, %27, %c0_i32_14 : i32
    scf.if %28 {
      %c1024_i32_17 = arith.constant 1024 : i32
      %32 = arith.muli %20, %c1024_i32_17 : i32
      %33 = tpu.iota {dimensions = array<i32: 0>} : vector<1024x1xi32>
      %34 = vector.broadcast %32 : i32 to vector<1024x1xi32>
      %35 = arith.addi %34, %33 : vector<1024x1xi32>
      %c2500_i32_18 = arith.constant 2500 : i32
      %36 = vector.broadcast %c2500_i32_18 : i32 to vector<1024x1xi32>
      %37 = arith.cmpi slt, %35, %36 : vector<1024x1xi32>
      %cst_19 = arith.constant 0.000000e+00 : f32
      %38 = vector.shape_cast %37 : vector<1024x1xi1> to vector<1024x1xi1>
      %39 = vector.broadcast %38 : vector<1024x1xi1> to vector<1024x128xi1>
      %40 = vector.broadcast %cst_19 : f32 to vector<1024x128xf32>
      %41 = arith.select %39, %18, %40 : vector<1024x128xi1>, vector<1024x128xf32>
      %cst_20 = arith.constant 0xFF800000 : f32
      %42 = vector.shape_cast %37 : vector<1024x1xi1> to vector<1024x1xi1>
      %43 = vector.broadcast %42 : vector<1024x1xi1> to vector<1024x128xi1>
      %44 = vector.broadcast %cst_20 : f32 to vector<1024x128xf32>
      %45 = arith.select %43, %18, %44 : vector<1024x128xi1>, vector<1024x128xf32>
      %c0_21 = arith.constant 0 : index
      %c0_22 = arith.constant 0 : index
      %46 = vector.load %arg9[%c0_21, %c0_22] : memref<8x128xf32, #tpu.memory_space<vmem>>, vector<8x128xf32>
      %47 = vector.shape_cast %41 : vector<1024x128xf32> to vector<128x8x128xf32>
      %cst_23 = arith.constant dense<0.000000e+00> : vector<8x128xf32>
      %48 = vector.multi_reduction <add>, %47, %cst_23 [0] : vector<128x8x128xf32> to vector<8x128xf32>
      %49 = arith.addf %46, %48 : vector<8x128xf32>
      %c0_24 = arith.constant 0 : index
      %c0_25 = arith.constant 0 : index
      %50 = vector.load %arg9[%c0_24, %c0_25] : memref<8x128xf32, #tpu.memory_space<vmem>>, vector<8x128xf32>
      tpu.vector_store %arg9[%c0_24, %c0_25], %49 {strides = array<i32>} : memref<8x128xf32, #tpu.memory_space<vmem>>, vector<8x128xf32>,
      %c0_26 = arith.constant 0 : index
      %c0_27 = arith.constant 0 : index
      %51 = vector.load %arg10[%c0_26, %c0_27] : memref<8x128xf32, #tpu.memory_space<vmem>>, vector<8x128xf32>
      %52 = vector.shape_cast %45 : vector<1024x128xf32> to vector<128x8x128xf32>
      %cst_28 = arith.constant dense<0xFF800000> : vector<8x128xf32>
      %53 = vector.multi_reduction <maximumf>, %52, %cst_28 [0] : vector<128x8x128xf32> to vector<8x128xf32>
      %54 = arith.maximumf %51, %53 : vector<8x128xf32>
      %c0_29 = arith.constant 0 : index
      %c0_30 = arith.constant 0 : index
      %55 = vector.load %arg10[%c0_29, %c0_30] : memref<8x128xf32, #tpu.memory_space<vmem>>, vector<8x128xf32>
      tpu.vector_store %arg10[%c0_29, %c0_30], %54 {strides = array<i32>} : memref<8x128xf32, #tpu.memory_space<vmem>>, vector<8x128xf32>,
    } else {
    }
    %c1_i32_15 = arith.constant 1 : i32
    %29 = arith.cmpi eq, %arg1, %c1_i32_15 : i32
    %30 = arith.extui %29 : i1 to i32
    %c0_i32_16 = arith.constant 0 : i32
    %31 = arith.cmpi ne, %30, %c0_i32_16 : i32
    scf.if %31 {
      %c0_17 = arith.constant 0 : index
      %c0_18 = arith.constant 0 : index
      %32 = vector.load %arg9[%c0_17, %c0_18] : memref<8x128xf32, #tpu.memory_space<vmem>>, vector<8x128xf32>
      %c0_19 = arith.constant 0 : index
      %c0_20 = arith.constant 0 : index
      %33 = vector.load %arg7[%c0_19, %c0_20] : memref<8x128xf32, #tpu.memory_space<vmem>>, vector<8x128xf32>
      tpu.vector_store %arg7[%c0_19, %c0_20], %32 {strides = array<i32>} : memref<8x128xf32, #tpu.memory_space<vmem>>, vector<8x128xf32>,
      %c0_21 = arith.constant 0 : index
      %c0_22 = arith.constant 0 : index
      %34 = vector.load %arg10[%c0_21, %c0_22] : memref<8x128xf32, #tpu.memory_space<vmem>>, vector<8x128xf32>
      %c0_23 = arith.constant 0 : index
      %c0_24 = arith.constant 0 : index
      %35 = vector.load %arg8[%c0_23, %c0_24] : memref<8x128xf32, #tpu.memory_space<vmem>>, vector<8x128xf32>
      tpu.vector_store %arg8[%c0_23, %c0_24], %34 {strides = array<i32>} : memref<8x128xf32, #tpu.memory_space<vmem>>, vector<8x128xf32>,
    } else {
    }
    return
  }
  func.func @transform_0(%arg0: i32, %arg1: i32) -> (i32, i32) {
    %c2_i32 = arith.constant 2 : i32
    %0 = arith.muli %arg0, %c2_i32 : i32
    %1 = arith.addi %0, %arg1 : i32
    %c2_i32_0 = arith.constant 2 : i32
    %2 = arith.minsi %1, %c2_i32_0 : i32
    %c0_i32 = arith.constant 0 : i32
    %c0_i32_1 = arith.constant 0 : i32
    return %2, %c0_i32 : i32, i32
  }
  func.func @transform_1(%arg0: i32, %arg1: i32) -> (i32, i32) {
    %c0_i32 = arith.constant 0 : i32
    %c0_i32_0 = arith.constant 0 : i32
    %c0_i32_1 = arith.constant 0 : i32
    return %c0_i32, %c0_i32_0 : i32, i32
  }
  func.func @transform_2(%arg0: i32, %arg1: i32) -> (i32, i32) {
    %c0_i32 = arith.constant 0 : i32
    %c0_i32_0 = arith.constant 0 : i32
    %c0_i32_1 = arith.constant 0 : i32
    return %c0_i32, %c0_i32_0 : i32, i32
  }
  func.func @transform_3(%arg0: i32, %arg1: i32) -> (i32, i32) {
    %c0_i32 = arith.constant 0 : i32
    %c0_i32_0 = arith.constant 0 : i32
    %c0_i32_1 = arith.constant 0 : i32
    return %c0_i32, %c0_i32_0 : i32, i32
  }
  func.func @transform_4(%arg0: i32, %arg1: i32) -> (i32, i32) {
    %c0_i32 = arith.constant 0 : i32
    %c0_i32_0 = arith.constant 0 : i32
    %c0_i32_1 = arith.constant 0 : i32
    return %c0_i32, %c0_i32_0 : i32, i32
  }
  func.func @transform_5(%arg0: i32, %arg1: i32) -> (i32, i32) {
    %c0_i32 = arith.constant 0 : i32
    %c0_i32_0 = arith.constant 0 : i32
    return %arg0, %c0_i32 : i32, i32
  }
  func.func @transform_6(%arg0: i32, %arg1: i32) -> (i32, i32) {
    %c0_i32 = arith.constant 0 : i32
    %c0_i32_0 = arith.constant 0 : i32
    return %arg0, %c0_i32 : i32, i32
  }
}

</mosaic_0001>

<llo_original>
// kernel: tpu_custom_call.1
$region0: #{tpu_custom_call.1}
  #allocation0 [shape = 'u32[]', space=smem, size = 0x4, offset = 0x4, fixed_abs, tag = 'smem constant byte address 0x4 - core index']
  #allocation1 [shape = 'u32[144,128]{1,0:T(1,128)}', space=vmem, size = 0x12000, scoped, tag = 'internal scratch']
  #allocation2 [shape = 'f32[8,128]{1,0:T(8,128)}', space=vmem, size = 0x1000, scoped, tag = 'scratch operand']
  #allocation3 [shape = 'f32[8,128]{1,0:T(8,128)}', space=vmem, size = 0x1000, scoped, tag = 'scratch operand']
  %s0 = inlined_call_operand.hbm [shape: bf16[2500,128], index: 0, kind: input, shape index: {}]
  %s1 = inlined_call_operand.hbm [shape: bf16[128,128], index: 1, kind: input, shape index: {}]
  %s2 = inlined_call_operand.vmem [shape: f32[1,128], index: 2, kind: input, shape index: {}]
  %s3 = inlined_call_operand.hbm [shape: bf16[128,128], index: 3, kind: input, shape index: {}]
  %s4 = inlined_call_operand.vmem [shape: f32[1,128], index: 4, kind: input, shape index: {}]
  %s5 = inlined_call_operand.hbm [shape: f32[16,128], index: 5, kind: output, shape index: {0}]
  %s6 = inlined_call_operand.hbm [shape: f32[16,128], index: 6, kind: output, shape index: {1}]
  %7 = xla_tuple %s5, %s6
  %s8 = sld [smem:[#allocation0]]
  $region89: #{tpu_custom_call.1} parent=0
    _
  %s10 = ssub.s32 1, %s8
  %s11 = scalar_select 0, %s10, %s8
  $region1: #{tpu_custom_call.1} parent=0
    #allocation4 [shape = 'u8[524288]{0}', space=vmem, size = 0x80000, scoped, tag = 'input window, operand 0']
    #allocation5 [shape = 's32[2]{0}', space=sflag, size = 0x8, scoped, tag = 'scoped memory for tpu_custom_call.1']
    #allocation6 [shape = 's32[2]{0}', space=sflag, size = 0x8, scoped, tag = 'scoped memory for tpu_custom_call.1']
    #allocation7 [shape = 'u8[32768]{0}', space=vmem, size = 0x8000, scoped, tag = 'input window, operand 1, single buffered']
    #allocation8 [shape = 's32[1]{0}', space=sflag, size = 0x4, scoped, tag = 'scoped memory for tpu_custom_call.1']
    #allocation9 [shape = 'u8[32768]{0}', space=vmem, size = 0x8000, scoped, tag = 'input window, operand 3, single buffered']
    #allocation10 [shape = 'u8[8192]{0}', space=vmem, size = 0x2000, scoped, tag = 'output window, operand 0']
    #allocation11 [shape = 'u8[8192]{0}', space=vmem, size = 0x2000, scoped, tag = 'output window, operand 1']
    #allocation12 [shape = 's32[2]{0}', space=sflag, size = 0x8, scoped, tag = 'scoped memory for tpu_custom_call.1']
    %12 = vsyncpa [#allocation5], 0
    %s13 = scalar_lea.sflag [#allocation5], 1
    %14 = vsyncpa %s13, 0
    %15 = vsyncpa [#allocation8], 0
    %16 = vsyncpa [#allocation6], 0
    %s17 = scalar_lea.sflag [#allocation6], 1
    %18 = vsyncpa %s17, 0
    %19 = vsyncpa [#allocation12], 0
    %s20 = scalar_lea.sflag [#allocation12], 1
    %21 = vsyncpa %s20, 0
    loop: start=0, step=1, limit=6
    $region2: #{tpu_custom_call.1} parent=1 // loop_pre_header
      _
    $region3: #{tpu_custom_call.1} parent=1 // loop_header
      %s23 = sphi 0, %s27
      %p24 = scmp.ge.s32.totalorder %s23, 6
      %s30 = sphi 0, %s42
      %s31 = sphi 0, %s38
      %s32 = sphi 0, %s30
      %s33 = sphi 0, %s31
      %s34 = sphi 0, %s32
      %s35 = sphi 0, %s33
      %s53 = sphi 0, %s55
      %s56 = sphi 0, %s53
      %s57 = sphi 0, %s56
      %s73 = sphi 0, %s57
      %s77 = sphi 0, %s77
      %s79 = sphi 0, %s77
      %s80 = sphi 0, %s79
      %s94 = sphi 0, %s80
      %s98 = sphi 0, %s98
      %s100 = sphi 0, %s98
      %s101 = sphi 0, %s100
      %s115 = sphi 0, %s101
      %s119 = sphi 0, %s119
      %s121 = sphi 0, %s119
      %s122 = sphi 0, %s121
      %s136 = sphi 0, %s122
      %s140 = sphi 0, %s140
      %s142 = sphi 0, %s140
      %s143 = sphi 0, %s142
      %s157 = sphi 0, %s143
      %s163 = sphi 0, %s165
      %s166 = sphi 0, %s163
      %s167 = sphi 0, %s166
      %s183 = sphi 0, %s167
      %s189 = sphi 0, %s191
      %s192 = sphi 0, %s189
      %s193 = sphi 0, %s192
      %s209 = sphi 0, %s193
    $region4: #{tpu_custom_call.1} parent=1 // loop_header_branch
      %26 = sbr.rel (%p24) target = $region8
    $region5: #{tpu_custom_call.1} parent=1 // loop_body
      %s28 = ssub.s32 %s23, 1
      %s29 = ssub.s32 %s23, 2
      %s36 = sadd.s32 1, %s31
      %p37 = scmp.ge.s32.totalorder %s36, 2
      %s38 = scalar_select %p37, 0, %s36
      %s39 = sadd.s32 1, %s30
      %s40 = scalar_select %p37, %s39, %s30
      %p41 = scmp.ge.s32.totalorder %s40, 2
      %s42 = scalar_select %p41, 0, %s40
      %s43 = smul.u32 %s30, 2
      %s44 = sadd.s32 %s43, %s31
      %p45 = scmp.lt.s32.totalorder %s44, 2
      %s46 = scalar_select %p45, %s44, 2
      %s47 = smul.u32 %s42, 2
      %s48 = sadd.s32 %s47, %s38
      %p49 = scmp.lt.s32.totalorder %s48, 2
      %s50 = scalar_select %p49, %s48, 2
      %s51 = ssub.s32 %s46, %s50
      %p52 = scmp.eq.s32.totalorder %s51, 0
      %s54 = sadd.s32 %s53, 1
      %s55 = scalar_select %p52, %s53, %s54
      %p58 = pneg %p52
      %p59 = scmp.eq.s32.totalorder %s23, 3
      %p60 = por %p58, %p59
      %p61 = scmp.ne.s32.totalorder %s53, %s56
      %p62 = scmp.eq.s32.totalorder %s23, 0
      %p63 = por %p61, %p62
      %p64 = scmp.ne.s32.totalorder %s53, %s56
      %p65 = scmp.eq.s32.totalorder %s28, 3
      %p66 = por %p64, %p65
      %p67 = scmp.ne.s32.totalorder %s56, %s57
      %p68 = scmp.eq.s32.totalorder %s28, 0
      %p69 = por %p67, %p68
      %p70 = scmp.ne.s32.totalorder %s56, %s57
      %p71 = scmp.eq.s32.totalorder %s29, 3
      %p72 = por %p70, %p71
      %p74 = scmp.ne.s32.totalorder %s57, %s73
      %p75 = scmp.eq.s32.totalorder %s29, 0
      %p76 = por %p74, %p75
      %s78 = sadd.s32 %s77, 1
      %p81 = scmp.eq.s32.totalorder %s23, 3
      %p82 = scmp.ne.s32.totalorder %s77, %s79
      %p83 = scmp.eq.s32.totalorder %s23, 0
      %p84 = por %p82, %p83
      %p85 = scmp.ne.s32.totalorder %s77, %s79
      %p86 = scmp.eq.s32.totalorder %s28, 3
      %p87 = por %p85, %p86
      %p88 = scmp.ne.s32.totalorder %s79, %s80
      %p89 = scmp.eq.s32.totalorder %s28, 0
      %p90 = por %p88, %p89
      %p91 = scmp.ne.s32.totalorder %s79, %s80
      %p92 = scmp.eq.s32.totalorder %s29, 3
      %p93 = por %p91, %p92
      %p95 = scmp.ne.s32.totalorder %s80, %s94
      %p96 = scmp.eq.s32.totalorder %s29, 0
      %p97 = por %p95, %p96
      %s99 = sadd.s32 %s98, 1
      %p102 = scmp.eq.s32.totalorder %s23, 3
      %p103 = scmp.ne.s32.totalorder %s98, %s100
      %p104 = scmp.eq.s32.totalorder %s23, 0
      %p105 = por %p103, %p104
      %p106 = scmp.ne.s32.totalorder %s98, %s100
      %p107 = scmp.eq.s32.totalorder %s28, 3
      %p108 = por %p106, %p107
      %p109 = scmp.ne.s32.totalorder %s100, %s101
      %p110 = scmp.eq.s32.totalorder %s28, 0
      %p111 = por %p109, %p110
      %p112 = scmp.ne.s32.totalorder %s100, %s101
      %p113 = scmp.eq.s32.totalorder %s29, 3
      %p114 = por %p112, %p113
      %p116 = scmp.ne.s32.totalorder %s101, %s115
      %p117 = scmp.eq.s32.totalorder %s29, 0
      %p118 = por %p116, %p117
      %s120 = sadd.s32 %s119, 1
      %p123 = scmp.eq.s32.totalorder %s23, 3
      %p124 = scmp.ne.s32.totalorder %s119, %s121
      %p125 = scmp.eq.s32.totalorder %s23, 0
      %p126 = por %p124, %p125
      %p127 = scmp.ne.s32.totalorder %s119, %s121
      %p128 = scmp.eq.s32.totalorder %s28, 3
      %p129 = por %p127, %p128
      %p130 = scmp.ne.s32.totalorder %s121, %s122
      %p131 = scmp.eq.s32.totalorder %s28, 0
      %p132 = por %p130, %p131
      %p133 = scmp.ne.s32.totalorder %s121, %s122
      %p134 = scmp.eq.s32.totalorder %s29, 3
      %p135 = por %p133, %p134
      %p137 = scmp.ne.s32.totalorder %s122, %s136
      %p138 = scmp.eq.s32.totalorder %s29, 0
      %p139 = por %p137, %p138
      %s141 = sadd.s32 %s140, 1
      %p144 = scmp.eq.s32.totalorder %s23, 3
      %p145 = scmp.ne.s32.totalorder %s140, %s142
      %p146 = scmp.eq.s32.totalorder %s23, 0
      %p147 = por %p145, %p146
      %p148 = scmp.ne.s32.totalorder %s140, %s142
      %p149 = scmp.eq.s32.totalorder %s28, 3
      %p150 = por %p148, %p149
      %p151 = scmp.ne.s32.totalorder %s142, %s143
      %p152 = scmp.eq.s32.totalorder %s28, 0
      %p153 = por %p151, %p152
      %p154 = scmp.ne.s32.totalorder %s142, %s143
      %p155 = scmp.eq.s32.totalorder %s29, 3
      %p156 = por %p154, %p155
      %p158 = scmp.ne.s32.totalorder %s143, %s157
      %p159 = scmp.eq.s32.totalorder %s29, 0
      %p160 = por %p158, %p159
      %s161 = ssub.s32 %s30, %s42
      %p162 = scmp.eq.s32.totalorder %s161, 0
      %s164 = sadd.s32 %s163, 1
      %s165 = scalar_select %p162, %s163, %s164
      %p168 = pneg %p162
      %p169 = scmp.eq.s32.totalorder %s23, 3
      %p170 = por %p168, %p169
      %p171 = scmp.ne.s32.totalorder %s163, %s166
      %p172 = scmp.eq.s32.totalorder %s23, 0
      %p173 = por %p171, %p172
      %p174 = scmp.ne.s32.totalorder %s163, %s166
      %p175 = scmp.eq.s32.totalorder %s28, 3
      %p176 = por %p174, %p175
      %p177 = scmp.ne.s32.totalorder %s166, %s167
      %p178 = scmp.eq.s32.totalorder %s28, 0
      %p179 = por %p177, %p178
      %p180 = scmp.ne.s32.totalorder %s166, %s167
      %p181 = scmp.eq.s32.totalorder %s29, 3
      %p182 = por %p180, %p181
      %p184 = scmp.ne.s32.totalorder %s167, %s183
      %p185 = scmp.eq.s32.totalorder %s29, 0
      %p186 = por %p184, %p185
      %s187 = ssub.s32 %s30, %s42
      %p188 = scmp.eq.s32.totalorder %s187, 0
      %s190 = sadd.s32 %s189, 1
      %s191 = scalar_select %p188, %s189, %s190
      %p194 = pneg %p188
      %p195 = scmp.eq.s32.totalorder %s23, 3
      %p196 = por %p194, %p195
      %p197 = scmp.ne.s32.totalorder %s189, %s192
      %p198 = scmp.eq.s32.totalorder %s23, 0
      %p199 = por %p197, %p198
      %p200 = scmp.ne.s32.totalorder %s189, %s192
      %p201 = scmp.eq.s32.totalorder %s28, 3
      %p202 = por %p200, %p201
      %p203 = scmp.ne.s32.totalorder %s192, %s193
      %p204 = scmp.eq.s32.totalorder %s28, 0
      %p205 = por %p203, %p204
      %p206 = scmp.ne.s32.totalorder %s192, %s193
      %p207 = scmp.eq.s32.totalorder %s29, 3
      %p208 = por %p206, %p207
      %p210 = scmp.ne.s32.totalorder %s193, %s209
      %p211 = scmp.eq.s32.totalorder %s29, 0
      %p212 = por %p210, %p211
      %p213 = scmp.le.s32.totalorder 1, %s23
      %p214 = scmp.lt.s32.totalorder %s23, 5
      %p215 = pnand %p213, %p214
      %p216 = pneg %p215
      // Predicated region
      $region9: #{tpu_custom_call.1} parent=5 // pred_check
        _
      $region10: #{tpu_custom_call.1} parent=5 // pred_check_branch
        %218 = sbr.rel (%p215) target = $region12
      $region11: #{tpu_custom_call.1} parent=5 // pred_region
        %s219 = ssub.s32 %s23, 1
        // Predicated region
        $region13: #{tpu_custom_call.1} parent=11 // pred_check
          %p220 = pneg %p90
        $region14: #{tpu_custom_call.1} parent=11 // pred_check_branch
          %222 = sbr.rel (%p220) target = $region16
        $region15: #{tpu_custom_call.1} parent=11 // pred_region
          %s224 = ssub.s32 1024, 1024
          %225 = vsyncadd [#allocation8], %s224
          %s226 = sshll.u32 [#allocation7], 4
          %s227 = int_to_ptr.vmem [resolvable:$true] %s226
          %232 = dma.hbm_to_vmem [thread:$0]  %s1, 1024, %s227, [#allocation8], 64, 64, 4
        $region16: #{tpu_custom_call.1} parent=11 // pred_fallthru
          _
        // Predicated region
        $region17: #{tpu_custom_call.1} parent=11 // pred_check
          %p233 = pneg %p111
        $region18: #{tpu_custom_call.1} parent=11 // pred_check_branch
          %235 = sbr.rel (%p233) target = $region20
        $region19: #{tpu_custom_call.1} parent=11 // pred_region
          _
        $region20: #{tpu_custom_call.1} parent=11 // pred_fallthru
          _
        // Predicated region
        $region21: #{tpu_custom_call.1} parent=11 // pred_check
          %p236 = pneg %p132
        $region22: #{tpu_custom_call.1} parent=11 // pred_check_branch
          %238 = sbr.rel (%p236) target = $region24
        $region23: #{tpu_custom_call.1} parent=11 // pred_region
          %s240 = ssub.s32 1024, 1024
          %241 = vsyncadd [#allocation8], %s240
          %s242 = sshll.u32 [#allocation9], 4
          %s243 = int_to_ptr.vmem [resolvable:$true] %s242
          %248 = dma.hbm_to_vmem [thread:$0]  %s3, 1024, %s243, [#allocation8], 64, 64, 4
        $region24: #{tpu_custom_call.1} parent=11 // pred_fallthru
          _
        // Predicated region
        $region25: #{tpu_custom_call.1} parent=11 // pred_check
          %p249 = pneg %p153
        $region26: #{tpu_custom_call.1} parent=11 // pred_check_branch
          %251 = sbr.rel (%p249) target = $region28
        $region27: #{tpu_custom_call.1} parent=11 // pred_region
          _
        $region28: #{tpu_custom_call.1} parent=11 // pred_fallthru
          _
      $region12: #{tpu_custom_call.1} parent=5 // pred_fallthru
        _
      %p252 = scmp.lt.s32.totalorder %s23, 4
      // Predicated region
      $region29: #{tpu_custom_call.1} parent=5 // pred_check
        %p253 = pneg %p252
      $region30: #{tpu_custom_call.1} parent=5 // pred_check_branch
        %255 = sbr.rel (%p253) target = $region32
      $region31: #{tpu_custom_call.1} parent=5 // pred_region
        // Predicated region
        $region33: #{tpu_custom_call.1} parent=31 // pred_check
          %p256 = pneg %p63
        $region34: #{tpu_custom_call.1} parent=31 // pred_check_branch
          %258 = sbr.rel (%p256) target = $region36
        $region35: #{tpu_custom_call.1} parent=31 // pred_region
          %s259 = sand.u32 %s53, 1
          %s260 = scalar_lea.sflag [#allocation5], %s259
          %s261 = sand.u32 %s53, 1
          %s262 = smul.addr %s261, 512
          %s263 = scalar_lea.vmem [#allocation4], %s262
          %s264 = smul.u32 %s30, 2
          %s265 = sadd.s32 %s264, %s31
          %p266 = scmp.lt.s32.totalorder %s265, 2
          %s267 = scalar_select %p266, %s265, 2
          %s268 = smul.u32 128, %s267
          %s269 = ssub.s32 313, %s268
          %p270 = scmp.lt.s32.totalorder %s269, 128
          %s271 = scalar_select %p270, %s269, 128
          %s272 = smul.u32 64, %s271
          %s274 = ssub.s32 8192, %s272
          %275 = vsyncadd %s260, %s274
          %p276 = scmp.ne.s32.totalorder 0, %s272
          %s277 = smul.addr %s268, 64
          %s278 = scalar_lea.hbm %s0, %s277
          %s279 = smul.u32 4, %s271
          %s280 = sshll.u32 %s263, 4
          %s281 = int_to_ptr.vmem [resolvable:$true] %s280
          %s282 = sshll.u32 %s279, 4
          %286 = dma.hbm_to_vmem [thread:$0]  (%p276), %s278, %s282, %s281, %s260, 64, 64, 4
        $region36: #{tpu_custom_call.1} parent=31 // pred_fallthru
          _
      $region32: #{tpu_custom_call.1} parent=5 // pred_fallthru
        _
      %p287 = scmp.le.s32.totalorder 1, %s23
      %p288 = scmp.lt.s32.totalorder %s23, 5
      %p289 = pnand %p287, %p288
      %p290 = pneg %p289
      // Predicated region
      $region37: #{tpu_custom_call.1} parent=5 // pred_check
        _
      $region38: #{tpu_custom_call.1} parent=5 // pred_check_branch
        %292 = sbr.rel (%p289) target = $region40
      $region39: #{tpu_custom_call.1} parent=5 // pred_region
        %s293 = ssub.s32 %s23, 1
        %s294 = sand.u32 %s56, 1
        %s295 = scalar_lea.sflag [#allocation5], %s294
        %s296 = sand.u32 %s56, 1
        %s297 = smul.addr %s296, 512
        %s298 = scalar_lea.vmem [#allocation4], %s297
        // Predicated region
        $region41: #{tpu_custom_call.1} parent=39 // pred_check
          %p299 = pneg %p69
        $region42: #{tpu_custom_call.1} parent=39 // pred_check_branch
          %301 = sbr.rel (%p299) target = $region44
        $region43: #{tpu_custom_call.1} parent=39 // pred_region
          %302 = dma.done %s295, 8192
        $region44: #{tpu_custom_call.1} parent=39 // pred_fallthru
          _
        // Predicated region
        $region45: #{tpu_custom_call.1} parent=39 // pred_check
          %p303 = pneg %p90
        $region46: #{tpu_custom_call.1} parent=39 // pred_check_branch
          %305 = sbr.rel (%p303) target = $region48
        $region47: #{tpu_custom_call.1} parent=39 // pred_region
          %306 = dma.done [#allocation8], 1024
        $region48: #{tpu_custom_call.1} parent=39 // pred_fallthru
          _
        // Predicated region
        $region49: #{tpu_custom_call.1} parent=39 // pred_check
          %p307 = pneg %p132
        $region50: #{tpu_custom_call.1} parent=39 // pred_check_branch
          %309 = sbr.rel (%p307) target = $region52
        $region51: #{tpu_custom_call.1} parent=39 // pred_region
          %310 = dma.done [#allocation8], 1024
        $region52: #{tpu_custom_call.1} parent=39 // pred_fallthru
          _
        %s311 = sand.u32 %s56, 1
        %s312 = scalar_lea.sflag [#allocation5], %s311
        %s313 = sand.u32 %s56, 1
        %s314 = smul.addr %s313, 512
        %s315 = scalar_lea.vmem [#allocation4], %s314
        %p316 = pneg %p69
        %p317 = pneg %p66
        %p318 = pneg %p90
        %p319 = pneg %p87
        %p320 = pneg %p111
        %p321 = pneg %p108
        %p322 = pneg %p132
        %p323 = pneg %p129
        %p324 = pneg %p153
        %p325 = pneg %p150
        %p326 = pneg %p179
        %p327 = pneg %p176
        %s328 = sand.u32 %s166, 1
        %s329 = scalar_lea.sflag [#allocation6], %s328
        %s330 = sand.u32 %s166, 1
        %s331 = smul.addr %s330, 8
        %s332 = scalar_lea.vmem [#allocation10], %s331
        %p333 = pneg %p205
        %p334 = pneg %p202
        %s335 = sand.u32 %s192, 1
        %s336 = scalar_lea.sflag [#allocation12], %s335
        %s337 = sand.u32 %s192, 1
        %s338 = smul.addr %s337, 8
        %s339 = scalar_lea.vmem [#allocation11], %s338
        %s340 = smul.u32 %s32, 2
        %s341 = sadd.s32 %s340, %s33
        %p342 = scmp.lt.s32.totalorder %s341, 2
        %s343 = scalar_select %p342, %s341, 2
        %s344 = smul.u32 128, %s343
        %s345 = ssub.s32 313, %s344
        %p346 = scmp.lt.s32.totalorder %s345, 128
        %s347 = scalar_select %p346, %s345, 128
        %s348 = smul.u32 64, %s347
        %p350 = scmp.eq.s32.totalorder %s33, 0
        // Predicated region
        $region53: #{tpu_custom_call.1} parent=39 // pred_check
          %p351 = pneg %p350
        $region54: #{tpu_custom_call.1} parent=39 // pred_check_branch
          %353 = sbr.rel (%p351) target = $region56
        $region55: #{tpu_custom_call.1} parent=39 // pred_region
          %354 = vst [vmem:[#allocation2] sm:$0xff] 0.0
          %355 = vst [vmem:[#allocation3] sm:$0xff] -inf
        $region56: #{tpu_custom_call.1} parent=39 // pred_fallthru
          _
        %v356 = vld [vmem:[%s298] sm:$0xf]
        %v357 = vld [vmem:[%s298 + $0x4] sm:$0xf]
        %v358 = vld [vmem:[%s298 + $0x8] sm:$0xf]
        %v359 = vld [vmem:[%s298 + $0xc] sm:$0xf]
        %v360 = vld [vmem:[%s298 + $0x10] sm:$0xf]
        %v361 = vld [vmem:[%s298 + $0x14] sm:$0xf]
        %v362 = vld [vmem:[%s298 + $0x18] sm:$0xf]
        %v363 = vld [vmem:[%s298 + $0x1c] sm:$0xf]
        %v364 = vld [vmem:[%s298 + $0x20] sm:$0xf]
        %v365 = vld [vmem:[%s298 + $0x24] sm:$0xf]
        %v366 = vld [vmem:[%s298 + $0x28] sm:$0xf]
        %v367 = vld [vmem:[%s298 + $0x2c] sm:$0xf]
        %v368 = vld [vmem:[%s298 + $0x30] sm:$0xf]
        %v369 = vld [vmem:[%s298 + $0x34] sm:$0xf]
        %v370 = vld [vmem:[%s298 + $0x38] sm:$0xf]
        %v371 = vld [vmem:[%s298 + $0x3c] sm:$0xf]
        %v372 = vld [vmem:[%s298 + $0x40] sm:$0xf]
        %v373 = vld [vmem:[%s298 + $0x44] sm:$0xf]
        %v374 = vld [vmem:[%s298 + $0x48] sm:$0xf]
        %v375 = vld [vmem:[%s298 + $0x4c] sm:$0xf]
        %v376 = vld [vmem:[%s298 + $0x50] sm:$0xf]
        %v377 = vld [vmem:[%s298 + $0x54] sm:$0xf]
        %v378 = vld [vmem:[%s298 + $0x58] sm:$0xf]
        %v379 = vld [vmem:[%s298 + $0x5c] sm:$0xf]
        %v380 = vld [vmem:[%s298 + $0x60] sm:$0xf]
        %v381 = vld [vmem:[%s298 + $0x64] sm:$0xf]
        %v382 = vld [vmem:[%s298 + $0x68] sm:$0xf]
        %v383 = vld [vmem:[%s298 + $0x6c] sm:$0xf]
        %v384 = vld [vmem:[%s298 + $0x70] sm:$0xf]
        %v385 = vld [vmem:[%s298 + $0x74] sm:$0xf]
        %v386 = vld [vmem:[%s298 + $0x78] sm:$0xf]
        %v387 = vld [vmem:[%s298 + $0x7c] sm:$0xf]
        %v388 = vld [vmem:[%s298 + $0x80] sm:$0xf]
        %v389 = vld [vmem:[%s298 + $0x84] sm:$0xf]
        %v390 = vld [vmem:[%s298 + $0x88] sm:$0xf]
        %v391 = vld [vmem:[%s298 + $0x8c] sm:$0xf]
        %v392 = vld [vmem:[%s298 + $0x90] sm:$0xf]
        %v393 = vld [vmem:[%s298 + $0x94] sm:$0xf]
        %v394 = vld [vmem:[%s298 + $0x98] sm:$0xf]
        %v395 = vld [vmem:[%s298 + $0x9c] sm:$0xf]
        %v396 = vld [vmem:[%s298 + $0xa0] sm:$0xf]
        %v397 = vld [vmem:[%s298 + $0xa4] sm:$0xf]
        %v398 = vld [vmem:[%s298 + $0xa8] sm:$0xf]
        %v399 = vld [vmem:[%s298 + $0xac] sm:$0xf]
        %v400 = vld [vmem:[%s298 + $0xb0] sm:$0xf]
        %v401 = vld [vmem:[%s298 + $0xb4] sm:$0xf]
        %v402 = vld [vmem:[%s298 + $0xb8] sm:$0xf]
        %v403 = vld [vmem:[%s298 + $0xbc] sm:$0xf]
        %v404 = vld [vmem:[%s298 + $0xc0] sm:$0xf]
        %v405 = vld [vmem:[%s298 + $0xc4] sm:$0xf]
        %v406 = vld [vmem:[%s298 + $0xc8] sm:$0xf]
        %v407 = vld [vmem:[%s298 + $0xcc] sm:$0xf]
        %v408 = vld [vmem:[%s298 + $0xd0] sm:$0xf]
        %v409 = vld [vmem:[%s298 + $0xd4] sm:$0xf]
        %v410 = vld [vmem:[%s298 + $0xd8] sm:$0xf]
        %v411 = vld [vmem:[%s298 + $0xdc] sm:$0xf]
        %v412 = vld [vmem:[%s298 + $0xe0] sm:$0xf]
        %v413 = vld [vmem:[%s298 + $0xe4] sm:$0xf]
        %v414 = vld [vmem:[%s298 + $0xe8] sm:$0xf]
        %v415 = vld [vmem:[%s298 + $0xec] sm:$0xf]
        %v416 = vld [vmem:[%s298 + $0xf0] sm:$0xf]
        %v417 = vld [vmem:[%s298 + $0xf4] sm:$0xf]
        %v418 = vld [vmem:[%s298 + $0xf8] sm:$0xf]
        %v419 = vld [vmem:[%s298 + $0xfc] sm:$0xf]
        %v420 = vld [vmem:[%s298 + $0x100] sm:$0xf]
        %v421 = vld [vmem:[%s298 + $0x104] sm:$0xf]
        %v422 = vld [vmem:[%s298 + $0x108] sm:$0xf]
        %v423 = vld [vmem:[%s298 + $0x10c] sm:$0xf]
        %v424 = vld [vmem:[%s298 + $0x110] sm:$0xf]
        %v425 = vld [vmem:[%s298 + $0x114] sm:$0xf]
        %v426 = vld [vmem:[%s298 + $0x118] sm:$0xf]
        %v427 = vld [vmem:[%s298 + $0x11c] sm:$0xf]
        %v428 = vld [vmem:[%s298 + $0x120] sm:$0xf]
        %v429 = vld [vmem:[%s298 + $0x124] sm:$0xf]
        %v430 = vld [vmem:[%s298 + $0x128] sm:$0xf]
        %v431 = vld [vmem:[%s298 + $0x12c] sm:$0xf]
        %v432 = vld [vmem:[%s298 + $0x130] sm:$0xf]
        %v433 = vld [vmem:[%s298 + $0x134] sm:$0xf]
        %v434 = vld [vmem:[%s298 + $0x138] sm:$0xf]
        %v435 = vld [vmem:[%s298 + $0x13c] sm:$0xf]
        %v436 = vld [vmem:[%s298 + $0x140] sm:$0xf]
        %v437 = vld [vmem:[%s298 + $0x144] sm:$0xf]
        %v438 = vld [vmem:[%s298 + $0x148] sm:$0xf]
        %v439 = vld [vmem:[%s298 + $0x14c] sm:$0xf]
        %v440 = vld [vmem:[%s298 + $0x150] sm:$0xf]
        %v441 = vld [vmem:[%s298 + $0x154] sm:$0xf]
        %v442 = vld [vmem:[%s298 + $0x158] sm:$0xf]
        %v443 = vld [vmem:[%s298 + $0x15c] sm:$0xf]
        %v444 = vld [vmem:[%s298 + $0x160] sm:$0xf]
        %v445 = vld [vmem:[%s298 + $0x164] sm:$0xf]
        %v446 = vld [vmem:[%s298 + $0x168] sm:$0xf]
        %v447 = vld [vmem:[%s298 + $0x16c] sm:$0xf]
        %v448 = vld [vmem:[%s298 + $0x170] sm:$0xf]
        %v449 = vld [vmem:[%s298 + $0x174] sm:$0xf]
        %v450 = vld [vmem:[%s298 + $0x178] sm:$0xf]
        %v451 = vld [vmem:[%s298 + $0x17c] sm:$0xf]
        %v452 = vld [vmem:[%s298 + $0x180] sm:$0xf]
        %v453 = vld [vmem:[%s298 + $0x184] sm:$0xf]
        %v454 = vld [vmem:[%s298 + $0x188] sm:$0xf]
        %v455 = vld [vmem:[%s298 + $0x18c] sm:$0xf]
        %v456 = vld [vmem:[%s298 + $0x190] sm:$0xf]
        %v457 = vld [vmem:[%s298 + $0x194] sm:$0xf]
        %v458 = vld [vmem:[%s298 + $0x198] sm:$0xf]
        %v459 = vld [vmem:[%s298 + $0x19c] sm:$0xf]
        %v460 = vld [vmem:[%s298 + $0x1a0] sm:$0xf]
        %v461 = vld [vmem:[%s298 + $0x1a4] sm:$0xf]
        %v462 = vld [vmem:[%s298 + $0x1a8] sm:$0xf]
        %v463 = vld [vmem:[%s298 + $0x1ac] sm:$0xf]
        %v464 = vld [vmem:[%s298 + $0x1b0] sm:$0xf]
        %v465 = vld [vmem:[%s298 + $0x1b4] sm:$0xf]
        %v466 = vld [vmem:[%s298 + $0x1b8] sm:$0xf]
        %v467 = vld [vmem:[%s298 + $0x1bc] sm:$0xf]
        %v468 = vld [vmem:[%s298 + $0x1c0] sm:$0xf]
        %v469 = vld [vmem:[%s298 + $0x1c4] sm:$0xf]
        %v470 = vld [vmem:[%s298 + $0x1c8] sm:$0xf]
        %v471 = vld [vmem:[%s298 + $0x1cc] sm:$0xf]
        %v472 = vld [vmem:[%s298 + $0x1d0] sm:$0xf]
        %v473 = vld [vmem:[%s298 + $0x1d4] sm:$0xf]
        %v474 = vld [vmem:[%s298 + $0x1d8] sm:$0xf]
        %v475 = vld [vmem:[%s298 + $0x1dc] sm:$0xf]
        %v476 = vld [vmem:[%s298 + $0x1e0] sm:$0xf]
        %v477 = vld [vmem:[%s298 + $0x1e4] sm:$0xf]
        %v478 = vld [vmem:[%s298 + $0x1e8] sm:$0xf]
        %v479 = vld [vmem:[%s298 + $0x1ec] sm:$0xf]
        %v480 = vld [vmem:[%s298 + $0x1f0] sm:$0xf]
        %v481 = vld [vmem:[%s298 + $0x1f4] sm:$0xf]
        %v482 = vld [vmem:[%s298 + $0x1f8] sm:$0xf]
        %v483 = vld [vmem:[%s298 + $0x1fc] sm:$0xf]
        %v484 = vld [vmem:[#allocation7] sm:$0xf]
        %v485 = vld [vmem:[#allocation7 + $0x4] sm:$0xf]
        %v486 = vld [vmem:[#allocation7 + $0x8] sm:$0xf]
        %v487 = vld [vmem:[#allocation7 + $0xc] sm:$0xf]
        %v488 = vld [vmem:[#allocation7 + $0x10] sm:$0xf]
        %v489 = vld [vmem:[#allocation7 + $0x14] sm:$0xf]
        %v490 = vld [vmem:[#allocation7 + $0x18] sm:$0xf]
        %v491 = vld [vmem:[#allocation7 + $0x1c] sm:$0xf]
        %v492 = vld [vmem:[#allocation7 + $0x20] sm:$0xf]
        %v493 = vld [vmem:[#allocation7 + $0x24] sm:$0xf]
        %v494 = vld [vmem:[#allocation7 + $0x28] sm:$0xf]
        %v495 = vld [vmem:[#allocation7 + $0x2c] sm:$0xf]
        %v496 = vld [vmem:[#allocation7 + $0x30] sm:$0xf]
        %v497 = vld [vmem:[#allocation7 + $0x34] sm:$0xf]
        %v498 = vld [vmem:[#allocation7 + $0x38] sm:$0xf]
        %v499 = vld [vmem:[#allocation7 + $0x3c] sm:$0xf]
        %v500 = vld [vmem:[%s2] sm:$0x1]
        %v502 = vlaneseq
        %v503 = vshrl.u32 %v502, 7
        %v504 = vsub.s32 0, %v503
        %v505 = vrot.slane %v500, %v504
        %v635 = vunpack.c.l.b16 %v356
        %v636 = vunpack.c.l.b16 %v357
        %v637 = vunpack.c.l.b16 %v358
        %v638 = vunpack.c.l.b16 %v359
        %v639 = vunpack.c.l.b16 %v360
        %v640 = vunpack.c.l.b16 %v361
        %v641 = vunpack.c.l.b16 %v362
        %v642 = vunpack.c.l.b16 %v363
        %v643 = vunpack.c.l.b16 %v364
        %v644 = vunpack.c.l.b16 %v365
        %v645 = vunpack.c.l.b16 %v366
        %v646 = vunpack.c.l.b16 %v367
        %v647 = vunpack.c.l.b16 %v368
        %v648 = vunpack.c.l.b16 %v369
        %v649 = vunpack.c.l.b16 %v370
        %v650 = vunpack.c.l.b16 %v371
        %v651 = vunpack.c.l.b16 %v372
        %v652 = vunpack.c.l.b16 %v373
        %v653 = vunpack.c.l.b16 %v374
        %v654 = vunpack.c.l.b16 %v375
        %v655 = vunpack.c.l.b16 %v376
        %v656 = vunpack.c.l.b16 %v377
        %v657 = vunpack.c.l.b16 %v378
        %v658 = vunpack.c.l.b16 %v379
        %v659 = vunpack.c.l.b16 %v380
        %v660 = vunpack.c.l.b16 %v381
        %v661 = vunpack.c.l.b16 %v382
        %v662 = vunpack.c.l.b16 %v383
        %v663 = vunpack.c.l.b16 %v384
        %v664 = vunpack.c.l.b16 %v385
        %v665 = vunpack.c.l.b16 %v386
        %v666 = vunpack.c.l.b16 %v387
        %v667 = vunpack.c.l.b16 %v388
        %v668 = vunpack.c.l.b16 %v389
        %v669 = vunpack.c.l.b16 %v390
        %v670 = vunpack.c.l.b16 %v391
        %v671 = vunpack.c.l.b16 %v392
        %v672 = vunpack.c.l.b16 %v393
        %v673 = vunpack.c.l.b16 %v394
        %v674 = vunpack.c.l.b16 %v395
        %v675 = vunpack.c.l.b16 %v396
        %v676 = vunpack.c.l.b16 %v397
        %v677 = vunpack.c.l.b16 %v398
        %v678 = vunpack.c.l.b16 %v399
        %v679 = vunpack.c.l.b16 %v400
        %v680 = vunpack.c.l.b16 %v401
        %v681 = vunpack.c.l.b16 %v402
        %v682 = vunpack.c.l.b16 %v403
        %v683 = vunpack.c.l.b16 %v404
        %v684 = vunpack.c.l.b16 %v405
        %v685 = vunpack.c.l.b16 %v406
        %v686 = vunpack.c.l.b16 %v407
        %v687 = vunpack.c.l.b16 %v408
        %v688 = vunpack.c.l.b16 %v409
        %v689 = vunpack.c.l.b16 %v410
        %v690 = vunpack.c.l.b16 %v411
        %v691 = vunpack.c.l.b16 %v412
        %v692 = vunpack.c.l.b16 %v413
        %v693 = vunpack.c.l.b16 %v414
        %v694 = vunpack.c.l.b16 %v415
        %v695 = vunpack.c.l.b16 %v416
        %v696 = vunpack.c.l.b16 %v417
        %v697 = vunpack.c.l.b16 %v418
        %v698 = vunpack.c.l.b16 %v419
        %v699 = vunpack.c.l.b16 %v420
        %v700 = vunpack.c.l.b16 %v421
        %v701 = vunpack.c.l.b16 %v422
        %v702 = vunpack.c.l.b16 %v423
        %v703 = vunpack.c.l.b16 %v424
        %v704 = vunpack.c.l.b16 %v425
        %v705 = vunpack.c.l.b16 %v426
        %v706 = vunpack.c.l.b16 %v427
        %v707 = vunpack.c.l.b16 %v428
        %v708 = vunpack.c.l.b16 %v429
        %v709 = vunpack.c.l.b16 %v430
        %v710 = vunpack.c.l.b16 %v431
        %v711 = vunpack.c.l.b16 %v432
        %v712 = vunpack.c.l.b16 %v433
        %v713 = vunpack.c.l.b16 %v434
        %v714 = vunpack.c.l.b16 %v435
        %v715 = vunpack.c.l.b16 %v436
        %v716 = vunpack.c.l.b16 %v437
        %v717 = vunpack.c.l.b16 %v438
        %v718 = vunpack.c.l.b16 %v439
        %v719 = vunpack.c.l.b16 %v440
        %v720 = vunpack.c.l.b16 %v441
        %v721 = vunpack.c.l.b16 %v442
        %v722 = vunpack.c.l.b16 %v443
        %v723 = vunpack.c.l.b16 %v444
        %v724 = vunpack.c.l.b16 %v445
        %v725 = vunpack.c.l.b16 %v446
        %v726 = vunpack.c.l.b16 %v447
        %v727 = vunpack.c.l.b16 %v448
        %v728 = vunpack.c.l.b16 %v449
        %v729 = vunpack.c.l.b16 %v450
        %v730 = vunpack.c.l.b16 %v451
        %v731 = vunpack.c.l.b16 %v452
        %v732 = vunpack.c.l.b16 %v453
        %v733 = vunpack.c.l.b16 %v454
        %v734 = vunpack.c.l.b16 %v455
        %v735 = vunpack.c.l.b16 %v456
        %v736 = vunpack.c.l.b16 %v457
        %v737 = vunpack.c.l.b16 %v458
        %v738 = vunpack.c.l.b16 %v459
        %v739 = vunpack.c.l.b16 %v460
        %v740 = vunpack.c.l.b16 %v461
        %v741 = vunpack.c.l.b16 %v462
        %v742 = vunpack.c.l.b16 %v463
        %v743 = vunpack.c.l.b16 %v464
        %v744 = vunpack.c.l.b16 %v465
        %v745 = vunpack.c.l.b16 %v466
        %v746 = vunpack.c.l.b16 %v467
        %v747 = vunpack.c.l.b16 %v468
        %v748 = vunpack.c.l.b16 %v469
        %v749 = vunpack.c.l.b16 %v470
        %v750 = vunpack.c.l.b16 %v471
        %v751 = vunpack.c.l.b16 %v472
        %v752 = vunpack.c.l.b16 %v473
        %v753 = vunpack.c.l.b16 %v474
        %v754 = vunpack.c.l.b16 %v475
        %v755 = vunpack.c.l.b16 %v476
        %v756 = vunpack.c.l.b16 %v477
        %v757 = vunpack.c.l.b16 %v478
        %v758 = vunpack.c.l.b16 %v479
        %v759 = vunpack.c.l.b16 %v480
        %v760 = vunpack.c.l.b16 %v481
        %v761 = vunpack.c.l.b16 %v482
        %v762 = vunpack.c.l.b16 %v483
        %v763 = vpack.c.b16 %v636, %v635
        %v764 = vpack.c.b16 %v638, %v637
        %v765 = vpack.c.b16 %v640, %v639
        %v766 = vpack.c.b16 %v642, %v641
        %v767 = vpack.c.b16 %v644, %v643
        %v768 = vpack.c.b16 %v646, %v645
        %v769 = vpack.c.b16 %v648, %v647
        %v770 = vpack.c.b16 %v650, %v649
        %v771 = vpack.c.b16 %v652, %v651
        %v772 = vpack.c.b16 %v654, %v653
        %v773 = vpack.c.b16 %v656, %v655
        %v774 = vpack.c.b16 %v658, %v657
        %v775 = vpack.c.b16 %v660, %v659
        %v776 = vpack.c.b16 %v662, %v661
        %v777 = vpack.c.b16 %v664, %v663
        %v778 = vpack.c.b16 %v666, %v665
        %v779 = vpack.c.b16 %v668, %v667
        %v780 = vpack.c.b16 %v670, %v669
        %v781 = vpack.c.b16 %v672, %v671
        %v782 = vpack.c.b16 %v674, %v673
        %v783 = vpack.c.b16 %v676, %v675
        %v784 = vpack.c.b16 %v678, %v677
        %v785 = vpack.c.b16 %v680, %v679
        %v786 = vpack.c.b16 %v682, %v681
        %v787 = vpack.c.b16 %v684, %v683
        %v788 = vpack.c.b16 %v686, %v685
        %v789 = vpack.c.b16 %v688, %v687
        %v790 = vpack.c.b16 %v690, %v689
        %v791 = vpack.c.b16 %v692, %v691
        %v792 = vpack.c.b16 %v694, %v693
        %v793 = vpack.c.b16 %v696, %v695
        %v794 = vpack.c.b16 %v698, %v697
        %v795 = vpack.c.b16 %v700, %v699
        %v796 = vpack.c.b16 %v702, %v701
        %v797 = vpack.c.b16 %v704, %v703
        %v798 = vpack.c.b16 %v706, %v705
        %v799 = vpack.c.b16 %v708, %v707
        %v800 = vpack.c.b16 %v710, %v709
        %v801 = vpack.c.b16 %v712, %v711
        %v802 = vpack.c.b16 %v714, %v713
        %v803 = vpack.c.b16 %v716, %v715
        %v804 = vpack.c.b16 %v718, %v717
        %v805 = vpack.c.b16 %v720, %v719
        %v806 = vpack.c.b16 %v722, %v721
        %v807 = vpack.c.b16 %v724, %v723
        %v808 = vpack.c.b16 %v726, %v725
        %v809 = vpack.c.b16 %v728, %v727
        %v810 = vpack.c.b16 %v730, %v729
        %v811 = vpack.c.b16 %v732, %v731
        %v812 = vpack.c.b16 %v734, %v733
        %v813 = vpack.c.b16 %v736, %v735
        %v814 = vpack.c.b16 %v738, %v737
        %v815 = vpack.c.b16 %v740, %v739
        %v816 = vpack.c.b16 %v742, %v741
        %v817 = vpack.c.b16 %v744, %v743
        %v818 = vpack.c.b16 %v746, %v745
        %v819 = vpack.c.b16 %v748, %v747
        %v820 = vpack.c.b16 %v750, %v749
        %v821 = vpack.c.b16 %v752, %v751
        %v822 = vpack.c.b16 %v754, %v753
        %v823 = vpack.c.b16 %v756, %v755
        %v824 = vpack.c.b16 %v758, %v757
        %v825 = vpack.c.b16 %v760, %v759
        %v826 = vpack.c.b16 %v762, %v761
        %v907 = vunpack.c.l.b16 %v484
        %v908 = vunpack.c.l.b16 %v485
        %v909 = vunpack.c.l.b16 %v486
        %v910 = vunpack.c.l.b16 %v487
        %v911 = vunpack.c.l.b16 %v488
        %v912 = vunpack.c.l.b16 %v489
        %v913 = vunpack.c.l.b16 %v490
        %v914 = vunpack.c.l.b16 %v491
        %v915 = vunpack.c.l.b16 %v492
        %v916 = vunpack.c.l.b16 %v493
        %v917 = vunpack.c.l.b16 %v494
        %v918 = vunpack.c.l.b16 %v495
        %v919 = vunpack.c.l.b16 %v496
        %v920 = vunpack.c.l.b16 %v497
        %v921 = vunpack.c.l.b16 %v498
        %v922 = vunpack.c.l.b16 %v499
        %v923 = vpack.c.b16 %v908, %v907
        %v924 = vpack.c.b16 %v910, %v909
        %v925 = vpack.c.b16 %v912, %v911
        %v926 = vpack.c.b16 %v914, %v913
        %v927 = vpack.c.b16 %v916, %v915
        %v928 = vpack.c.b16 %v918, %v917
        %v929 = vpack.c.b16 %v920, %v919
        %v930 = vpack.c.b16 %v922, %v921
        %939 = vmatprep.subr.bf16.mxu0 0
        %940 = vmatpush1.bf16.msra.mxu0 %v923
        %941 = vmatprep.subr.bf16.mxu0 0
        %942 = vmatpush1.bf16.msra.mxu0 %v924
        %943 = vmatprep.subr.bf16.mxu0 0
        %944 = vmatpush1.bf16.msra.mxu0 %v925
        %945 = vmatprep.subr.bf16.mxu0 0
        %946 = vmatpush1.bf16.msra.mxu0 %v926
        %947 = vmatprep.subr.bf16.mxu0 0
        %948 = vmatpush1.bf16.msra.mxu0 %v927
        %949 = vmatprep.subr.bf16.mxu0 0
        %950 = vmatpush1.bf16.msra.mxu0 %v928
        %951 = vmatprep.subr.bf16.mxu0 0
        %952 = vmatpush1.bf16.msra.mxu0 %v929
        %953 = vmatprep.subr.bf16.mxu0 0
        %954 = vmatpush1.bf16.msra.mxu0 %v930
        %955 = vmatprep.subr.bf16.mxu0 0
        %956 = vmatpush1.bf16.msra.mxu0 0
        %957 = vmatprep.subr.bf16.mxu0 0
        %958 = vmatpush1.bf16.msra.mxu0 0
        %959 = vmatprep.subr.bf16.mxu0 0
        %960 = vmatpush1.bf16.msra.mxu0 0
        %961 = vmatprep.subr.bf16.mxu0 0
        %962 = vmatpush1.bf16.msra.mxu0 0
        %963 = vmatprep.subr.bf16.mxu0 0
        %964 = vmatpush1.bf16.msra.mxu0 0
        %965 = vmatprep.subr.bf16.mxu0 0
        %966 = vmatpush1.bf16.msra.mxu0 0
        %967 = vmatprep.subr.bf16.mxu0 0
        %968 = vmatpush1.bf16.msra.mxu0 0
        %969 = vmatprep.subr.bf16.mxu0 0
        %970 = vmatpush1.bf16.msra.mxu0 0
        %971 = vmatprep.mubr.bf16.mxu0 0
        %972 = vmatmul.mubr.bf16.gmra.mrb[0].mxu0 %v763
        %v973 = vpop.f32.mrb[0].mxu0
        %v974 = vadd.f32 %v505, %v973
        %v975 = vpop.f32.mrb[0].mxu0
        %v976 = vpop.f32.mrb[0].mxu0
        %v977 = vadd.f32 %v505, %v976
        %v978 = vpop.f32.mrb[0].mxu0
        %979 = vmatprep.mubr.bf16.mxu0 0
        %980 = vmatmul.mubr.bf16.gmra.mrb[0].mxu0 %v764
        %v981 = vpop.f32.mrb[0].mxu0
        %v982 = vadd.f32 %v505, %v981
        %v983 = vpop.f32.mrb[0].mxu0
        %v984 = vpop.f32.mrb[0].mxu0
        %v985 = vadd.f32 %v505, %v984
        %v986 = vpop.f32.mrb[0].mxu0
        %987 = vmatprep.mubr.bf16.mxu0 0
        %988 = vmatmul.mubr.bf16.gmra.mrb[0].mxu0 %v765
        %v989 = vpop.f32.mrb[0].mxu0
        %v990 = vadd.f32 %v505, %v989
        %v991 = vpop.f32.mrb[0].mxu0
        %v992 = vpop.f32.mrb[0].mxu0
        %v993 = vadd.f32 %v505, %v992
        %v994 = vpop.f32.mrb[0].mxu0
        %995 = vmatprep.mubr.bf16.mxu0 0
        %996 = vmatmul.mubr.bf16.gmra.mrb[0].mxu0 %v766
        %v997 = vpop.f32.mrb[0].mxu0
        %v998 = vadd.f32 %v505, %v997
        %v999 = vpop.f32.mrb[0].mxu0
        %v1000 = vpop.f32.mrb[0].mxu0
        %v1001 = vadd.f32 %v505, %v1000
        %v1002 = vpop.f32.mrb[0].mxu0
        %1003 = vmatprep.mubr.bf16.mxu0 0
        %1004 = vmatmul.mubr.bf16.gmra.mrb[0].mxu0 %v767
        %v1005 = vpop.f32.mrb[0].mxu0
        %v1006 = vadd.f32 %v505, %v1005
        %v1007 = vpop.f32.mrb[0].mxu0
        %v1008 = vpop.f32.mrb[0].mxu0
        %v1009 = vadd.f32 %v505, %v1008
        %v1010 = vpop.f32.mrb[0].mxu0
        %1011 = vmatprep.mubr.bf16.mxu0 0
        %1012 = vmatmul.mubr.bf16.gmra.mrb[0].mxu0 %v768
        %v1013 = vpop.f32.mrb[0].mxu0
        %v1014 = vadd.f32 %v505, %v1013
        %v1015 = vpop.f32.mrb[0].mxu0
        %v1016 = vpop.f32.mrb[0].mxu0
        %v1017 = vadd.f32 %v505, %v1016
        %v1018 = vpop.f32.mrb[0].mxu0
        %1019 = vmatprep.mubr.bf16.mxu0 0
        %1020 = vmatmul.mubr.bf16.gmra.mrb[0].mxu0 %v769
        %v1021 = vpop.f32.mrb[0].mxu0
        %v1022 = vadd.f32 %v505, %v1021
        %v1023 = vpop.f32.mrb[0].mxu0
        %v1024 = vpop.f32.mrb[0].mxu0
        %v1025 = vadd.f32 %v505, %v1024
        %v1026 = vpop.f32.mrb[0].mxu0
        %1027 = vmatprep.mubr.bf16.mxu0 0
        %1028 = vmatmul.mubr.bf16.gmra.mrb[0].mxu0 %v770
        %v1029 = vpop.f32.mrb[0].mxu0
        %v1030 = vadd.f32 %v505, %v1029
        %v1031 = vpop.f32.mrb[0].mxu0
        %v1032 = vpop.f32.mrb[0].mxu0
        %v1033 = vadd.f32 %v505, %v1032
        %v1034 = vpop.f32.mrb[0].mxu0
        %1035 = vmatprep.mubr.bf16.mxu0 0
        %1036 = vmatmul.mubr.bf16.gmra.mrb[0].mxu0 %v771
        %v1037 = vpop.f32.mrb[0].mxu0
        %v1038 = vadd.f32 %v505, %v1037
        %v1039 = vpop.f32.mrb[0].mxu0
        %v1040 = vpop.f32.mrb[0].mxu0
        %v1041 = vadd.f32 %v505, %v1040
        %v1042 = vpop.f32.mrb[0].mxu0
        %1043 = vmatprep.mubr.bf16.mxu0 0
        %1044 = vmatmul.mubr.bf16.gmra.mrb[0].mxu0 %v772
        %v1045 = vpop.f32.mrb[0].mxu0
        %v1046 = vadd.f32 %v505, %v1045
        %v1047 = vpop.f32.mrb[0].mxu0
        %v1048 = vpop.f32.mrb[0].mxu0
        %v1049 = vadd.f32 %v505, %v1048
        %v1050 = vpop.f32.mrb[0].mxu0
        %1051 = vmatprep.mubr.bf16.mxu0 0
        %1052 = vmatmul.mubr.bf16.gmra.mrb[0].mxu0 %v773
        %v1053 = vpop.f32.mrb[0].mxu0
        %v1054 = vadd.f32 %v505, %v1053
        %v1055 = vpop.f32.mrb[0].mxu0
        %v1056 = vpop.f32.mrb[0].mxu0
        %v1057 = vadd.f32 %v505, %v1056
        %v1058 = vpop.f32.mrb[0].mxu0
        %1059 = vmatprep.mubr.bf16.mxu0 0
        %1060 = vmatmul.mubr.bf16.gmra.mrb[0].mxu0 %v774
        %v1061 = vpop.f32.mrb[0].mxu0
        %v1062 = vadd.f32 %v505, %v1061
        %v1063 = vpop.f32.mrb[0].mxu0
        %v1064 = vpop.f32.mrb[0].mxu0
        %v1065 = vadd.f32 %v505, %v1064
        %v1066 = vpop.f32.mrb[0].mxu0
        %1067 = vmatprep.mubr.bf16.mxu0 0
        %1068 = vmatmul.mubr.bf16.gmra.mrb[0].mxu0 %v775
        %v1069 = vpop.f32.mrb[0].mxu0
        %v1070 = vadd.f32 %v505, %v1069
        %v1071 = vpop.f32.mrb[0].mxu0
        %v1072 = vpop.f32.mrb[0].mxu0
        %v1073 = vadd.f32 %v505, %v1072
        %v1074 = vpop.f32.mrb[0].mxu0
        %1075 = vmatprep.mubr.bf16.mxu0 0
        %1076 = vmatmul.mubr.bf16.gmra.mrb[0].mxu0 %v776
        %v1077 = vpop.f32.mrb[0].mxu0
        %v1078 = vadd.f32 %v505, %v1077
        %v1079 = vpop.f32.mrb[0].mxu0
        %v1080 = vpop.f32.mrb[0].mxu0
        %v1081 = vadd.f32 %v505, %v1080
        %v1082 = vpop.f32.mrb[0].mxu0
        %1083 = vmatprep.mubr.bf16.mxu0 0
        %1084 = vmatmul.mubr.bf16.gmra.mrb[0].mxu0 %v777
        %v1085 = vpop.f32.mrb[0].mxu0
        %v1086 = vadd.f32 %v505, %v1085
        %v1087 = vpop.f32.mrb[0].mxu0
        %v1088 = vpop.f32.mrb[0].mxu0
        %v1089 = vadd.f32 %v505, %v1088
        %v1090 = vpop.f32.mrb[0].mxu0
        %1091 = vmatprep.mubr.bf16.mxu0 0
        %1092 = vmatmul.mubr.bf16.gmra.mrb[0].mxu0 %v778
        %v1093 = vpop.f32.mrb[0].mxu0
        %v1094 = vadd.f32 %v505, %v1093
        %v1095 = vpop.f32.mrb[0].mxu0
        %v1096 = vpop.f32.mrb[0].mxu0
        %v1097 = vadd.f32 %v505, %v1096
        %v1098 = vpop.f32.mrb[0].mxu0
        %1099 = vmatprep.mubr.bf16.mxu0 0
        %1100 = vmatmul.mubr.bf16.gmra.mrb[0].mxu0 %v779
        %v1101 = vpop.f32.mrb[0].mxu0
        %v1102 = vadd.f32 %v505, %v1101
        %v1103 = vpop.f32.mrb[0].mxu0
        %v1104 = vpop.f32.mrb[0].mxu0
        %v1105 = vadd.f32 %v505, %v1104
        %v1106 = vpop.f32.mrb[0].mxu0
        %1107 = vmatprep.mubr.bf16.mxu0 0
        %1108 = vmatmul.mubr.bf16.gmra.mrb[0].mxu0 %v780
        %v1109 = vpop.f32.mrb[0].mxu0
        %v1110 = vadd.f32 %v505, %v1109
        %v1111 = vpop.f32.mrb[0].mxu0
        %v1112 = vpop.f32.mrb[0].mxu0
        %v1113 = vadd.f32 %v505, %v1112
        %v1114 = vpop.f32.mrb[0].mxu0
        %1115 = vmatprep.mubr.bf16.mxu0 0
        %1116 = vmatmul.mubr.bf16.gmra.mrb[0].mxu0 %v781
        %v1117 = vpop.f32.mrb[0].mxu0
        %v1118 = vadd.f32 %v505, %v1117
        %v1119 = vpop.f32.mrb[0].mxu0
        %v1120 = vpop.f32.mrb[0].mxu0
        %v1121 = vadd.f32 %v505, %v1120
        %v1122 = vpop.f32.mrb[0].mxu0
        %1123 = vmatprep.mubr.bf16.mxu0 0
        %1124 = vmatmul.mubr.bf16.gmra.mrb[0].mxu0 %v782
        %v1125 = vpop.f32.mrb[0].mxu0
        %v1126 = vadd.f32 %v505, %v1125
        %v1127 = vpop.f32.mrb[0].mxu0
        %v1128 = vpop.f32.mrb[0].mxu0
        %v1129 = vadd.f32 %v505, %v1128
        %v1130 = vpop.f32.mrb[0].mxu0
        %1131 = vmatprep.mubr.bf16.mxu0 0
        %1132 = vmatmul.mubr.bf16.gmra.mrb[0].mxu0 %v783
        %v1133 = vpop.f32.mrb[0].mxu0
        %v1134 = vadd.f32 %v505, %v1133
        %v1135 = vpop.f32.mrb[0].mxu0
        %v1136 = vpop.f32.mrb[0].mxu0
        %v1137 = vadd.f32 %v505, %v1136
        %v1138 = vpop.f32.mrb[0].mxu0
        %1139 = vmatprep.mubr.bf16.mxu0 0
        %1140 = vmatmul.mubr.bf16.gmra.mrb[0].mxu0 %v784
        %v1141 = vpop.f32.mrb[0].mxu0
        %v1142 = vadd.f32 %v505, %v1141
        %v1143 = vpop.f32.mrb[0].mxu0
        %v1144 = vpop.f32.mrb[0].mxu0
        %v1145 = vadd.f32 %v505, %v1144
        %v1146 = vpop.f32.mrb[0].mxu0
        %1147 = vmatprep.mubr.bf16.mxu0 0
        %1148 = vmatmul.mubr.bf16.gmra.mrb[0].mxu0 %v785
        %v1149 = vpop.f32.mrb[0].mxu0
        %v1150 = vadd.f32 %v505, %v1149
        %v1151 = vpop.f32.mrb[0].mxu0
        %v1152 = vpop.f32.mrb[0].mxu0
        %v1153 = vadd.f32 %v505, %v1152
        %v1154 = vpop.f32.mrb[0].mxu0
        %1155 = vmatprep.mubr.bf16.mxu0 0
        %1156 = vmatmul.mubr.bf16.gmra.mrb[0].mxu0 %v786
        %v1157 = vpop.f32.mrb[0].mxu0
        %v1158 = vadd.f32 %v505, %v1157
        %v1159 = vpop.f32.mrb[0].mxu0
        %v1160 = vpop.f32.mrb[0].mxu0
        %v1161 = vadd.f32 %v505, %v1160
        %v1162 = vpop.f32.mrb[0].mxu0
        %1163 = vmatprep.mubr.bf16.mxu0 0
        %1164 = vmatmul.mubr.bf16.gmra.mrb[0].mxu0 %v787
        %v1165 = vpop.f32.mrb[0].mxu0
        %v1166 = vadd.f32 %v505, %v1165
        %v1167 = vpop.f32.mrb[0].mxu0
        %v1168 = vpop.f32.mrb[0].mxu0
        %v1169 = vadd.f32 %v505, %v1168
        %v1170 = vpop.f32.mrb[0].mxu0
        %1171 = vmatprep.mubr.bf16.mxu0 0
        %1172 = vmatmul.mubr.bf16.gmra.mrb[0].mxu0 %v788
        %v1173 = vpop.f32.mrb[0].mxu0
        %v1174 = vadd.f32 %v505, %v1173
        %v1175 = vpop.f32.mrb[0].mxu0
        %v1176 = vpop.f32.mrb[0].mxu0
        %v1177 = vadd.f32 %v505, %v1176
        %v1178 = vpop.f32.mrb[0].mxu0
        %1179 = vmatprep.mubr.bf16.mxu0 0
        %1180 = vmatmul.mubr.bf16.gmra.mrb[0].mxu0 %v789
        %v1181 = vpop.f32.mrb[0].mxu0
        %v1182 = vadd.f32 %v505, %v1181
        %v1183 = vpop.f32.mrb[0].mxu0
        %v1184 = vpop.f32.mrb[0].mxu0
        %v1185 = vadd.f32 %v505, %v1184
        %v1186 = vpop.f32.mrb[0].mxu0
        %1187 = vmatprep.mubr.bf16.mxu0 0
        %1188 = vmatmul.mubr.bf16.gmra.mrb[0].mxu0 %v790
        %v1189 = vpop.f32.mrb[0].mxu0
        %v1190 = vadd.f32 %v505, %v1189
        %v1191 = vpop.f32.mrb[0].mxu0
        %v1192 = vpop.f32.mrb[0].mxu0
        %v1193 = vadd.f32 %v505, %v1192
        %v1194 = vpop.f32.mrb[0].mxu0
        %1195 = vmatprep.mubr.bf16.mxu0 0
        %1196 = vmatmul.mubr.bf16.gmra.mrb[0].mxu0 %v791
        %v1197 = vpop.f32.mrb[0].mxu0
        %v1198 = vadd.f32 %v505, %v1197
        %v1199 = vpop.f32.mrb[0].mxu0
        %v1200 = vpop.f32.mrb[0].mxu0
        %v1201 = vadd.f32 %v505, %v1200
        %v1202 = vpop.f32.mrb[0].mxu0
        %1203 = vmatprep.mubr.bf16.mxu0 0
        %1204 = vmatmul.mubr.bf16.gmra.mrb[0].mxu0 %v792
        %v1205 = vpop.f32.mrb[0].mxu0
        %v1206 = vadd.f32 %v505, %v1205
        %v1207 = vpop.f32.mrb[0].mxu0
        %v1208 = vpop.f32.mrb[0].mxu0
        %v1209 = vadd.f32 %v505, %v1208
        %v1210 = vpop.f32.mrb[0].mxu0
        %1211 = vmatprep.mubr.bf16.mxu0 0
        %1212 = vmatmul.mubr.bf16.gmra.mrb[0].mxu0 %v793
        %v1213 = vpop.f32.mrb[0].mxu0
        %v1214 = vadd.f32 %v505, %v1213
        %v1215 = vpop.f32.mrb[0].mxu0
        %v1216 = vpop.f32.mrb[0].mxu0
        %v1217 = vadd.f32 %v505, %v1216
        %v1218 = vpop.f32.mrb[0].mxu0
        %1219 = vmatprep.mubr.bf16.mxu0 0
        %1220 = vmatmul.mubr.bf16.gmra.mrb[0].mxu0 %v794
        %v1221 = vpop.f32.mrb[0].mxu0
        %v1222 = vadd.f32 %v505, %v1221
        %v1223 = vpop.f32.mrb[0].mxu0
        %v1224 = vpop.f32.mrb[0].mxu0
        %v1225 = vadd.f32 %v505, %v1224
        %v1226 = vpop.f32.mrb[0].mxu0
        %1227 = vmatprep.mubr.bf16.mxu0 0
        %1228 = vmatmul.mubr.bf16.gmra.mrb[0].mxu0 %v795
        %v1229 = vpop.f32.mrb[0].mxu0
        %v1230 = vadd.f32 %v505, %v1229
        %v1231 = vpop.f32.mrb[0].mxu0
        %v1232 = vpop.f32.mrb[0].mxu0
        %v1233 = vadd.f32 %v505, %v1232
        %v1234 = vpop.f32.mrb[0].mxu0
        %1235 = vmatprep.mubr.bf16.mxu0 0
        %1236 = vmatmul.mubr.bf16.gmra.mrb[0].mxu0 %v796
        %v1237 = vpop.f32.mrb[0].mxu0
        %v1238 = vadd.f32 %v505, %v1237
        %v1239 = vpop.f32.mrb[0].mxu0
        %v1240 = vpop.f32.mrb[0].mxu0
        %v1241 = vadd.f32 %v505, %v1240
        %v1242 = vpop.f32.mrb[0].mxu0
        %1243 = vmatprep.mubr.bf16.mxu0 0
        %1244 = vmatmul.mubr.bf16.gmra.mrb[0].mxu0 %v797
        %v1245 = vpop.f32.mrb[0].mxu0
        %v1246 = vadd.f32 %v505, %v1245
        %v1247 = vpop.f32.mrb[0].mxu0
        %v1248 = vpop.f32.mrb[0].mxu0
        %v1249 = vadd.f32 %v505, %v1248
        %v1250 = vpop.f32.mrb[0].mxu0
        %1251 = vmatprep.mubr.bf16.mxu0 0
        %1252 = vmatmul.mubr.bf16.gmra.mrb[0].mxu0 %v798
        %v1253 = vpop.f32.mrb[0].mxu0
        %v1254 = vadd.f32 %v505, %v1253
        %v1255 = vpop.f32.mrb[0].mxu0
        %v1256 = vpop.f32.mrb[0].mxu0
        %v1257 = vadd.f32 %v505, %v1256
        %v1258 = vpop.f32.mrb[0].mxu0
        %1259 = vmatprep.mubr.bf16.mxu0 0
        %1260 = vmatmul.mubr.bf16.gmra.mrb[0].mxu0 %v799
        %v1261 = vpop.f32.mrb[0].mxu0
        %v1262 = vadd.f32 %v505, %v1261
        %v1263 = vpop.f32.mrb[0].mxu0
        %v1264 = vpop.f32.mrb[0].mxu0
        %v1265 = vadd.f32 %v505, %v1264
        %v1266 = vpop.f32.mrb[0].mxu0
        %1267 = vmatprep.mubr.bf16.mxu0 0
        %1268 = vmatmul.mubr.bf16.gmra.mrb[0].mxu0 %v800
        %v1269 = vpop.f32.mrb[0].mxu0
        %v1270 = vadd.f32 %v505, %v1269
        %v1271 = vpop.f32.mrb[0].mxu0
        %v1272 = vpop.f32.mrb[0].mxu0
        %v1273 = vadd.f32 %v505, %v1272
        %v1274 = vpop.f32.mrb[0].mxu0
        %1275 = vmatprep.mubr.bf16.mxu0 0
        %1276 = vmatmul.mubr.bf16.gmra.mrb[0].mxu0 %v801
        %v1277 = vpop.f32.mrb[0].mxu0
        %v1278 = vadd.f32 %v505, %v1277
        %v1279 = vpop.f32.mrb[0].mxu0
        %v1280 = vpop.f32.mrb[0].mxu0
        %v1281 = vadd.f32 %v505, %v1280
        %v1282 = vpop.f32.mrb[0].mxu0
        %1283 = vmatprep.mubr.bf16.mxu0 0
        %1284 = vmatmul.mubr.bf16.gmra.mrb[0].mxu0 %v802
        %v1285 = vpop.f32.mrb[0].mxu0
        %v1286 = vadd.f32 %v505, %v1285
        %v1287 = vpop.f32.mrb[0].mxu0
        %v1288 = vpop.f32.mrb[0].mxu0
        %v1289 = vadd.f32 %v505, %v1288
        %v1290 = vpop.f32.mrb[0].mxu0
        %1291 = vmatprep.mubr.bf16.mxu0 0
        %1292 = vmatmul.mubr.bf16.gmra.mrb[0].mxu0 %v803
        %v1293 = vpop.f32.mrb[0].mxu0
        %v1294 = vadd.f32 %v505, %v1293
        %v1295 = vpop.f32.mrb[0].mxu0
        %v1296 = vpop.f32.mrb[0].mxu0
        %v1297 = vadd.f32 %v505, %v1296
        %v1298 = vpop.f32.mrb[0].mxu0
        %1299 = vmatprep.mubr.bf16.mxu0 0
        %1300 = vmatmul.mubr.bf16.gmra.mrb[0].mxu0 %v804
        %v1301 = vpop.f32.mrb[0].mxu0
        %v1302 = vadd.f32 %v505, %v1301
        %v1303 = vpop.f32.mrb[0].mxu0
        %v1304 = vpop.f32.mrb[0].mxu0
        %v1305 = vadd.f32 %v505, %v1304
        %v1306 = vpop.f32.mrb[0].mxu0
        %1307 = vmatprep.mubr.bf16.mxu0 0
        %1308 = vmatmul.mubr.bf16.gmra.mrb[0].mxu0 %v805
        %v1309 = vpop.f32.mrb[0].mxu0
        %v1310 = vadd.f32 %v505, %v1309
        %v1311 = vpop.f32.mrb[0].mxu0
        %v1312 = vpop.f32.mrb[0].mxu0
        %v1313 = vadd.f32 %v505, %v1312
        %v1314 = vpop.f32.mrb[0].mxu0
        %1315 = vmatprep.mubr.bf16.mxu0 0
        %1316 = vmatmul.mubr.bf16.gmra.mrb[0].mxu0 %v806
        %v1317 = vpop.f32.mrb[0].mxu0
        %v1318 = vadd.f32 %v505, %v1317
        %v1319 = vpop.f32.mrb[0].mxu0
        %v1320 = vpop.f32.mrb[0].mxu0
        %v1321 = vadd.f32 %v505, %v1320
        %v1322 = vpop.f32.mrb[0].mxu0
        %1323 = vmatprep.mubr.bf16.mxu0 0
        %1324 = vmatmul.mubr.bf16.gmra.mrb[0].mxu0 %v807
        %v1325 = vpop.f32.mrb[0].mxu0
        %v1326 = vadd.f32 %v505, %v1325
        %v1327 = vpop.f32.mrb[0].mxu0
        %v1328 = vpop.f32.mrb[0].mxu0
        %v1329 = vadd.f32 %v505, %v1328
        %v1330 = vpop.f32.mrb[0].mxu0
        %1331 = vmatprep.mubr.bf16.mxu0 0
        %1332 = vmatmul.mubr.bf16.gmra.mrb[0].mxu0 %v808
        %v1333 = vpop.f32.mrb[0].mxu0
        %v1334 = vadd.f32 %v505, %v1333
        %v1335 = vpop.f32.mrb[0].mxu0
        %v1336 = vpop.f32.mrb[0].mxu0
        %v1337 = vadd.f32 %v505, %v1336
        %v1338 = vpop.f32.mrb[0].mxu0
        %1339 = vmatprep.mubr.bf16.mxu0 0
        %1340 = vmatmul.mubr.bf16.gmra.mrb[0].mxu0 %v809
        %v1341 = vpop.f32.mrb[0].mxu0
        %v1342 = vadd.f32 %v505, %v1341
        %v1343 = vpop.f32.mrb[0].mxu0
        %v1344 = vpop.f32.mrb[0].mxu0
        %v1345 = vadd.f32 %v505, %v1344
        %v1346 = vpop.f32.mrb[0].mxu0
        %1347 = vmatprep.mubr.bf16.mxu0 0
        %1348 = vmatmul.mubr.bf16.gmra.mrb[0].mxu0 %v810
        %v1349 = vpop.f32.mrb[0].mxu0
        %v1350 = vadd.f32 %v505, %v1349
        %v1351 = vpop.f32.mrb[0].mxu0
        %v1352 = vpop.f32.mrb[0].mxu0
        %v1353 = vadd.f32 %v505, %v1352
        %v1354 = vpop.f32.mrb[0].mxu0
        %1355 = vmatprep.mubr.bf16.mxu0 0
        %1356 = vmatmul.mubr.bf16.gmra.mrb[0].mxu0 %v811
        %v1357 = vpop.f32.mrb[0].mxu0
        %v1358 = vadd.f32 %v505, %v1357
        %v1359 = vpop.f32.mrb[0].mxu0
        %v1360 = vpop.f32.mrb[0].mxu0
        %v1361 = vadd.f32 %v505, %v1360
        %v1362 = vpop.f32.mrb[0].mxu0
        %1363 = vmatprep.mubr.bf16.mxu0 0
        %1364 = vmatmul.mubr.bf16.gmra.mrb[0].mxu0 %v812
        %v1365 = vpop.f32.mrb[0].mxu0
        %v1366 = vadd.f32 %v505, %v1365
        %v1367 = vpop.f32.mrb[0].mxu0
        %v1368 = vpop.f32.mrb[0].mxu0
        %v1369 = vadd.f32 %v505, %v1368
        %v1370 = vpop.f32.mrb[0].mxu0
        %1371 = vmatprep.mubr.bf16.mxu0 0
        %1372 = vmatmul.mubr.bf16.gmra.mrb[0].mxu0 %v813
        %v1373 = vpop.f32.mrb[0].mxu0
        %v1374 = vadd.f32 %v505, %v1373
        %v1375 = vpop.f32.mrb[0].mxu0
        %v1376 = vpop.f32.mrb[0].mxu0
        %v1377 = vadd.f32 %v505, %v1376
        %v1378 = vpop.f32.mrb[0].mxu0
        %1379 = vmatprep.mubr.bf16.mxu0 0
        %1380 = vmatmul.mubr.bf16.gmra.mrb[0].mxu0 %v814
        %v1381 = vpop.f32.mrb[0].mxu0
        %v1382 = vadd.f32 %v505, %v1381
        %v1383 = vpop.f32.mrb[0].mxu0
        %v1384 = vpop.f32.mrb[0].mxu0
        %v1385 = vadd.f32 %v505, %v1384
        %v1386 = vpop.f32.mrb[0].mxu0
        %1387 = vmatprep.mubr.bf16.mxu0 0
        %1388 = vmatmul.mubr.bf16.gmra.mrb[0].mxu0 %v815
        %v1389 = vpop.f32.mrb[0].mxu0
        %v1390 = vadd.f32 %v505, %v1389
        %v1391 = vpop.f32.mrb[0].mxu0
        %v1392 = vpop.f32.mrb[0].mxu0
        %v1393 = vadd.f32 %v505, %v1392
        %v1394 = vpop.f32.mrb[0].mxu0
        %1395 = vmatprep.mubr.bf16.mxu0 0
        %1396 = vmatmul.mubr.bf16.gmra.mrb[0].mxu0 %v816
        %v1397 = vpop.f32.mrb[0].mxu0
        %v1398 = vadd.f32 %v505, %v1397
        %v1399 = vpop.f32.mrb[0].mxu0
        %v1400 = vpop.f32.mrb[0].mxu0
        %v1401 = vadd.f32 %v505, %v1400
        %v1402 = vpop.f32.mrb[0].mxu0
        %1403 = vmatprep.mubr.bf16.mxu0 0
        %1404 = vmatmul.mubr.bf16.gmra.mrb[0].mxu0 %v817
        %v1405 = vpop.f32.mrb[0].mxu0
        %v1406 = vadd.f32 %v505, %v1405
        %v1407 = vpop.f32.mrb[0].mxu0
        %v1408 = vpop.f32.mrb[0].mxu0
        %v1409 = vadd.f32 %v505, %v1408
        %v1410 = vpop.f32.mrb[0].mxu0
        %1411 = vmatprep.mubr.bf16.mxu0 0
        %1412 = vmatmul.mubr.bf16.gmra.mrb[0].mxu0 %v818
        %v1413 = vpop.f32.mrb[0].mxu0
        %v1414 = vadd.f32 %v505, %v1413
        %v1415 = vpop.f32.mrb[0].mxu0
        %v1416 = vpop.f32.mrb[0].mxu0
        %v1417 = vadd.f32 %v505, %v1416
        %v1418 = vpop.f32.mrb[0].mxu0
        %1419 = vmatprep.mubr.bf16.mxu0 0
        %1420 = vmatmul.mubr.bf16.gmra.mrb[0].mxu0 %v819
        %v1421 = vpop.f32.mrb[0].mxu0
        %v1422 = vadd.f32 %v505, %v1421
        %v1423 = vpop.f32.mrb[0].mxu0
        %v1424 = vpop.f32.mrb[0].mxu0
        %v1425 = vadd.f32 %v505, %v1424
        %v1426 = vpop.f32.mrb[0].mxu0
        %1427 = vmatprep.mubr.bf16.mxu0 0
        %1428 = vmatmul.mubr.bf16.gmra.mrb[0].mxu0 %v820
        %v1429 = vpop.f32.mrb[0].mxu0
        %v1430 = vadd.f32 %v505, %v1429
        %v1431 = vpop.f32.mrb[0].mxu0
        %v1432 = vpop.f32.mrb[0].mxu0
        %v1433 = vadd.f32 %v505, %v1432
        %v1434 = vpop.f32.mrb[0].mxu0
        %1435 = vmatprep.mubr.bf16.mxu0 0
        %1436 = vmatmul.mubr.bf16.gmra.mrb[0].mxu0 %v821
        %v1437 = vpop.f32.mrb[0].mxu0
        %v1438 = vadd.f32 %v505, %v1437
        %v1439 = vpop.f32.mrb[0].mxu0
        %v1440 = vpop.f32.mrb[0].mxu0
        %v1441 = vadd.f32 %v505, %v1440
        %v1442 = vpop.f32.mrb[0].mxu0
        %1443 = vmatprep.mubr.bf16.mxu0 0
        %1444 = vmatmul.mubr.bf16.gmra.mrb[0].mxu0 %v822
        %v1445 = vpop.f32.mrb[0].mxu0
        %v1446 = vadd.f32 %v505, %v1445
        %v1447 = vpop.f32.mrb[0].mxu0
        %v1448 = vpop.f32.mrb[0].mxu0
        %v1449 = vadd.f32 %v505, %v1448
        %v1450 = vpop.f32.mrb[0].mxu0
        %1451 = vmatprep.mubr.bf16.mxu0 0
        %1452 = vmatmul.mubr.bf16.gmra.mrb[0].mxu0 %v823
        %v1453 = vpop.f32.mrb[0].mxu0
        %v1454 = vadd.f32 %v505, %v1453
        %v1455 = vpop.f32.mrb[0].mxu0
        %v1456 = vpop.f32.mrb[0].mxu0
        %v1457 = vadd.f32 %v505, %v1456
        %v1458 = vpop.f32.mrb[0].mxu0
        %1459 = vmatprep.mubr.bf16.mxu0 0
        %1460 = vmatmul.mubr.bf16.gmra.mrb[0].mxu0 %v824
        %v1461 = vpop.f32.mrb[0].mxu0
        %v1462 = vadd.f32 %v505, %v1461
        %v1463 = vpop.f32.mrb[0].mxu0
        %v1464 = vpop.f32.mrb[0].mxu0
        %v1465 = vadd.f32 %v505, %v1464
        %v1466 = vpop.f32.mrb[0].mxu0
        %1467 = vmatprep.mubr.bf16.mxu0 0
        %1468 = vmatmul.mubr.bf16.gmra.mrb[0].mxu0 %v825
        %v1469 = vpop.f32.mrb[0].mxu0
        %v1470 = vadd.f32 %v505, %v1469
        %v1471 = vpop.f32.mrb[0].mxu0
        %v1472 = vpop.f32.mrb[0].mxu0
        %v1473 = vadd.f32 %v505, %v1472
        %v1474 = vpop.f32.mrb[0].mxu0
        %1475 = vmatprep.mubr.bf16.mxu0 0
        %1476 = vmatmul.mubr.bf16.gmra.mrb[0].mxu0 %v826
        %v1477 = vpop.f32.mrb[0].mxu0
        %v1478 = vadd.f32 %v505, %v1477
        %v1479 = vpop.f32.mrb[0].mxu0
        %v1480 = vpop.f32.mrb[0].mxu0
        %v1481 = vadd.f32 %v505, %v1480
        %v1482 = vpop.f32.mrb[0].mxu0
        %1483 = vdwg.mxu0
        %v1484 = vmax.f32 %v974, 0.0
        %v1485 = vmax.f32 %v977, 0.0
        %v1486 = vmax.f32 %v982, 0.0
        %v1487 = vmax.f32 %v985, 0.0
        %v1488 = vmax.f32 %v990, 0.0
        %v1489 = vmax.f32 %v993, 0.0
        %v1490 = vmax.f32 %v998, 0.0
        %v1491 = vmax.f32 %v1001, 0.0
        %v1492 = vmax.f32 %v1006, 0.0
        %v1493 = vmax.f32 %v1009, 0.0
        %v1494 = vmax.f32 %v1014, 0.0
        %v1495 = vmax.f32 %v1017, 0.0
        %v1496 = vmax.f32 %v1022, 0.0
        %v1497 = vmax.f32 %v1025, 0.0
        %v1498 = vmax.f32 %v1030, 0.0
        %v1499 = vmax.f32 %v1033, 0.0
        %v1500 = vmax.f32 %v1038, 0.0
        %v1501 = vmax.f32 %v1041, 0.0
        %v1502 = vmax.f32 %v1046, 0.0
        %v1503 = vmax.f32 %v1049, 0.0
        %v1504 = vmax.f32 %v1054, 0.0
        %v1505 = vmax.f32 %v1057, 0.0
        %v1506 = vmax.f32 %v1062, 0.0
        %v1507 = vmax.f32 %v1065, 0.0
        %v1508 = vmax.f32 %v1070, 0.0
        %v1509 = vmax.f32 %v1073, 0.0
        %v1510 = vmax.f32 %v1078, 0.0
        %v1511 = vmax.f32 %v1081, 0.0
        %v1512 = vmax.f32 %v1086, 0.0
        %v1513 = vmax.f32 %v1089, 0.0
        %v1514 = vmax.f32 %v1094, 0.0
        %v1515 = vmax.f32 %v1097, 0.0
        %v1516 = vmax.f32 %v1102, 0.0
        %v1517 = vmax.f32 %v1105, 0.0
        %v1518 = vmax.f32 %v1110, 0.0
        %v1519 = vmax.f32 %v1113, 0.0
        %v1520 = vmax.f32 %v1118, 0.0
        %v1521 = vmax.f32 %v1121, 0.0
        %v1522 = vmax.f32 %v1126, 0.0
        %v1523 = vmax.f32 %v1129, 0.0
        %v1524 = vmax.f32 %v1134, 0.0
        %v1525 = vmax.f32 %v1137, 0.0
        %v1526 = vmax.f32 %v1142, 0.0
        %v1527 = vmax.f32 %v1145, 0.0
        %v1528 = vmax.f32 %v1150, 0.0
        %v1529 = vmax.f32 %v1153, 0.0
        %v1530 = vmax.f32 %v1158, 0.0
        %v1531 = vmax.f32 %v1161, 0.0
        %v1532 = vmax.f32 %v1166, 0.0
        %v1533 = vmax.f32 %v1169, 0.0
        %v1534 = vmax.f32 %v1174, 0.0
        %v1535 = vmax.f32 %v1177, 0.0
        %v1536 = vmax.f32 %v1182, 0.0
        %v1537 = vmax.f32 %v1185, 0.0
        %v1538 = vmax.f32 %v1190, 0.0
        %v1539 = vmax.f32 %v1193, 0.0
        %v1540 = vmax.f32 %v1198, 0.0
        %v1541 = vmax.f32 %v1201, 0.0
        %v1542 = vmax.f32 %v1206, 0.0
        %v1543 = vmax.f32 %v1209, 0.0
        %v1544 = vmax.f32 %v1214, 0.0
        %v1545 = vmax.f32 %v1217, 0.0
        %v1546 = vmax.f32 %v1222, 0.0
        %v1547 = vmax.f32 %v1225, 0.0
        %v1548 = vmax.f32 %v1230, 0.0
        %v1549 = vmax.f32 %v1233, 0.0
        %v1550 = vmax.f32 %v1238, 0.0
        %v1551 = vmax.f32 %v1241, 0.0
        %v1552 = vmax.f32 %v1246, 0.0
        %v1553 = vmax.f32 %v1249, 0.0
        %v1554 = vmax.f32 %v1254, 0.0
        %v1555 = vmax.f32 %v1257, 0.0
        %v1556 = vmax.f32 %v1262, 0.0
        %v1557 = vmax.f32 %v1265, 0.0
        %v1558 = vmax.f32 %v1270, 0.0
        %v1559 = vmax.f32 %v1273, 0.0
        %v1560 = vmax.f32 %v1278, 0.0
        %v1561 = vmax.f32 %v1281, 0.0
        %v1562 = vmax.f32 %v1286, 0.0
        %v1563 = vmax.f32 %v1289, 0.0
        %v1564 = vmax.f32 %v1294, 0.0
        %v1565 = vmax.f32 %v1297, 0.0
        %v1566 = vmax.f32 %v1302, 0.0
        %v1567 = vmax.f32 %v1305, 0.0
        %v1568 = vmax.f32 %v1310, 0.0
        %v1569 = vmax.f32 %v1313, 0.0
        %v1570 = vmax.f32 %v1318, 0.0
        %v1571 = vmax.f32 %v1321, 0.0
        %v1572 = vmax.f32 %v1326, 0.0
        %v1573 = vmax.f32 %v1329, 0.0
        %v1574 = vmax.f32 %v1334, 0.0
        %v1575 = vmax.f32 %v1337, 0.0
        %v1576 = vmax.f32 %v1342, 0.0
        %v1577 = vmax.f32 %v1345, 0.0
        %v1578 = vmax.f32 %v1350, 0.0
        %v1579 = vmax.f32 %v1353, 0.0
        %v1580 = vmax.f32 %v1358, 0.0
        %v1581 = vmax.f32 %v1361, 0.0
        %v1582 = vmax.f32 %v1366, 0.0
        %v1583 = vmax.f32 %v1369, 0.0
        %v1584 = vmax.f32 %v1374, 0.0
        %v1585 = vmax.f32 %v1377, 0.0
        %v1586 = vmax.f32 %v1382, 0.0
        %v1587 = vmax.f32 %v1385, 0.0
        %v1588 = vmax.f32 %v1390, 0.0
        %v1589 = vmax.f32 %v1393, 0.0
        %v1590 = vmax.f32 %v1398, 0.0
        %v1591 = vmax.f32 %v1401, 0.0
        %v1592 = vmax.f32 %v1406, 0.0
        %v1593 = vmax.f32 %v1409, 0.0
        %v1594 = vmax.f32 %v1414, 0.0
        %v1595 = vmax.f32 %v1417, 0.0
        %v1596 = vmax.f32 %v1422, 0.0
        %v1597 = vmax.f32 %v1425, 0.0
        %v1598 = vmax.f32 %v1430, 0.0
        %v1599 = vmax.f32 %v1433, 0.0
        %v1600 = vmax.f32 %v1438, 0.0
        %v1601 = vmax.f32 %v1441, 0.0
        %v1602 = vmax.f32 %v1446, 0.0
        %v1603 = vmax.f32 %v1449, 0.0
        %v1604 = vmax.f32 %v1454, 0.0
        %v1605 = vmax.f32 %v1457, 0.0
        %v1606 = vmax.f32 %v1462, 0.0
        %v1607 = vmax.f32 %v1465, 0.0
        %v1608 = vmax.f32 %v1470, 0.0
        %v1609 = vmax.f32 %v1473, 0.0
        %v1610 = vmax.f32 %v1478, 0.0
        %v1611 = vmax.f32 %v1481, 0.0
        %v1612 = vpack.c.bf16 %v1485, %v1484
        %v1613 = vpack.c.bf16 %v1487, %v1486
        %v1614 = vpack.c.bf16 %v1489, %v1488
        %v1615 = vpack.c.bf16 %v1491, %v1490
        %v1616 = vpack.c.bf16 %v1493, %v1492
        %v1617 = vpack.c.bf16 %v1495, %v1494
        %v1618 = vpack.c.bf16 %v1497, %v1496
        %v1619 = vpack.c.bf16 %v1499, %v1498
        %v1620 = vpack.c.bf16 %v1501, %v1500
        %v1621 = vpack.c.bf16 %v1503, %v1502
        %v1622 = vpack.c.bf16 %v1505, %v1504
        %v1623 = vpack.c.bf16 %v1507, %v1506
        %v1624 = vpack.c.bf16 %v1509, %v1508
        %v1625 = vpack.c.bf16 %v1511, %v1510
        %v1626 = vpack.c.bf16 %v1513, %v1512
        %v1627 = vpack.c.bf16 %v1515, %v1514
        %v1628 = vpack.c.bf16 %v1517, %v1516
        %v1629 = vpack.c.bf16 %v1519, %v1518
        %v1630 = vpack.c.bf16 %v1521, %v1520
        %v1631 = vpack.c.bf16 %v1523, %v1522
        %v1632 = vpack.c.bf16 %v1525, %v1524
        %v1633 = vpack.c.bf16 %v1527, %v1526
        %v1634 = vpack.c.bf16 %v1529, %v1528
        %v1635 = vpack.c.bf16 %v1531, %v1530
        %v1636 = vpack.c.bf16 %v1533, %v1532
        %v1637 = vpack.c.bf16 %v1535, %v1534
        %v1638 = vpack.c.bf16 %v1537, %v1536
        %v1639 = vpack.c.bf16 %v1539, %v1538
        %v1640 = vpack.c.bf16 %v1541, %v1540
        %v1641 = vpack.c.bf16 %v1543, %v1542
        %v1642 = vpack.c.bf16 %v1545, %v1544
        %v1643 = vpack.c.bf16 %v1547, %v1546
        %v1644 = vpack.c.bf16 %v1549, %v1548
        %v1645 = vpack.c.bf16 %v1551, %v1550
        %v1646 = vpack.c.bf16 %v1553, %v1552
        %v1647 = vpack.c.bf16 %v1555, %v1554
        %v1648 = vpack.c.bf16 %v1557, %v1556
        %v1649 = vpack.c.bf16 %v1559, %v1558
        %v1650 = vpack.c.bf16 %v1561, %v1560
        %v1651 = vpack.c.bf16 %v1563, %v1562
        %v1652 = vpack.c.bf16 %v1565, %v1564
        %v1653 = vpack.c.bf16 %v1567, %v1566
        %v1654 = vpack.c.bf16 %v1569, %v1568
        %v1655 = vpack.c.bf16 %v1571, %v1570
        %v1656 = vpack.c.bf16 %v1573, %v1572
        %v1657 = vpack.c.bf16 %v1575, %v1574
        %v1658 = vpack.c.bf16 %v1577, %v1576
        %v1659 = vpack.c.bf16 %v1579, %v1578
        %v1660 = vpack.c.bf16 %v1581, %v1580
        %v1661 = vpack.c.bf16 %v1583, %v1582
        %v1662 = vpack.c.bf16 %v1585, %v1584
        %v1663 = vpack.c.bf16 %v1587, %v1586
        %v1664 = vpack.c.bf16 %v1589, %v1588
        %v1665 = vpack.c.bf16 %v1591, %v1590
        %v1666 = vpack.c.bf16 %v1593, %v1592
        %v1667 = vpack.c.bf16 %v1595, %v1594
        %v1668 = vpack.c.bf16 %v1597, %v1596
        %v1669 = vpack.c.bf16 %v1599, %v1598
        %v1670 = vpack.c.bf16 %v1601, %v1600
        %v1671 = vpack.c.bf16 %v1603, %v1602
        %v1672 = vpack.c.bf16 %v1605, %v1604
        %v1673 = vpack.c.bf16 %v1607, %v1606
        %v1674 = vpack.c.bf16 %v1609, %v1608
        %v1675 = vpack.c.bf16 %v1611, %v1610
        %v1676 = vld [vmem:[#allocation9] sm:$0xf]
        %v1677 = vld [vmem:[#allocation9 + $0x4] sm:$0xf]
        %v1678 = vld [vmem:[#allocation9 + $0x8] sm:$0xf]
        %v1679 = vld [vmem:[#allocation9 + $0xc] sm:$0xf]
        %v1680 = vld [vmem:[#allocation9 + $0x10] sm:$0xf]
        %v1681 = vld [vmem:[#allocation9 + $0x14] sm:$0xf]
        %v1682 = vld [vmem:[#allocation9 + $0x18] sm:$0xf]
        %v1683 = vld [vmem:[#allocation9 + $0x1c] sm:$0xf]
        %v1684 = vld [vmem:[#allocation9 + $0x20] sm:$0xf]
        %v1685 = vld [vmem:[#allocation9 + $0x24] sm:$0xf]
        %v1686 = vld [vmem:[#allocation9 + $0x28] sm:$0xf]
        %v1687 = vld [vmem:[#allocation9 + $0x2c] sm:$0xf]
        %v1688 = vld [vmem:[#allocation9 + $0x30] sm:$0xf]
        %v1689 = vld [vmem:[#allocation9 + $0x34] sm:$0xf]
        %v1690 = vld [vmem:[#allocation9 + $0x38] sm:$0xf]
        %v1691 = vld [vmem:[#allocation9 + $0x3c] sm:$0xf]
        %v1692 = vld [vmem:[%s4] sm:$0x1]
        %v1694 = vlaneseq
        %v1695 = vshrl.u32 %v1694, 7
        %v1696 = vsub.s32 0, %v1695
        %v1697 = vrot.slane %v1692, %v1696
        %v1715 = vunpack.c.l.b16 %v1676
        %v1716 = vunpack.c.l.b16 %v1677
        %v1717 = vunpack.c.l.b16 %v1678
        %v1718 = vunpack.c.l.b16 %v1679
        %v1719 = vunpack.c.l.b16 %v1680
        %v1720 = vunpack.c.l.b16 %v1681
        %v1721 = vunpack.c.l.b16 %v1682
        %v1722 = vunpack.c.l.b16 %v1683
        %v1723 = vunpack.c.l.b16 %v1684
        %v1724 = vunpack.c.l.b16 %v1685
        %v1725 = vunpack.c.l.b16 %v1686
        %v1726 = vunpack.c.l.b16 %v1687
        %v1727 = vunpack.c.l.b16 %v1688
        %v1728 = vunpack.c.l.b16 %v1689
        %v1729 = vunpack.c.l.b16 %v1690
        %v1730 = vunpack.c.l.b16 %v1691
        %v1731 = vpack.c.b16 %v1716, %v1715
        %v1732 = vpack.c.b16 %v1718, %v1717
        %v1733 = vpack.c.b16 %v1720, %v1719
        %v1734 = vpack.c.b16 %v1722, %v1721
        %v1735 = vpack.c.b16 %v1724, %v1723
        %v1736 = vpack.c.b16 %v1726, %v1725
        %v1737 = vpack.c.b16 %v1728, %v1727
        %v1738 = vpack.c.b16 %v1730, %v1729
        %1747 = vmatprep.subr.bf16.mxu0 0
        %1748 = vmatpush1.bf16.msra.mxu0 %v1731
        %1749 = vmatprep.subr.bf16.mxu0 0
        %1750 = vmatpush1.bf16.msra.mxu0 %v1732
        %1751 = vmatprep.subr.bf16.mxu0 0
        %1752 = vmatpush1.bf16.msra.mxu0 %v1733
        %1753 = vmatprep.subr.bf16.mxu0 0
        %1754 = vmatpush1.bf16.msra.mxu0 %v1734
        %1755 = vmatprep.subr.bf16.mxu0 0
        %1756 = vmatpush1.bf16.msra.mxu0 %v1735
        %1757 = vmatprep.subr.bf16.mxu0 0
        %1758 = vmatpush1.bf16.msra.mxu0 %v1736
        %1759 = vmatprep.subr.bf16.mxu0 0
        %1760 = vmatpush1.bf16.msra.mxu0 %v1737
        %1761 = vmatprep.subr.bf16.mxu0 0
        %1762 = vmatpush1.bf16.msra.mxu0 %v1738
        %1763 = vmatprep.subr.bf16.mxu0 0
        %1764 = vmatpush1.bf16.msra.mxu0 0
        %1765 = vmatprep.subr.bf16.mxu0 0
        %1766 = vmatpush1.bf16.msra.mxu0 0
        %1767 = vmatprep.subr.bf16.mxu0 0
        %1768 = vmatpush1.bf16.msra.mxu0 0
        %1769 = vmatprep.subr.bf16.mxu0 0
        %1770 = vmatpush1.bf16.msra.mxu0 0
        %1771 = vmatprep.subr.bf16.mxu0 0
        %1772 = vmatpush1.bf16.msra.mxu0 0
        %1773 = vmatprep.subr.bf16.mxu0 0
        %1774 = vmatpush1.bf16.msra.mxu0 0
        %1775 = vmatprep.subr.bf16.mxu0 0
        %1776 = vmatpush1.bf16.msra.mxu0 0
        %1777 = vmatprep.subr.bf16.mxu0 0
        %1778 = vmatpush1.bf16.msra.mxu0 0
        %1779 = vmatprep.mubr.bf16.mxu0 0
        %1780 = vmatmul.mubr.bf16.gmra.mrb[0].mxu0 %v1612
        %v1781 = vpop.f32.mrb[0].mxu0
        %v1782 = vadd.f32 %v1697, %v1781
        %v1783 = vpop.f32.mrb[0].mxu0
        %v1784 = vpop.f32.mrb[0].mxu0
        %v1785 = vadd.f32 %v1697, %v1784
        %v1786 = vpop.f32.mrb[0].mxu0
        %1787 = vmatprep.mubr.bf16.mxu0 0
        %1788 = vmatmul.mubr.bf16.gmra.mrb[0].mxu0 %v1613
        %v1789 = vpop.f32.mrb[0].mxu0
        %v1790 = vadd.f32 %v1697, %v1789
        %v1791 = vpop.f32.mrb[0].mxu0
        %v1792 = vpop.f32.mrb[0].mxu0
        %v1793 = vadd.f32 %v1697, %v1792
        %v1794 = vpop.f32.mrb[0].mxu0
        %1795 = vmatprep.mubr.bf16.mxu0 0
        %1796 = vmatmul.mubr.bf16.gmra.mrb[0].mxu0 %v1614
        %v1797 = vpop.f32.mrb[0].mxu0
        %v1798 = vadd.f32 %v1697, %v1797
        %v1799 = vpop.f32.mrb[0].mxu0
        %v1800 = vpop.f32.mrb[0].mxu0
        %v1801 = vadd.f32 %v1697, %v1800
        %v1802 = vpop.f32.mrb[0].mxu0
        %1803 = vmatprep.mubr.bf16.mxu0 0
        %1804 = vmatmul.mubr.bf16.gmra.mrb[0].mxu0 %v1615
        %v1805 = vpop.f32.mrb[0].mxu0
        %v1806 = vadd.f32 %v1697, %v1805
        %v1807 = vpop.f32.mrb[0].mxu0
        %v1808 = vpop.f32.mrb[0].mxu0
        %v1809 = vadd.f32 %v1697, %v1808
        %v1810 = vpop.f32.mrb[0].mxu0
        %1811 = vmatprep.mubr.bf16.mxu0 0
        %1812 = vmatmul.mubr.bf16.gmra.mrb[0].mxu0 %v1616
        %v1813 = vpop.f32.mrb[0].mxu0
        %v1814 = vadd.f32 %v1697, %v1813
        %v1815 = vpop.f32.mrb[0].mxu0
        %v1816 = vpop.f32.mrb[0].mxu0
        %v1817 = vadd.f32 %v1697, %v1816
        %v1818 = vpop.f32.mrb[0].mxu0
        %1819 = vmatprep.mubr.bf16.mxu0 0
        %1820 = vmatmul.mubr.bf16.gmra.mrb[0].mxu0 %v1617
        %v1821 = vpop.f32.mrb[0].mxu0
        %v1822 = vadd.f32 %v1697, %v1821
        %v1823 = vpop.f32.mrb[0].mxu0
        %v1824 = vpop.f32.mrb[0].mxu0
        %v1825 = vadd.f32 %v1697, %v1824
        %v1826 = vpop.f32.mrb[0].mxu0
        %1827 = vmatprep.mubr.bf16.mxu0 0
        %1828 = vmatmul.mubr.bf16.gmra.mrb[0].mxu0 %v1618
        %v1829 = vpop.f32.mrb[0].mxu0
        %v1830 = vadd.f32 %v1697, %v1829
        %v1831 = vpop.f32.mrb[0].mxu0
        %v1832 = vpop.f32.mrb[0].mxu0
        %v1833 = vadd.f32 %v1697, %v1832
        %v1834 = vpop.f32.mrb[0].mxu0
        %1835 = vmatprep.mubr.bf16.mxu0 0
        %1836 = vmatmul.mubr.bf16.gmra.mrb[0].mxu0 %v1619
        %v1837 = vpop.f32.mrb[0].mxu0
        %v1838 = vadd.f32 %v1697, %v1837
        %v1839 = vpop.f32.mrb[0].mxu0
        %v1840 = vpop.f32.mrb[0].mxu0
        %v1841 = vadd.f32 %v1697, %v1840
        %v1842 = vpop.f32.mrb[0].mxu0
        %1843 = vmatprep.mubr.bf16.mxu0 0
        %1844 = vmatmul.mubr.bf16.gmra.mrb[0].mxu0 %v1620
        %v1845 = vpop.f32.mrb[0].mxu0
        %v1846 = vadd.f32 %v1697, %v1845
        %v1847 = vpop.f32.mrb[0].mxu0
        %v1848 = vpop.f32.mrb[0].mxu0
        %v1849 = vadd.f32 %v1697, %v1848
        %v1850 = vpop.f32.mrb[0].mxu0
        %1851 = vmatprep.mubr.bf16.mxu0 0
        %1852 = vmatmul.mubr.bf16.gmra.mrb[0].mxu0 %v1621
        %v1853 = vpop.f32.mrb[0].mxu0
        %v1854 = vadd.f32 %v1697, %v1853
        %v1855 = vpop.f32.mrb[0].mxu0
        %v1856 = vpop.f32.mrb[0].mxu0
        %v1857 = vadd.f32 %v1697, %v1856
        %v1858 = vpop.f32.mrb[0].mxu0
        %1859 = vmatprep.mubr.bf16.mxu0 0
        %1860 = vmatmul.mubr.bf16.gmra.mrb[0].mxu0 %v1622
        %v1861 = vpop.f32.mrb[0].mxu0
        %v1862 = vadd.f32 %v1697, %v1861
        %v1863 = vpop.f32.mrb[0].mxu0
        %v1864 = vpop.f32.mrb[0].mxu0
        %v1865 = vadd.f32 %v1697, %v1864
        %v1866 = vpop.f32.mrb[0].mxu0
        %1867 = vmatprep.mubr.bf16.mxu0 0
        %1868 = vmatmul.mubr.bf16.gmra.mrb[0].mxu0 %v1623
        %v1869 = vpop.f32.mrb[0].mxu0
        %v1870 = vadd.f32 %v1697, %v1869
        %v1871 = vpop.f32.mrb[0].mxu0
        %v1872 = vpop.f32.mrb[0].mxu0
        %v1873 = vadd.f32 %v1697, %v1872
        %v1874 = vpop.f32.mrb[0].mxu0
        %1875 = vmatprep.mubr.bf16.mxu0 0
        %1876 = vmatmul.mubr.bf16.gmra.mrb[0].mxu0 %v1624
        %v1877 = vpop.f32.mrb[0].mxu0
        %v1878 = vadd.f32 %v1697, %v1877
        %v1879 = vpop.f32.mrb[0].mxu0
        %v1880 = vpop.f32.mrb[0].mxu0
        %v1881 = vadd.f32 %v1697, %v1880
        %v1882 = vpop.f32.mrb[0].mxu0
        %1883 = vmatprep.mubr.bf16.mxu0 0
        %1884 = vmatmul.mubr.bf16.gmra.mrb[0].mxu0 %v1625
        %v1885 = vpop.f32.mrb[0].mxu0
        %v1886 = vadd.f32 %v1697, %v1885
        %v1887 = vpop.f32.mrb[0].mxu0
        %v1888 = vpop.f32.mrb[0].mxu0
        %v1889 = vadd.f32 %v1697, %v1888
        %v1890 = vpop.f32.mrb[0].mxu0
        %1891 = vmatprep.mubr.bf16.mxu0 0
        %1892 = vmatmul.mubr.bf16.gmra.mrb[0].mxu0 %v1626
        %v1893 = vpop.f32.mrb[0].mxu0
        %v1894 = vadd.f32 %v1697, %v1893
        %v1895 = vpop.f32.mrb[0].mxu0
        %v1896 = vpop.f32.mrb[0].mxu0
        %v1897 = vadd.f32 %v1697, %v1896
        %v1898 = vpop.f32.mrb[0].mxu0
        %1899 = vmatprep.mubr.bf16.mxu0 0
        %1900 = vmatmul.mubr.bf16.gmra.mrb[0].mxu0 %v1627
        %v1901 = vpop.f32.mrb[0].mxu0
        %v1902 = vadd.f32 %v1697, %v1901
        %v1903 = vpop.f32.mrb[0].mxu0
        %v1904 = vpop.f32.mrb[0].mxu0
        %v1905 = vadd.f32 %v1697, %v1904
        %v1906 = vpop.f32.mrb[0].mxu0
        %1907 = vmatprep.mubr.bf16.mxu0 0
        %1908 = vmatmul.mubr.bf16.gmra.mrb[0].mxu0 %v1628
        %v1909 = vpop.f32.mrb[0].mxu0
        %v1910 = vadd.f32 %v1697, %v1909
        %v1911 = vpop.f32.mrb[0].mxu0
        %v1912 = vpop.f32.mrb[0].mxu0
        %v1913 = vadd.f32 %v1697, %v1912
        %v1914 = vpop.f32.mrb[0].mxu0
        %1915 = vmatprep.mubr.bf16.mxu0 0
        %1916 = vmatmul.mubr.bf16.gmra.mrb[0].mxu0 %v1629
        %v1917 = vpop.f32.mrb[0].mxu0
        %v1918 = vadd.f32 %v1697, %v1917
        %v1919 = vpop.f32.mrb[0].mxu0
        %v1920 = vpop.f32.mrb[0].mxu0
        %v1921 = vadd.f32 %v1697, %v1920
        %v1922 = vpop.f32.mrb[0].mxu0
        %1923 = vmatprep.mubr.bf16.mxu0 0
        %1924 = vmatmul.mubr.bf16.gmra.mrb[0].mxu0 %v1630
        %v1925 = vpop.f32.mrb[0].mxu0
        %v1926 = vadd.f32 %v1697, %v1925
        %v1927 = vpop.f32.mrb[0].mxu0
        %v1928 = vpop.f32.mrb[0].mxu0
        %v1929 = vadd.f32 %v1697, %v1928
        %v1930 = vpop.f32.mrb[0].mxu0
        %1931 = vmatprep.mubr.bf16.mxu0 0
        %1932 = vmatmul.mubr.bf16.gmra.mrb[0].mxu0 %v1631
        %v1933 = vpop.f32.mrb[0].mxu0
        %v1934 = vadd.f32 %v1697, %v1933
        %v1935 = vpop.f32.mrb[0].mxu0
        %v1936 = vpop.f32.mrb[0].mxu0
        %v1937 = vadd.f32 %v1697, %v1936
        %v1938 = vpop.f32.mrb[0].mxu0
        %1939 = vmatprep.mubr.bf16.mxu0 0
        %1940 = vmatmul.mubr.bf16.gmra.mrb[0].mxu0 %v1632
        %v1941 = vpop.f32.mrb[0].mxu0
        %v1942 = vadd.f32 %v1697, %v1941
        %v1943 = vpop.f32.mrb[0].mxu0
        %v1944 = vpop.f32.mrb[0].mxu0
        %v1945 = vadd.f32 %v1697, %v1944
        %v1946 = vpop.f32.mrb[0].mxu0
        %1947 = vmatprep.mubr.bf16.mxu0 0
        %1948 = vmatmul.mubr.bf16.gmra.mrb[0].mxu0 %v1633
        %v1949 = vpop.f32.mrb[0].mxu0
        %v1950 = vadd.f32 %v1697, %v1949
        %v1951 = vpop.f32.mrb[0].mxu0
        %v1952 = vpop.f32.mrb[0].mxu0
        %v1953 = vadd.f32 %v1697, %v1952
        %v1954 = vpop.f32.mrb[0].mxu0
        %1955 = vmatprep.mubr.bf16.mxu0 0
        %1956 = vmatmul.mubr.bf16.gmra.mrb[0].mxu0 %v1634
        %v1957 = vpop.f32.mrb[0].mxu0
        %v1958 = vadd.f32 %v1697, %v1957
        %v1959 = vpop.f32.mrb[0].mxu0
        %v1960 = vpop.f32.mrb[0].mxu0
        %v1961 = vadd.f32 %v1697, %v1960
        %v1962 = vpop.f32.mrb[0].mxu0
        %1963 = vmatprep.mubr.bf16.mxu0 0
        %1964 = vmatmul.mubr.bf16.gmra.mrb[0].mxu0 %v1635
        %v1965 = vpop.f32.mrb[0].mxu0
        %v1966 = vadd.f32 %v1697, %v1965
        %v1967 = vpop.f32.mrb[0].mxu0
        %v1968 = vpop.f32.mrb[0].mxu0
        %v1969 = vadd.f32 %v1697, %v1968
        %v1970 = vpop.f32.mrb[0].mxu0
        %1971 = vmatprep.mubr.bf16.mxu0 0
        %1972 = vmatmul.mubr.bf16.gmra.mrb[0].mxu0 %v1636
        %v1973 = vpop.f32.mrb[0].mxu0
        %v1974 = vadd.f32 %v1697, %v1973
        %v1975 = vpop.f32.mrb[0].mxu0
        %v1976 = vpop.f32.mrb[0].mxu0
        %v1977 = vadd.f32 %v1697, %v1976
        %v1978 = vpop.f32.mrb[0].mxu0
        %1979 = vmatprep.mubr.bf16.mxu0 0
        %1980 = vmatmul.mubr.bf16.gmra.mrb[0].mxu0 %v1637
        %v1981 = vpop.f32.mrb[0].mxu0
        %v1982 = vadd.f32 %v1697, %v1981
        %v1983 = vpop.f32.mrb[0].mxu0
        %v1984 = vpop.f32.mrb[0].mxu0
        %v1985 = vadd.f32 %v1697, %v1984
        %v1986 = vpop.f32.mrb[0].mxu0
        %1987 = vmatprep.mubr.bf16.mxu0 0
        %1988 = vmatmul.mubr.bf16.gmra.mrb[0].mxu0 %v1638
        %v1989 = vpop.f32.mrb[0].mxu0
        %v1990 = vadd.f32 %v1697, %v1989
        %v1991 = vpop.f32.mrb[0].mxu0
        %v1992 = vpop.f32.mrb[0].mxu0
        %v1993 = vadd.f32 %v1697, %v1992
        %v1994 = vpop.f32.mrb[0].mxu0
        %1995 = vmatprep.mubr.bf16.mxu0 0
        %1996 = vmatmul.mubr.bf16.gmra.mrb[0].mxu0 %v1639
        %v1997 = vpop.f32.mrb[0].mxu0
        %v1998 = vadd.f32 %v1697, %v1997
        %v1999 = vpop.f32.mrb[0].mxu0
        %v2000 = vpop.f32.mrb[0].mxu0
        %v2001 = vadd.f32 %v1697, %v2000
        %v2002 = vpop.f32.mrb[0].mxu0
        %2003 = vmatprep.mubr.bf16.mxu0 0
        %2004 = vmatmul.mubr.bf16.gmra.mrb[0].mxu0 %v1640
        %v2005 = vpop.f32.mrb[0].mxu0
        %v2006 = vadd.f32 %v1697, %v2005
        %v2007 = vpop.f32.mrb[0].mxu0
        %v2008 = vpop.f32.mrb[0].mxu0
        %v2009 = vadd.f32 %v1697, %v2008
        %v2010 = vpop.f32.mrb[0].mxu0
        %2011 = vmatprep.mubr.bf16.mxu0 0
        %2012 = vmatmul.mubr.bf16.gmra.mrb[0].mxu0 %v1641
        %v2013 = vpop.f32.mrb[0].mxu0
        %v2014 = vadd.f32 %v1697, %v2013
        %v2015 = vpop.f32.mrb[0].mxu0
        %v2016 = vpop.f32.mrb[0].mxu0
        %v2017 = vadd.f32 %v1697, %v2016
        %v2018 = vpop.f32.mrb[0].mxu0
        %2019 = vmatprep.mubr.bf16.mxu0 0
        %2020 = vmatmul.mubr.bf16.gmra.mrb[0].mxu0 %v1642
        %v2021 = vpop.f32.mrb[0].mxu0
        %v2022 = vadd.f32 %v1697, %v2021
        %v2023 = vpop.f32.mrb[0].mxu0
        %v2024 = vpop.f32.mrb[0].mxu0
        %v2025 = vadd.f32 %v1697, %v2024
        %v2026 = vpop.f32.mrb[0].mxu0
        %2027 = vmatprep.mubr.bf16.mxu0 0
        %2028 = vmatmul.mubr.bf16.gmra.mrb[0].mxu0 %v1643
        %v2029 = vpop.f32.mrb[0].mxu0
        %v2030 = vadd.f32 %v1697, %v2029
        %v2031 = vpop.f32.mrb[0].mxu0
        %v2032 = vpop.f32.mrb[0].mxu0
        %v2033 = vadd.f32 %v1697, %v2032
        %v2034 = vpop.f32.mrb[0].mxu0
        %2035 = vmatprep.mubr.bf16.mxu0 0
        %2036 = vmatmul.mubr.bf16.gmra.mrb[0].mxu0 %v1644
        %v2037 = vpop.f32.mrb[0].mxu0
        %v2038 = vadd.f32 %v1697, %v2037
        %v2039 = vpop.f32.mrb[0].mxu0
        %v2040 = vpop.f32.mrb[0].mxu0
        %v2041 = vadd.f32 %v1697, %v2040
        %v2042 = vpop.f32.mrb[0].mxu0
        %2043 = vmatprep.mubr.bf16.mxu0 0
        %2044 = vmatmul.mubr.bf16.gmra.mrb[0].mxu0 %v1645
        %v2045 = vpop.f32.mrb[0].mxu0
        %v2046 = vadd.f32 %v1697, %v2045
        %v2047 = vpop.f32.mrb[0].mxu0
        %v2048 = vpop.f32.mrb[0].mxu0
        %v2049 = vadd.f32 %v1697, %v2048
        %v2050 = vpop.f32.mrb[0].mxu0
        %2051 = vmatprep.mubr.bf16.mxu0 0
        %2052 = vmatmul.mubr.bf16.gmra.mrb[0].mxu0 %v1646
        %v2053 = vpop.f32.mrb[0].mxu0
        %v2054 = vadd.f32 %v1697, %v2053
        %v2055 = vpop.f32.mrb[0].mxu0
        %v2056 = vpop.f32.mrb[0].mxu0
        %v2057 = vadd.f32 %v1697, %v2056
        %v2058 = vpop.f32.mrb[0].mxu0
        %2059 = vmatprep.mubr.bf16.mxu0 0
        %2060 = vmatmul.mubr.bf16.gmra.mrb[0].mxu0 %v1647
        %v2061 = vpop.f32.mrb[0].mxu0
        %v2062 = vadd.f32 %v1697, %v2061
        %v2063 = vpop.f32.mrb[0].mxu0
        %v2064 = vpop.f32.mrb[0].mxu0
        %v2065 = vadd.f32 %v1697, %v2064
        %v2066 = vpop.f32.mrb[0].mxu0
        %2067 = vmatprep.mubr.bf16.mxu0 0
        %2068 = vmatmul.mubr.bf16.gmra.mrb[0].mxu0 %v1648
        %v2069 = vpop.f32.mrb[0].mxu0
        %v2070 = vadd.f32 %v1697, %v2069
        %v2071 = vpop.f32.mrb[0].mxu0
        %v2072 = vpop.f32.mrb[0].mxu0
        %v2073 = vadd.f32 %v1697, %v2072
        %v2074 = vpop.f32.mrb[0].mxu0
        %2075 = vmatprep.mubr.bf16.mxu0 0
        %2076 = vmatmul.mubr.bf16.gmra.mrb[0].mxu0 %v1649
        %v2077 = vpop.f32.mrb[0].mxu0
        %v2078 = vadd.f32 %v1697, %v2077
        %v2079 = vpop.f32.mrb[0].mxu0
        %v2080 = vpop.f32.mrb[0].mxu0
        %v2081 = vadd.f32 %v1697, %v2080
        %v2082 = vpop.f32.mrb[0].mxu0
        %2083 = vmatprep.mubr.bf16.mxu0 0
        %2084 = vmatmul.mubr.bf16.gmra.mrb[0].mxu0 %v1650
        %v2085 = vpop.f32.mrb[0].mxu0
        %v2086 = vadd.f32 %v1697, %v2085
        %v2087 = vpop.f32.mrb[0].mxu0
        %v2088 = vpop.f32.mrb[0].mxu0
        %v2089 = vadd.f32 %v1697, %v2088
        %v2090 = vpop.f32.mrb[0].mxu0
        %2091 = vmatprep.mubr.bf16.mxu0 0
        %2092 = vmatmul.mubr.bf16.gmra.mrb[0].mxu0 %v1651
        %v2093 = vpop.f32.mrb[0].mxu0
        %v2094 = vadd.f32 %v1697, %v2093
        %v2095 = vpop.f32.mrb[0].mxu0
        %v2096 = vpop.f32.mrb[0].mxu0
        %v2097 = vadd.f32 %v1697, %v2096
        %v2098 = vpop.f32.mrb[0].mxu0
        %2099 = vmatprep.mubr.bf16.mxu0 0
        %2100 = vmatmul.mubr.bf16.gmra.mrb[0].mxu0 %v1652
        %v2101 = vpop.f32.mrb[0].mxu0
        %v2102 = vadd.f32 %v1697, %v2101
        %v2103 = vpop.f32.mrb[0].mxu0
        %v2104 = vpop.f32.mrb[0].mxu0
        %v2105 = vadd.f32 %v1697, %v2104
        %v2106 = vpop.f32.mrb[0].mxu0
        %2107 = vmatprep.mubr.bf16.mxu0 0
        %2108 = vmatmul.mubr.bf16.gmra.mrb[0].mxu0 %v1653
        %v2109 = vpop.f32.mrb[0].mxu0
        %v2110 = vadd.f32 %v1697, %v2109
        %v2111 = vpop.f32.mrb[0].mxu0
        %v2112 = vpop.f32.mrb[0].mxu0
        %v2113 = vadd.f32 %v1697, %v2112
        %v2114 = vpop.f32.mrb[0].mxu0
        %2115 = vmatprep.mubr.bf16.mxu0 0
        %2116 = vmatmul.mubr.bf16.gmra.mrb[0].mxu0 %v1654
        %v2117 = vpop.f32.mrb[0].mxu0
        %v2118 = vadd.f32 %v1697, %v2117
        %v2119 = vpop.f32.mrb[0].mxu0
        %v2120 = vpop.f32.mrb[0].mxu0
        %v2121 = vadd.f32 %v1697, %v2120
        %v2122 = vpop.f32.mrb[0].mxu0
        %2123 = vmatprep.mubr.bf16.mxu0 0
        %2124 = vmatmul.mubr.bf16.gmra.mrb[0].mxu0 %v1655
        %v2125 = vpop.f32.mrb[0].mxu0
        %v2126 = vadd.f32 %v1697, %v2125
        %v2127 = vpop.f32.mrb[0].mxu0
        %v2128 = vpop.f32.mrb[0].mxu0
        %v2129 = vadd.f32 %v1697, %v2128
        %v2130 = vpop.f32.mrb[0].mxu0
        %2131 = vmatprep.mubr.bf16.mxu0 0
        %2132 = vmatmul.mubr.bf16.gmra.mrb[0].mxu0 %v1656
        %v2133 = vpop.f32.mrb[0].mxu0
        %v2134 = vadd.f32 %v1697, %v2133
        %v2135 = vpop.f32.mrb[0].mxu0
        %v2136 = vpop.f32.mrb[0].mxu0
        %v2137 = vadd.f32 %v1697, %v2136
        %v2138 = vpop.f32.mrb[0].mxu0
        %2139 = vmatprep.mubr.bf16.mxu0 0
        %2140 = vmatmul.mubr.bf16.gmra.mrb[0].mxu0 %v1657
        %v2141 = vpop.f32.mrb[0].mxu0
        %v2142 = vadd.f32 %v1697, %v2141
        %v2143 = vpop.f32.mrb[0].mxu0
        %v2144 = vpop.f32.mrb[0].mxu0
        %v2145 = vadd.f32 %v1697, %v2144
        %v2146 = vpop.f32.mrb[0].mxu0
        %2147 = vmatprep.mubr.bf16.mxu0 0
        %2148 = vmatmul.mubr.bf16.gmra.mrb[0].mxu0 %v1658
        %v2149 = vpop.f32.mrb[0].mxu0
        %v2150 = vadd.f32 %v1697, %v2149
        %v2151 = vpop.f32.mrb[0].mxu0
        %v2152 = vpop.f32.mrb[0].mxu0
        %v2153 = vadd.f32 %v1697, %v2152
        %v2154 = vpop.f32.mrb[0].mxu0
        %2155 = vmatprep.mubr.bf16.mxu0 0
        %2156 = vmatmul.mubr.bf16.gmra.mrb[0].mxu0 %v1659
        %v2157 = vpop.f32.mrb[0].mxu0
        %v2158 = vadd.f32 %v1697, %v2157
        %v2159 = vpop.f32.mrb[0].mxu0
        %v2160 = vpop.f32.mrb[0].mxu0
        %v2161 = vadd.f32 %v1697, %v2160
        %v2162 = vpop.f32.mrb[0].mxu0
        %2163 = vmatprep.mubr.bf16.mxu0 0
        %2164 = vmatmul.mubr.bf16.gmra.mrb[0].mxu0 %v1660
        %v2165 = vpop.f32.mrb[0].mxu0
        %v2166 = vadd.f32 %v1697, %v2165
        %v2167 = vpop.f32.mrb[0].mxu0
        %v2168 = vpop.f32.mrb[0].mxu0
        %v2169 = vadd.f32 %v1697, %v2168
        %v2170 = vpop.f32.mrb[0].mxu0
        %2171 = vmatprep.mubr.bf16.mxu0 0
        %2172 = vmatmul.mubr.bf16.gmra.mrb[0].mxu0 %v1661
        %v2173 = vpop.f32.mrb[0].mxu0
        %v2174 = vadd.f32 %v1697, %v2173
        %v2175 = vpop.f32.mrb[0].mxu0
        %v2176 = vpop.f32.mrb[0].mxu0
        %v2177 = vadd.f32 %v1697, %v2176
        %v2178 = vpop.f32.mrb[0].mxu0
        %2179 = vmatprep.mubr.bf16.mxu0 0
        %2180 = vmatmul.mubr.bf16.gmra.mrb[0].mxu0 %v1662
        %v2181 = vpop.f32.mrb[0].mxu0
        %v2182 = vadd.f32 %v1697, %v2181
        %v2183 = vpop.f32.mrb[0].mxu0
        %v2184 = vpop.f32.mrb[0].mxu0
        %v2185 = vadd.f32 %v1697, %v2184
        %v2186 = vpop.f32.mrb[0].mxu0
        %2187 = vmatprep.mubr.bf16.mxu0 0
        %2188 = vmatmul.mubr.bf16.gmra.mrb[0].mxu0 %v1663
        %v2189 = vpop.f32.mrb[0].mxu0
        %v2190 = vadd.f32 %v1697, %v2189
        %v2191 = vpop.f32.mrb[0].mxu0
        %v2192 = vpop.f32.mrb[0].mxu0
        %v2193 = vadd.f32 %v1697, %v2192
        %v2194 = vpop.f32.mrb[0].mxu0
        %2195 = vmatprep.mubr.bf16.mxu0 0
        %2196 = vmatmul.mubr.bf16.gmra.mrb[0].mxu0 %v1664
        %v2197 = vpop.f32.mrb[0].mxu0
        %v2198 = vadd.f32 %v1697, %v2197
        %v2199 = vpop.f32.mrb[0].mxu0
        %v2200 = vpop.f32.mrb[0].mxu0
        %v2201 = vadd.f32 %v1697, %v2200
        %v2202 = vpop.f32.mrb[0].mxu0
        %2203 = vmatprep.mubr.bf16.mxu0 0
        %2204 = vmatmul.mubr.bf16.gmra.mrb[0].mxu0 %v1665
        %v2205 = vpop.f32.mrb[0].mxu0
        %v2206 = vadd.f32 %v1697, %v2205
        %v2207 = vpop.f32.mrb[0].mxu0
        %v2208 = vpop.f32.mrb[0].mxu0
        %v2209 = vadd.f32 %v1697, %v2208
        %v2210 = vpop.f32.mrb[0].mxu0
        %2211 = vmatprep.mubr.bf16.mxu0 0
        %2212 = vmatmul.mubr.bf16.gmra.mrb[0].mxu0 %v1666
        %v2213 = vpop.f32.mrb[0].mxu0
        %v2214 = vadd.f32 %v1697, %v2213
        %v2215 = vpop.f32.mrb[0].mxu0
        %v2216 = vpop.f32.mrb[0].mxu0
        %v2217 = vadd.f32 %v1697, %v2216
        %v2218 = vpop.f32.mrb[0].mxu0
        %2219 = vmatprep.mubr.bf16.mxu0 0
        %2220 = vmatmul.mubr.bf16.gmra.mrb[0].mxu0 %v1667
        %v2221 = vpop.f32.mrb[0].mxu0
        %v2222 = vadd.f32 %v1697, %v2221
        %v2223 = vpop.f32.mrb[0].mxu0
        %v2224 = vpop.f32.mrb[0].mxu0
        %v2225 = vadd.f32 %v1697, %v2224
        %v2226 = vpop.f32.mrb[0].mxu0
        %2227 = vmatprep.mubr.bf16.mxu0 0
        %2228 = vmatmul.mubr.bf16.gmra.mrb[0].mxu0 %v1668
        %v2229 = vpop.f32.mrb[0].mxu0
        %v2230 = vadd.f32 %v1697, %v2229
        %v2231 = vpop.f32.mrb[0].mxu0
        %v2232 = vpop.f32.mrb[0].mxu0
        %v2233 = vadd.f32 %v1697, %v2232
        %v2234 = vpop.f32.mrb[0].mxu0
        %2235 = vmatprep.mubr.bf16.mxu0 0
        %2236 = vmatmul.mubr.bf16.gmra.mrb[0].mxu0 %v1669
        %v2237 = vpop.f32.mrb[0].mxu0
        %v2238 = vadd.f32 %v1697, %v2237
        %v2239 = vpop.f32.mrb[0].mxu0
        %v2240 = vpop.f32.mrb[0].mxu0
        %v2241 = vadd.f32 %v1697, %v2240
        %v2242 = vpop.f32.mrb[0].mxu0
        %2243 = vmatprep.mubr.bf16.mxu0 0
        %2244 = vmatmul.mubr.bf16.gmra.mrb[0].mxu0 %v1670
        %v2245 = vpop.f32.mrb[0].mxu0
        %v2246 = vadd.f32 %v1697, %v2245
        %v2247 = vpop.f32.mrb[0].mxu0
        %v2248 = vpop.f32.mrb[0].mxu0
        %v2249 = vadd.f32 %v1697, %v2248
        %v2250 = vpop.f32.mrb[0].mxu0
        %2251 = vmatprep.mubr.bf16.mxu0 0
        %2252 = vmatmul.mubr.bf16.gmra.mrb[0].mxu0 %v1671
        %v2253 = vpop.f32.mrb[0].mxu0
        %v2254 = vadd.f32 %v1697, %v2253
        %v2255 = vpop.f32.mrb[0].mxu0
        %v2256 = vpop.f32.mrb[0].mxu0
        %v2257 = vadd.f32 %v1697, %v2256
        %v2258 = vpop.f32.mrb[0].mxu0
        %2259 = vmatprep.mubr.bf16.mxu0 0
        %2260 = vmatmul.mubr.bf16.gmra.mrb[0].mxu0 %v1672
        %v2261 = vpop.f32.mrb[0].mxu0
        %v2262 = vadd.f32 %v1697, %v2261
        %v2263 = vpop.f32.mrb[0].mxu0
        %v2264 = vpop.f32.mrb[0].mxu0
        %v2265 = vadd.f32 %v1697, %v2264
        %v2266 = vpop.f32.mrb[0].mxu0
        %2267 = vmatprep.mubr.bf16.mxu0 0
        %2268 = vmatmul.mubr.bf16.gmra.mrb[0].mxu0 %v1673
        %v2269 = vpop.f32.mrb[0].mxu0
        %v2270 = vadd.f32 %v1697, %v2269
        %v2271 = vpop.f32.mrb[0].mxu0
        %v2272 = vpop.f32.mrb[0].mxu0
        %v2273 = vadd.f32 %v1697, %v2272
        %v2274 = vpop.f32.mrb[0].mxu0
        %2275 = vmatprep.mubr.bf16.mxu0 0
        %2276 = vmatmul.mubr.bf16.gmra.mrb[0].mxu0 %v1674
        %v2277 = vpop.f32.mrb[0].mxu0
        %v2278 = vadd.f32 %v1697, %v2277
        %v2279 = vpop.f32.mrb[0].mxu0
        %v2280 = vpop.f32.mrb[0].mxu0
        %v2281 = vadd.f32 %v1697, %v2280
        %v2282 = vpop.f32.mrb[0].mxu0
        %2283 = vmatprep.mubr.bf16.mxu0 0
        %2284 = vmatmul.mubr.bf16.gmra.mrb[0].mxu0 %v1675
        %v2285 = vpop.f32.mrb[0].mxu0
        %v2286 = vadd.f32 %v1697, %v2285
        %v2287 = vpop.f32.mrb[0].mxu0
        %v2288 = vpop.f32.mrb[0].mxu0
        %v2289 = vadd.f32 %v1697, %v2288
        %v2290 = vpop.f32.mrb[0].mxu0
        %2291 = vdwg.mxu0
        %v2292 = vmax.f32 %v1782, 0.0
        %v2293 = vmax.f32 %v1785, 0.0
        %v2294 = vmax.f32 %v1790, 0.0
        %v2295 = vmax.f32 %v1793, 0.0
        %v2296 = vmax.f32 %v1798, 0.0
        %v2297 = vmax.f32 %v1801, 0.0
        %v2298 = vmax.f32 %v1806, 0.0
        %v2299 = vmax.f32 %v1809, 0.0
        %v2300 = vmax.f32 %v1814, 0.0
        %v2301 = vmax.f32 %v1817, 0.0
        %v2302 = vmax.f32 %v1822, 0.0
        %v2303 = vmax.f32 %v1825, 0.0
        %v2304 = vmax.f32 %v1830, 0.0
        %v2305 = vmax.f32 %v1833, 0.0
        %v2306 = vmax.f32 %v1838, 0.0
        %v2307 = vmax.f32 %v1841, 0.0
        %v2308 = vmax.f32 %v1846, 0.0
        %v2309 = vmax.f32 %v1849, 0.0
        %v2310 = vmax.f32 %v1854, 0.0
        %v2311 = vmax.f32 %v1857, 0.0
        %v2312 = vmax.f32 %v1862, 0.0
        %v2313 = vmax.f32 %v1865, 0.0
        %v2314 = vmax.f32 %v1870, 0.0
        %v2315 = vmax.f32 %v1873, 0.0
        %v2316 = vmax.f32 %v1878, 0.0
        %v2317 = vmax.f32 %v1881, 0.0
        %v2318 = vmax.f32 %v1886, 0.0
        %v2319 = vmax.f32 %v1889, 0.0
        %v2320 = vmax.f32 %v1894, 0.0
        %v2321 = vmax.f32 %v1897, 0.0
        %v2322 = vmax.f32 %v1902, 0.0
        %v2323 = vmax.f32 %v1905, 0.0
        %v2324 = vmax.f32 %v1910, 0.0
        %v2325 = vmax.f32 %v1913, 0.0
        %v2326 = vmax.f32 %v1918, 0.0
        %v2327 = vmax.f32 %v1921, 0.0
        %v2328 = vmax.f32 %v1926, 0.0
        %v2329 = vmax.f32 %v1929, 0.0
        %v2330 = vmax.f32 %v1934, 0.0
        %v2331 = vmax.f32 %v1937, 0.0
        %v2332 = vmax.f32 %v1942, 0.0
        %v2333 = vmax.f32 %v1945, 0.0
        %v2334 = vmax.f32 %v1950, 0.0
        %v2335 = vmax.f32 %v1953, 0.0
        %v2336 = vmax.f32 %v1958, 0.0
        %v2337 = vmax.f32 %v1961, 0.0
        %v2338 = vmax.f32 %v1966, 0.0
        %v2339 = vmax.f32 %v1969, 0.0
        %v2340 = vmax.f32 %v1974, 0.0
        %v2341 = vmax.f32 %v1977, 0.0
        %v2342 = vmax.f32 %v1982, 0.0
        %v2343 = vmax.f32 %v1985, 0.0
        %v2344 = vmax.f32 %v1990, 0.0
        %v2345 = vmax.f32 %v1993, 0.0
        %v2346 = vmax.f32 %v1998, 0.0
        %v2347 = vmax.f32 %v2001, 0.0
        %v2348 = vmax.f32 %v2006, 0.0
        %v2349 = vmax.f32 %v2009, 0.0
        %v2350 = vmax.f32 %v2014, 0.0
        %v2351 = vmax.f32 %v2017, 0.0
        %v2352 = vmax.f32 %v2022, 0.0
        %v2353 = vmax.f32 %v2025, 0.0
        %v2354 = vmax.f32 %v2030, 0.0
        %v2355 = vmax.f32 %v2033, 0.0
        %v2356 = vmax.f32 %v2038, 0.0
        %v2357 = vmax.f32 %v2041, 0.0
        %v2358 = vmax.f32 %v2046, 0.0
        %v2359 = vmax.f32 %v2049, 0.0
        %v2360 = vmax.f32 %v2054, 0.0
        %v2361 = vmax.f32 %v2057, 0.0
        %v2362 = vmax.f32 %v2062, 0.0
        %v2363 = vmax.f32 %v2065, 0.0
        %v2364 = vmax.f32 %v2070, 0.0
        %v2365 = vmax.f32 %v2073, 0.0
        %v2366 = vmax.f32 %v2078, 0.0
        %v2367 = vmax.f32 %v2081, 0.0
        %v2368 = vmax.f32 %v2086, 0.0
        %v2369 = vmax.f32 %v2089, 0.0
        %v2370 = vmax.f32 %v2094, 0.0
        %v2371 = vmax.f32 %v2097, 0.0
        %v2372 = vmax.f32 %v2102, 0.0
        %v2373 = vmax.f32 %v2105, 0.0
        %v2374 = vmax.f32 %v2110, 0.0
        %v2375 = vmax.f32 %v2113, 0.0
        %v2376 = vmax.f32 %v2118, 0.0
        %v2377 = vmax.f32 %v2121, 0.0
        %v2378 = vmax.f32 %v2126, 0.0
        %v2379 = vmax.f32 %v2129, 0.0
        %v2380 = vmax.f32 %v2134, 0.0
        %v2381 = vmax.f32 %v2137, 0.0
        %v2382 = vmax.f32 %v2142, 0.0
        %v2383 = vmax.f32 %v2145, 0.0
        %v2384 = vmax.f32 %v2150, 0.0
        %v2385 = vmax.f32 %v2153, 0.0
        %v2386 = vmax.f32 %v2158, 0.0
        %v2387 = vmax.f32 %v2161, 0.0
        %v2388 = vmax.f32 %v2166, 0.0
        %v2389 = vmax.f32 %v2169, 0.0
        %v2390 = vmax.f32 %v2174, 0.0
        %v2391 = vmax.f32 %v2177, 0.0
        %v2392 = vmax.f32 %v2182, 0.0
        %v2393 = vmax.f32 %v2185, 0.0
        %v2394 = vmax.f32 %v2190, 0.0
        %v2395 = vmax.f32 %v2193, 0.0
        %v2396 = vmax.f32 %v2198, 0.0
        %v2397 = vmax.f32 %v2201, 0.0
        %v2398 = vmax.f32 %v2206, 0.0
        %v2399 = vmax.f32 %v2209, 0.0
        %v2400 = vmax.f32 %v2214, 0.0
        %v2401 = vmax.f32 %v2217, 0.0
        %v2402 = vmax.f32 %v2222, 0.0
        %v2403 = vmax.f32 %v2225, 0.0
        %v2404 = vmax.f32 %v2230, 0.0
        %v2405 = vmax.f32 %v2233, 0.0
        %v2406 = vmax.f32 %v2238, 0.0
        %v2407 = vmax.f32 %v2241, 0.0
        %v2408 = vmax.f32 %v2246, 0.0
        %v2409 = vmax.f32 %v2249, 0.0
        %v2410 = vmax.f32 %v2254, 0.0
        %v2411 = vmax.f32 %v2257, 0.0
        %v2412 = vmax.f32 %v2262, 0.0
        %v2413 = vmax.f32 %v2265, 0.0
        %v2414 = vmax.f32 %v2270, 0.0
        %v2415 = vmax.f32 %v2273, 0.0
        %v2416 = vmax.f32 %v2278, 0.0
        %v2417 = vmax.f32 %v2281, 0.0
        %v2418 = vmax.f32 %v2286, 0.0
        %v2419 = vmax.f32 %v2289, 0.0
        %s2420 = smul.u32 %s32, 2
        %s2421 = sadd.s32 %s2420, %s33
        %s2422 = sadd.s32 %s2421, 1
        %s2423 = smul.u32 %s2422, 1024
        %p2424 = scmp.le.s32.totalorder %s2423, 2500
        // Predicated region
        $region57: #{tpu_custom_call.1} parent=39 // pred_check
          %p2425 = pneg %p2424
        $region58: #{tpu_custom_call.1} parent=39 // pred_check_branch
          %2427 = sbr.rel (%p2425) target = $region60
        $region59: #{tpu_custom_call.1} parent=39 // pred_region
          %v2428 = vld [vmem:[#allocation2] sm:$0xff]
          %v2429 = vadd.f32 %v2292, %v2293
          %v2430 = vadd.f32 %v2429, %v2294
          %v2431 = vadd.f32 %v2430, %v2295
          %v2432 = vadd.f32 %v2431, %v2296
          %v2433 = vadd.f32 %v2432, %v2297
          %v2434 = vadd.f32 %v2433, %v2298
          %v2435 = vadd.f32 %v2434, %v2299
          %v2436 = vadd.f32 %v2435, %v2300
          %v2437 = vadd.f32 %v2436, %v2301
          %v2438 = vadd.f32 %v2437, %v2302
          %v2439 = vadd.f32 %v2438, %v2303
          %v2440 = vadd.f32 %v2439, %v2304
          %v2441 = vadd.f32 %v2440, %v2305
          %v2442 = vadd.f32 %v2441, %v2306
          %v2443 = vadd.f32 %v2442, %v2307
          %v2444 = vadd.f32 %v2443, %v2308
          %v2445 = vadd.f32 %v2444, %v2309
          %v2446 = vadd.f32 %v2445, %v2310
          %v2447 = vadd.f32 %v2446, %v2311
          %v2448 = vadd.f32 %v2447, %v2312
          %v2449 = vadd.f32 %v2448, %v2313
          %v2450 = vadd.f32 %v2449, %v2314
          %v2451 = vadd.f32 %v2450, %v2315
          %v2452 = vadd.f32 %v2451, %v2316
          %v2453 = vadd.f32 %v2452, %v2317
          %v2454 = vadd.f32 %v2453, %v2318
          %v2455 = vadd.f32 %v2454, %v2319
          %v2456 = vadd.f32 %v2455, %v2320
          %v2457 = vadd.f32 %v2456, %v2321
          %v2458 = vadd.f32 %v2457, %v2322
          %v2459 = vadd.f32 %v2458, %v2323
          %v2460 = vadd.f32 %v2459, %v2324
          %v2461 = vadd.f32 %v2460, %v2325
          %v2462 = vadd.f32 %v2461, %v2326
          %v2463 = vadd.f32 %v2462, %v2327
          %v2464 = vadd.f32 %v2463, %v2328
          %v2465 = vadd.f32 %v2464, %v2329
          %v2466 = vadd.f32 %v2465, %v2330
          %v2467 = vadd.f32 %v2466, %v2331
          %v2468 = vadd.f32 %v2467, %v2332
          %v2469 = vadd.f32 %v2468, %v2333
          %v2470 = vadd.f32 %v2469, %v2334
          %v2471 = vadd.f32 %v2470, %v2335
          %v2472 = vadd.f32 %v2471, %v2336
          %v2473 = vadd.f32 %v2472, %v2337
          %v2474 = vadd.f32 %v2473, %v2338
          %v2475 = vadd.f32 %v2474, %v2339
          %v2476 = vadd.f32 %v2475, %v2340
          %v2477 = vadd.f32 %v2476, %v2341
          %v2478 = vadd.f32 %v2477, %v2342
          %v2479 = vadd.f32 %v2478, %v2343
          %v2480 = vadd.f32 %v2479, %v2344
          %v2481 = vadd.f32 %v2480, %v2345
          %v2482 = vadd.f32 %v2481, %v2346
          %v2483 = vadd.f32 %v2482, %v2347
          %v2484 = vadd.f32 %v2483, %v2348
          %v2485 = vadd.f32 %v2484, %v2349
          %v2486 = vadd.f32 %v2485, %v2350
          %v2487 = vadd.f32 %v2486, %v2351
          %v2488 = vadd.f32 %v2487, %v2352
          %v2489 = vadd.f32 %v2488, %v2353
          %v2490 = vadd.f32 %v2489, %v2354
          %v2491 = vadd.f32 %v2490, %v2355
          %v2492 = vadd.f32 %v2491, %v2356
          %v2493 = vadd.f32 %v2492, %v2357
          %v2494 = vadd.f32 %v2493, %v2358
          %v2495 = vadd.f32 %v2494, %v2359
          %v2496 = vadd.f32 %v2495, %v2360
          %v2497 = vadd.f32 %v2496, %v2361
          %v2498 = vadd.f32 %v2497, %v2362
          %v2499 = vadd.f32 %v2498, %v2363
          %v2500 = vadd.f32 %v2499, %v2364
          %v2501 = vadd.f32 %v2500, %v2365
          %v2502 = vadd.f32 %v2501, %v2366
          %v2503 = vadd.f32 %v2502, %v2367
          %v2504 = vadd.f32 %v2503, %v2368
          %v2505 = vadd.f32 %v2504, %v2369
          %v2506 = vadd.f32 %v2505, %v2370
          %v2507 = vadd.f32 %v2506, %v2371
          %v2508 = vadd.f32 %v2507, %v2372
          %v2509 = vadd.f32 %v2508, %v2373
          %v2510 = vadd.f32 %v2509, %v2374
          %v2511 = vadd.f32 %v2510, %v2375
          %v2512 = vadd.f32 %v2511, %v2376
          %v2513 = vadd.f32 %v2512, %v2377
          %v2514 = vadd.f32 %v2513, %v2378
          %v2515 = vadd.f32 %v2514, %v2379
          %v2516 = vadd.f32 %v2515, %v2380
          %v2517 = vadd.f32 %v2516, %v2381
          %v2518 = vadd.f32 %v2517, %v2382
          %v2519 = vadd.f32 %v2518, %v2383
          %v2520 = vadd.f32 %v2519, %v2384
          %v2521 = vadd.f32 %v2520, %v2385
          %v2522 = vadd.f32 %v2521, %v2386
          %v2523 = vadd.f32 %v2522, %v2387
          %v2524 = vadd.f32 %v2523, %v2388
          %v2525 = vadd.f32 %v2524, %v2389
          %v2526 = vadd.f32 %v2525, %v2390
          %v2527 = vadd.f32 %v2526, %v2391
          %v2528 = vadd.f32 %v2527, %v2392
          %v2529 = vadd.f32 %v2528, %v2393
          %v2530 = vadd.f32 %v2529, %v2394
          %v2531 = vadd.f32 %v2530, %v2395
          %v2532 = vadd.f32 %v2531, %v2396
          %v2533 = vadd.f32 %v2532, %v2397
          %v2534 = vadd.f32 %v2533, %v2398
          %v2535 = vadd.f32 %v2534, %v2399
          %v2536 = vadd.f32 %v2535, %v2400
          %v2537 = vadd.f32 %v2536, %v2401
          %v2538 = vadd.f32 %v2537, %v2402
          %v2539 = vadd.f32 %v2538, %v2403
          %v2540 = vadd.f32 %v2539, %v2404
          %v2541 = vadd.f32 %v2540, %v2405
          %v2542 = vadd.f32 %v2541, %v2406
          %v2543 = vadd.f32 %v2542, %v2407
          %v2544 = vadd.f32 %v2543, %v2408
          %v2545 = vadd.f32 %v2544, %v2409
          %v2546 = vadd.f32 %v2545, %v2410
          %v2547 = vadd.f32 %v2546, %v2411
          %v2548 = vadd.f32 %v2547, %v2412
          %v2549 = vadd.f32 %v2548, %v2413
          %v2550 = vadd.f32 %v2549, %v2414
          %v2551 = vadd.f32 %v2550, %v2415
          %v2552 = vadd.f32 %v2551, %v2416
          %v2553 = vadd.f32 %v2552, %v2417
          %v2554 = vadd.f32 %v2553, %v2418
          %v2555 = vadd.f32 %v2554, %v2419
          %v2556 = vadd.f32 %v2428, %v2555
          %2557 = vst [vmem:[#allocation2] sm:$0xff] %v2556
          %v2558 = vld [vmem:[#allocation3] sm:$0xff]
          %v2559 = vmax.f32 %v2292, %v2296
          %v2560 = vmax.f32 %v2293, %v2297
          %v2561 = vmax.f32 %v2294, %v2298
          %v2562 = vmax.f32 %v2295, %v2299
          %v2563 = vmax.f32 %v2559, %v2300
          %v2564 = vmax.f32 %v2560, %v2301
          %v2565 = vmax.f32 %v2561, %v2302
          %v2566 = vmax.f32 %v2562, %v2303
          %v2567 = vmax.f32 %v2563, %v2304
          %v2568 = vmax.f32 %v2564, %v2305
          %v2569 = vmax.f32 %v2565, %v2306
          %v2570 = vmax.f32 %v2566, %v2307
          %v2571 = vmax.f32 %v2567, %v2308
          %v2572 = vmax.f32 %v2568, %v2309
          %v2573 = vmax.f32 %v2569, %v2310
          %v2574 = vmax.f32 %v2570, %v2311
          %v2575 = vmax.f32 %v2571, %v2312
          %v2576 = vmax.f32 %v2572, %v2313
          %v2577 = vmax.f32 %v2573, %v2314
          %v2578 = vmax.f32 %v2574, %v2315
          %v2579 = vmax.f32 %v2575, %v2316
          %v2580 = vmax.f32 %v2576, %v2317
          %v2581 = vmax.f32 %v2577, %v2318
          %v2582 = vmax.f32 %v2578, %v2319
          %v2583 = vmax.f32 %v2579, %v2320
          %v2584 = vmax.f32 %v2580, %v2321
          %v2585 = vmax.f32 %v2581, %v2322
          %v2586 = vmax.f32 %v2582, %v2323
          %v2587 = vmax.f32 %v2583, %v2324
          %v2588 = vmax.f32 %v2584, %v2325
          %v2589 = vmax.f32 %v2585, %v2326
          %v2590 = vmax.f32 %v2586, %v2327
          %v2591 = vmax.f32 %v2587, %v2328
          %v2592 = vmax.f32 %v2588, %v2329
          %v2593 = vmax.f32 %v2589, %v2330
          %v2594 = vmax.f32 %v2590, %v2331
          %v2595 = vmax.f32 %v2591, %v2332
          %v2596 = vmax.f32 %v2592, %v2333
          %v2597 = vmax.f32 %v2593, %v2334
          %v2598 = vmax.f32 %v2594, %v2335
          %v2599 = vmax.f32 %v2595, %v2336
          %v2600 = vmax.f32 %v2596, %v2337
          %v2601 = vmax.f32 %v2597, %v2338
          %v2602 = vmax.f32 %v2598, %v2339
          %v2603 = vmax.f32 %v2599, %v2340
          %v2604 = vmax.f32 %v2600, %v2341
          %v2605 = vmax.f32 %v2601, %v2342
          %v2606 = vmax.f32 %v2602, %v2343
          %v2607 = vmax.f32 %v2603, %v2344
          %v2608 = vmax.f32 %v2604, %v2345
          %v2609 = vmax.f32 %v2605, %v2346
          %v2610 = vmax.f32 %v2606, %v2347
          %v2611 = vmax.f32 %v2607, %v2348
          %v2612 = vmax.f32 %v2608, %v2349
          %v2613 = vmax.f32 %v2609, %v2350
          %v2614 = vmax.f32 %v2610, %v2351
          %v2615 = vmax.f32 %v2611, %v2352
          %v2616 = vmax.f32 %v2612, %v2353
          %v2617 = vmax.f32 %v2613, %v2354
          %v2618 = vmax.f32 %v2614, %v2355
          %v2619 = vmax.f32 %v2615, %v2356
          %v2620 = vmax.f32 %v2616, %v2357
          %v2621 = vmax.f32 %v2617, %v2358
          %v2622 = vmax.f32 %v2618, %v2359
          %v2623 = vmax.f32 %v2619, %v2360
          %v2624 = vmax.f32 %v2620, %v2361
          %v2625 = vmax.f32 %v2621, %v2362
          %v2626 = vmax.f32 %v2622, %v2363
          %v2627 = vmax.f32 %v2623, %v2364
          %v2628 = vmax.f32 %v2624, %v2365
          %v2629 = vmax.f32 %v2625, %v2366
          %v2630 = vmax.f32 %v2626, %v2367
          %v2631 = vmax.f32 %v2627, %v2368
          %v2632 = vmax.f32 %v2628, %v2369
          %v2633 = vmax.f32 %v2629, %v2370
          %v2634 = vmax.f32 %v2630, %v2371
          %v2635 = vmax.f32 %v2631, %v2372
          %v2636 = vmax.f32 %v2632, %v2373
          %v2637 = vmax.f32 %v2633, %v2374
          %v2638 = vmax.f32 %v2634, %v2375
          %v2639 = vmax.f32 %v2635, %v2376
          %v2640 = vmax.f32 %v2636, %v2377
          %v2641 = vmax.f32 %v2637, %v2378
          %v2642 = vmax.f32 %v2638, %v2379
          %v2643 = vmax.f32 %v2639, %v2380
          %v2644 = vmax.f32 %v2640, %v2381
          %v2645 = vmax.f32 %v2641, %v2382
          %v2646 = vmax.f32 %v2642, %v2383
          %v2647 = vmax.f32 %v2643, %v2384
          %v2648 = vmax.f32 %v2644, %v2385
          %v2649 = vmax.f32 %v2645, %v2386
          %v2650 = vmax.f32 %v2646, %v2387
          %v2651 = vmax.f32 %v2647, %v2388
          %v2652 = vmax.f32 %v2648, %v2389
          %v2653 = vmax.f32 %v2649, %v2390
          %v2654 = vmax.f32 %v2650, %v2391
          %v2655 = vmax.f32 %v2651, %v2392
          %v2656 = vmax.f32 %v2652, %v2393
          %v2657 = vmax.f32 %v2653, %v2394
          %v2658 = vmax.f32 %v2654, %v2395
          %v2659 = vmax.f32 %v2655, %v2396
          %v2660 = vmax.f32 %v2656, %v2397
          %v2661 = vmax.f32 %v2657, %v2398
          %v2662 = vmax.f32 %v2658, %v2399
          %v2663 = vmax.f32 %v2659, %v2400
          %v2664 = vmax.f32 %v2660, %v2401
          %v2665 = vmax.f32 %v2661, %v2402
          %v2666 = vmax.f32 %v2662, %v2403
          %v2667 = vmax.f32 %v2663, %v2404
          %v2668 = vmax.f32 %v2664, %v2405
          %v2669 = vmax.f32 %v2665, %v2406
          %v2670 = vmax.f32 %v2666, %v2407
          %v2671 = vmax.f32 %v2667, %v2408
          %v2672 = vmax.f32 %v2668, %v2409
          %v2673 = vmax.f32 %v2669, %v2410
          %v2674 = vmax.f32 %v2670, %v2411
          %v2675 = vmax.f32 %v2671, %v2412
          %v2676 = vmax.f32 %v2672, %v2413
          %v2677 = vmax.f32 %v2673, %v2414
          %v2678 = vmax.f32 %v2674, %v2415
          %v2679 = vmax.f32 %v2675, %v2416
          %v2680 = vmax.f32 %v2676, %v2417
          %v2681 = vmax.f32 %v2677, %v2418
          %v2682 = vmax.f32 %v2678, %v2419
          %v2683 = vmax.f32 %v2679, %v2680
          %v2684 = vmax.f32 %v2681, %v2682
          %v2685 = vmax.f32 %v2683, %v2684
          %v2686 = vmax.f32 %v2558, %v2685
          %2687 = vst [vmem:[#allocation3] sm:$0xff] %v2686
        $region60: #{tpu_custom_call.1} parent=39 // pred_fallthru
          _
        %p2688 = scmp.gt.s32.totalorder %s2423, 2500
        // Predicated region
        $region61: #{tpu_custom_call.1} parent=39 // pred_check
          %p2689 = pneg %p2688
        $region62: #{tpu_custom_call.1} parent=39 // pred_check_branch
          %2691 = sbr.rel (%p2689) target = $region64
        $region63: #{tpu_custom_call.1} parent=39 // pred_region
          %s2692 = smul.u32 %s2421, 1024
          %v2693 = vlaneseq
          %v2694 = vshrl.u32 %v2693, 7
          %v2695 = vadd.s32 %v2694, 8
          %v2696 = vadd.s32 %v2694, 16
          %v2697 = vadd.s32 %v2694, 24
          %v2698 = vadd.s32 %v2694, 32
          %v2699 = vadd.s32 %v2694, 40
          %v2700 = vadd.s32 %v2694, 48
          %v2701 = vadd.s32 %v2694, 56
          %v2702 = vadd.s32 %v2694, 64
          %v2703 = vadd.s32 %v2694, 72
          %v2704 = vadd.s32 %v2694, 80
          %v2705 = vadd.s32 %v2694, 88
          %v2706 = vadd.s32 %v2694, 96
          %v2707 = vadd.s32 %v2694, 104
          %v2708 = vadd.s32 %v2694, 112
          %v2709 = vadd.s32 %v2694, 120
          %v2710 = vadd.s32 %v2694, 128
          %v2711 = vadd.s32 %v2694, 136
          %v2712 = vadd.s32 %v2694, 144
          %v2713 = vadd.s32 %v2694, 152
          %v2714 = vadd.s32 %v2694, 160
          %v2715 = vadd.s32 %v2694, 168
          %v2716 = vadd.s32 %v2694, 176
          %v2717 = vadd.s32 %v2694, 184
          %v2718 = vadd.s32 %v2694, 192
          %v2719 = vadd.s32 %v2694, 200
          %v2720 = vadd.s32 %v2694, 208
          %v2721 = vadd.s32 %v2694, 216
          %v2722 = vadd.s32 %v2694, 224
          %v2723 = vadd.s32 %v2694, 232
          %v2724 = vadd.s32 %v2694, 240
          %v2725 = vadd.s32 %v2694, 248
          %v2726 = vadd.s32 %v2694, 256
          %v2727 = vadd.s32 %v2694, 264
          %v2728 = vadd.s32 %v2694, 272
          %v2729 = vadd.s32 %v2694, 280
          %v2730 = vadd.s32 %v2694, 288
          %v2731 = vadd.s32 %v2694, 296
          %v2732 = vadd.s32 %v2694, 304
          %v2733 = vadd.s32 %v2694, 312
          %v2734 = vadd.s32 %v2694, 320
          %v2735 = vadd.s32 %v2694, 328
          %v2736 = vadd.s32 %v2694, 336
          %v2737 = vadd.s32 %v2694, 344
          %v2738 = vadd.s32 %v2694, 352
          %v2739 = vadd.s32 %v2694, 360
          %v2740 = vadd.s32 %v2694, 368
          %v2741 = vadd.s32 %v2694, 376
          %v2742 = vadd.s32 %v2694, 384
          %v2743 = vadd.s32 %v2694, 392
          %v2744 = vadd.s32 %v2694, 400
          %v2745 = vadd.s32 %v2694, 408
          %v2746 = vadd.s32 %v2694, 416
          %v2747 = vadd.s32 %v2694, 424
          %v2748 = vadd.s32 %v2694, 432
          %v2749 = vadd.s32 %v2694, 440
          %v2750 = vadd.s32 %v2694, 448
          %v2751 = vadd.s32 %v2694, 456
          %v2752 = vadd.s32 %v2694, 464
          %v2753 = vadd.s32 %v2694, 472
          %v2754 = vadd.s32 %v2694, 480
          %v2755 = vadd.s32 %v2694, 488
          %v2756 = vadd.s32 %v2694, 496
          %v2757 = vadd.s32 %v2694, 504
          %v2758 = vadd.s32 %v2694, 512
          %v2759 = vadd.s32 %v2694, 520
          %v2760 = vadd.s32 %v2694, 528
          %v2761 = vadd.s32 %v2694, 536
          %v2762 = vadd.s32 %v2694, 544
          %v2763 = vadd.s32 %v2694, 552
          %v2764 = vadd.s32 %v2694, 560
          %v2765 = vadd.s32 %v2694, 568
          %v2766 = vadd.s32 %v2694, 576
          %v2767 = vadd.s32 %v2694, 584
          %v2768 = vadd.s32 %v2694, 592
          %v2769 = vadd.s32 %v2694, 600
          %v2770 = vadd.s32 %v2694, 608
          %v2771 = vadd.s32 %v2694, 616
          %v2772 = vadd.s32 %v2694, 624
          %v2773 = vadd.s32 %v2694, 632
          %v2774 = vadd.s32 %v2694, 640
          %v2775 = vadd.s32 %v2694, 648
          %v2776 = vadd.s32 %v2694, 656
          %v2777 = vadd.s32 %v2694, 664
          %v2778 = vadd.s32 %v2694, 672
          %v2779 = vadd.s32 %v2694, 680
          %v2780 = vadd.s32 %v2694, 688
          %v2781 = vadd.s32 %v2694, 696
          %v2782 = vadd.s32 %v2694, 704
          %v2783 = vadd.s32 %v2694, 712
          %v2784 = vadd.s32 %v2694, 720
          %v2785 = vadd.s32 %v2694, 728
          %v2786 = vadd.s32 %v2694, 736
          %v2787 = vadd.s32 %v2694, 744
          %v2788 = vadd.s32 %v2694, 752
          %v2789 = vadd.s32 %v2694, 760
          %v2790 = vadd.s32 %v2694, 768
          %v2791 = vadd.s32 %v2694, 776
          %v2792 = vadd.s32 %v2694, 784
          %v2793 = vadd.s32 %v2694, 792
          %v2794 = vadd.s32 %v2694, 800
          %v2795 = vadd.s32 %v2694, 808
          %v2796 = vadd.s32 %v2694, 816
          %v2797 = vadd.s32 %v2694, 824
          %v2798 = vadd.s32 %v2694, 832
          %v2799 = vadd.s32 %v2694, 840
          %v2800 = vadd.s32 %v2694, 848
          %v2801 = vadd.s32 %v2694, 856
          %v2802 = vadd.s32 %v2694, 864
          %v2803 = vadd.s32 %v2694, 872
          %v2804 = vadd.s32 %v2694, 880
          %v2805 = vadd.s32 %v2694, 888
          %v2806 = vadd.s32 %v2694, 896
          %v2807 = vadd.s32 %v2694, 904
          %v2808 = vadd.s32 %v2694, 912
          %v2809 = vadd.s32 %v2694, 920
          %v2810 = vadd.s32 %v2694, 928
          %v2811 = vadd.s32 %v2694, 936
          %v2812 = vadd.s32 %v2694, 944
          %v2813 = vadd.s32 %v2694, 952
          %v2814 = vadd.s32 %v2694, 960
          %v2815 = vadd.s32 %v2694, 968
          %v2816 = vadd.s32 %v2694, 976
          %v2817 = vadd.s32 %v2694, 984
          %v2818 = vadd.s32 %v2694, 992
          %v2819 = vadd.s32 %v2694, 1000
          %v2820 = vadd.s32 %v2694, 1008
          %v2821 = vadd.s32 %v2694, 1016
          %v2822 = vstv %s2692
          %v2823 = vadd.s32 %v2822, %v2694
          %v2824 = vadd.s32 %v2822, %v2695
          %v2825 = vadd.s32 %v2822, %v2696
          %v2826 = vadd.s32 %v2822, %v2697
          %v2827 = vadd.s32 %v2822, %v2698
          %v2828 = vadd.s32 %v2822, %v2699
          %v2829 = vadd.s32 %v2822, %v2700
          %v2830 = vadd.s32 %v2822, %v2701
          %v2831 = vadd.s32 %v2822, %v2702
          %v2832 = vadd.s32 %v2822, %v2703
          %v2833 = vadd.s32 %v2822, %v2704
          %v2834 = vadd.s32 %v2822, %v2705
          %v2835 = vadd.s32 %v2822, %v2706
          %v2836 = vadd.s32 %v2822, %v2707
          %v2837 = vadd.s32 %v2822, %v2708
          %v2838 = vadd.s32 %v2822, %v2709
          %v2839 = vadd.s32 %v2822, %v2710
          %v2840 = vadd.s32 %v2822, %v2711
          %v2841 = vadd.s32 %v2822, %v2712
          %v2842 = vadd.s32 %v2822, %v2713
          %v2843 = vadd.s32 %v2822, %v2714
          %v2844 = vadd.s32 %v2822, %v2715
          %v2845 = vadd.s32 %v2822, %v2716
          %v2846 = vadd.s32 %v2822, %v2717
          %v2847 = vadd.s32 %v2822, %v2718
          %v2848 = vadd.s32 %v2822, %v2719
          %v2849 = vadd.s32 %v2822, %v2720
          %v2850 = vadd.s32 %v2822, %v2721
          %v2851 = vadd.s32 %v2822, %v2722
          %v2852 = vadd.s32 %v2822, %v2723
          %v2853 = vadd.s32 %v2822, %v2724
          %v2854 = vadd.s32 %v2822, %v2725
          %v2855 = vadd.s32 %v2822, %v2726
          %v2856 = vadd.s32 %v2822, %v2727
          %v2857 = vadd.s32 %v2822, %v2728
          %v2858 = vadd.s32 %v2822, %v2729
          %v2859 = vadd.s32 %v2822, %v2730
          %v2860 = vadd.s32 %v2822, %v2731
          %v2861 = vadd.s32 %v2822, %v2732
          %v2862 = vadd.s32 %v2822, %v2733
          %v2863 = vadd.s32 %v2822, %v2734
          %v2864 = vadd.s32 %v2822, %v2735
          %v2865 = vadd.s32 %v2822, %v2736
          %v2866 = vadd.s32 %v2822, %v2737
          %v2867 = vadd.s32 %v2822, %v2738
          %v2868 = vadd.s32 %v2822, %v2739
          %v2869 = vadd.s32 %v2822, %v2740
          %v2870 = vadd.s32 %v2822, %v2741
          %v2871 = vadd.s32 %v2822, %v2742
          %v2872 = vadd.s32 %v2822, %v2743
          %v2873 = vadd.s32 %v2822, %v2744
          %v2874 = vadd.s32 %v2822, %v2745
          %v2875 = vadd.s32 %v2822, %v2746
          %v2876 = vadd.s32 %v2822, %v2747
          %v2877 = vadd.s32 %v2822, %v2748
          %v2878 = vadd.s32 %v2822, %v2749
          %v2879 = vadd.s32 %v2822, %v2750
          %v2880 = vadd.s32 %v2822, %v2751
          %v2881 = vadd.s32 %v2822, %v2752
          %v2882 = vadd.s32 %v2822, %v2753
          %v2883 = vadd.s32 %v2822, %v2754
          %v2884 = vadd.s32 %v2822, %v2755
          %v2885 = vadd.s32 %v2822, %v2756
          %v2886 = vadd.s32 %v2822, %v2757
          %v2887 = vadd.s32 %v2822, %v2758
          %v2888 = vadd.s32 %v2822, %v2759
          %v2889 = vadd.s32 %v2822, %v2760
          %v2890 = vadd.s32 %v2822, %v2761
          %v2891 = vadd.s32 %v2822, %v2762
          %v2892 = vadd.s32 %v2822, %v2763
          %v2893 = vadd.s32 %v2822, %v2764
          %v2894 = vadd.s32 %v2822, %v2765
          %v2895 = vadd.s32 %v2822, %v2766
          %v2896 = vadd.s32 %v2822, %v2767
          %v2897 = vadd.s32 %v2822, %v2768
          %v2898 = vadd.s32 %v2822, %v2769
          %v2899 = vadd.s32 %v2822, %v2770
          %v2900 = vadd.s32 %v2822, %v2771
          %v2901 = vadd.s32 %v2822, %v2772
          %v2902 = vadd.s32 %v2822, %v2773
          %v2903 = vadd.s32 %v2822, %v2774
          %v2904 = vadd.s32 %v2822, %v2775
          %v2905 = vadd.s32 %v2822, %v2776
          %v2906 = vadd.s32 %v2822, %v2777
          %v2907 = vadd.s32 %v2822, %v2778
          %v2908 = vadd.s32 %v2822, %v2779
          %v2909 = vadd.s32 %v2822, %v2780
          %v2910 = vadd.s32 %v2822, %v2781
          %v2911 = vadd.s32 %v2822, %v2782
          %v2912 = vadd.s32 %v2822, %v2783
          %v2913 = vadd.s32 %v2822, %v2784
          %v2914 = vadd.s32 %v2822, %v2785
          %v2915 = vadd.s32 %v2822, %v2786
          %v2916 = vadd.s32 %v2822, %v2787
          %v2917 = vadd.s32 %v2822, %v2788
          %v2918 = vadd.s32 %v2822, %v2789
          %v2919 = vadd.s32 %v2822, %v2790
          %v2920 = vadd.s32 %v2822, %v2791
          %v2921 = vadd.s32 %v2822, %v2792
          %v2922 = vadd.s32 %v2822, %v2793
          %v2923 = vadd.s32 %v2822, %v2794
          %v2924 = vadd.s32 %v2822, %v2795
          %v2925 = vadd.s32 %v2822, %v2796
          %v2926 = vadd.s32 %v2822, %v2797
          %v2927 = vadd.s32 %v2822, %v2798
          %v2928 = vadd.s32 %v2822, %v2799
          %v2929 = vadd.s32 %v2822, %v2800
          %v2930 = vadd.s32 %v2822, %v2801
          %v2931 = vadd.s32 %v2822, %v2802
          %v2932 = vadd.s32 %v2822, %v2803
          %v2933 = vadd.s32 %v2822, %v2804
          %v2934 = vadd.s32 %v2822, %v2805
          %v2935 = vadd.s32 %v2822, %v2806
          %v2936 = vadd.s32 %v2822, %v2807
          %v2937 = vadd.s32 %v2822, %v2808
          %v2938 = vadd.s32 %v2822, %v2809
          %v2939 = vadd.s32 %v2822, %v2810
          %v2940 = vadd.s32 %v2822, %v2811
          %v2941 = vadd.s32 %v2822, %v2812
          %v2942 = vadd.s32 %v2822, %v2813
          %v2943 = vadd.s32 %v2822, %v2814
          %v2944 = vadd.s32 %v2822, %v2815
          %v2945 = vadd.s32 %v2822, %v2816
          %v2946 = vadd.s32 %v2822, %v2817
          %v2947 = vadd.s32 %v2822, %v2818
          %v2948 = vadd.s32 %v2822, %v2819
          %v2949 = vadd.s32 %v2822, %v2820
          %v2950 = vadd.s32 %v2822, %v2821
          %vm2951 = vcmp.lt.s32.totalorder %v2823, 2500
          %vm2952 = vcmp.lt.s32.totalorder %v2824, 2500
          %vm2953 = vcmp.lt.s32.totalorder %v2825, 2500
          %vm2954 = vcmp.lt.s32.totalorder %v2826, 2500
          %vm2955 = vcmp.lt.s32.totalorder %v2827, 2500
          %vm2956 = vcmp.lt.s32.totalorder %v2828, 2500
          %vm2957 = vcmp.lt.s32.totalorder %v2829, 2500
          %vm2958 = vcmp.lt.s32.totalorder %v2830, 2500
          %vm2959 = vcmp.lt.s32.totalorder %v2831, 2500
          %vm2960 = vcmp.lt.s32.totalorder %v2832, 2500
          %vm2961 = vcmp.lt.s32.totalorder %v2833, 2500
          %vm2962 = vcmp.lt.s32.totalorder %v2834, 2500
          %vm2963 = vcmp.lt.s32.totalorder %v2835, 2500
          %vm2964 = vcmp.lt.s32.totalorder %v2836, 2500
          %vm2965 = vcmp.lt.s32.totalorder %v2837, 2500
          %vm2966 = vcmp.lt.s32.totalorder %v2838, 2500
          %vm2967 = vcmp.lt.s32.totalorder %v2839, 2500
          %vm2968 = vcmp.lt.s32.totalorder %v2840, 2500
          %vm2969 = vcmp.lt.s32.totalorder %v2841, 2500
          %vm2970 = vcmp.lt.s32.totalorder %v2842, 2500
          %vm2971 = vcmp.lt.s32.totalorder %v2843, 2500
          %vm2972 = vcmp.lt.s32.totalorder %v2844, 2500
          %vm2973 = vcmp.lt.s32.totalorder %v2845, 2500
          %vm2974 = vcmp.lt.s32.totalorder %v2846, 2500
          %vm2975 = vcmp.lt.s32.totalorder %v2847, 2500
          %vm2976 = vcmp.lt.s32.totalorder %v2848, 2500
          %vm2977 = vcmp.lt.s32.totalorder %v2849, 2500
          %vm2978 = vcmp.lt.s32.totalorder %v2850, 2500
          %vm2979 = vcmp.lt.s32.totalorder %v2851, 2500
          %vm2980 = vcmp.lt.s32.totalorder %v2852, 2500
          %vm2981 = vcmp.lt.s32.totalorder %v2853, 2500
          %vm2982 = vcmp.lt.s32.totalorder %v2854, 2500
          %vm2983 = vcmp.lt.s32.totalorder %v2855, 2500
          %vm2984 = vcmp.lt.s32.totalorder %v2856, 2500
          %vm2985 = vcmp.lt.s32.totalorder %v2857, 2500
          %vm2986 = vcmp.lt.s32.totalorder %v2858, 2500
          %vm2987 = vcmp.lt.s32.totalorder %v2859, 2500
          %vm2988 = vcmp.lt.s32.totalorder %v2860, 2500
          %vm2989 = vcmp.lt.s32.totalorder %v2861, 2500
          %vm2990 = vcmp.lt.s32.totalorder %v2862, 2500
          %vm2991 = vcmp.lt.s32.totalorder %v2863, 2500
          %vm2992 = vcmp.lt.s32.totalorder %v2864, 2500
          %vm2993 = vcmp.lt.s32.totalorder %v2865, 2500
          %vm2994 = vcmp.lt.s32.totalorder %v2866, 2500
          %vm2995 = vcmp.lt.s32.totalorder %v2867, 2500
          %vm2996 = vcmp.lt.s32.totalorder %v2868, 2500
          %vm2997 = vcmp.lt.s32.totalorder %v2869, 2500
          %vm2998 = vcmp.lt.s32.totalorder %v2870, 2500
          %vm2999 = vcmp.lt.s32.totalorder %v2871, 2500
          %vm3000 = vcmp.lt.s32.totalorder %v2872, 2500
          %vm3001 = vcmp.lt.s32.totalorder %v2873, 2500
          %vm3002 = vcmp.lt.s32.totalorder %v2874, 2500
          %vm3003 = vcmp.lt.s32.totalorder %v2875, 2500
          %vm3004 = vcmp.lt.s32.totalorder %v2876, 2500
          %vm3005 = vcmp.lt.s32.totalorder %v2877, 2500
          %vm3006 = vcmp.lt.s32.totalorder %v2878, 2500
          %vm3007 = vcmp.lt.s32.totalorder %v2879, 2500
          %vm3008 = vcmp.lt.s32.totalorder %v2880, 2500
          %vm3009 = vcmp.lt.s32.totalorder %v2881, 2500
          %vm3010 = vcmp.lt.s32.totalorder %v2882, 2500
          %vm3011 = vcmp.lt.s32.totalorder %v2883, 2500
          %vm3012 = vcmp.lt.s32.totalorder %v2884, 2500
          %vm3013 = vcmp.lt.s32.totalorder %v2885, 2500
          %vm3014 = vcmp.lt.s32.totalorder %v2886, 2500
          %vm3015 = vcmp.lt.s32.totalorder %v2887, 2500
          %vm3016 = vcmp.lt.s32.totalorder %v2888, 2500
          %vm3017 = vcmp.lt.s32.totalorder %v2889, 2500
          %vm3018 = vcmp.lt.s32.totalorder %v2890, 2500
          %vm3019 = vcmp.lt.s32.totalorder %v2891, 2500
          %vm3020 = vcmp.lt.s32.totalorder %v2892, 2500
          %vm3021 = vcmp.lt.s32.totalorder %v2893, 2500
          %vm3022 = vcmp.lt.s32.totalorder %v2894, 2500
          %vm3023 = vcmp.lt.s32.totalorder %v2895, 2500
          %vm3024 = vcmp.lt.s32.totalorder %v2896, 2500
          %vm3025 = vcmp.lt.s32.totalorder %v2897, 2500
          %vm3026 = vcmp.lt.s32.totalorder %v2898, 2500
          %vm3027 = vcmp.lt.s32.totalorder %v2899, 2500
          %vm3028 = vcmp.lt.s32.totalorder %v2900, 2500
          %vm3029 = vcmp.lt.s32.totalorder %v2901, 2500
          %vm3030 = vcmp.lt.s32.totalorder %v2902, 2500
          %vm3031 = vcmp.lt.s32.totalorder %v2903, 2500
          %vm3032 = vcmp.lt.s32.totalorder %v2904, 2500
          %vm3033 = vcmp.lt.s32.totalorder %v2905, 2500
          %vm3034 = vcmp.lt.s32.totalorder %v2906, 2500
          %vm3035 = vcmp.lt.s32.totalorder %v2907, 2500
          %vm3036 = vcmp.lt.s32.totalorder %v2908, 2500
          %vm3037 = vcmp.lt.s32.totalorder %v2909, 2500
          %vm3038 = vcmp.lt.s32.totalorder %v2910, 2500
          %vm3039 = vcmp.lt.s32.totalorder %v2911, 2500
          %vm3040 = vcmp.lt.s32.totalorder %v2912, 2500
          %vm3041 = vcmp.lt.s32.totalorder %v2913, 2500
          %vm3042 = vcmp.lt.s32.totalorder %v2914, 2500
          %vm3043 = vcmp.lt.s32.totalorder %v2915, 2500
          %vm3044 = vcmp.lt.s32.totalorder %v2916, 2500
          %vm3045 = vcmp.lt.s32.totalorder %v2917, 2500
          %vm3046 = vcmp.lt.s32.totalorder %v2918, 2500
          %vm3047 = vcmp.lt.s32.totalorder %v2919, 2500
          %vm3048 = vcmp.lt.s32.totalorder %v2920, 2500
          %vm3049 = vcmp.lt.s32.totalorder %v2921, 2500
          %vm3050 = vcmp.lt.s32.totalorder %v2922, 2500
          %vm3051 = vcmp.lt.s32.totalorder %v2923, 2500
          %vm3052 = vcmp.lt.s32.totalorder %v2924, 2500
          %vm3053 = vcmp.lt.s32.totalorder %v2925, 2500
          %vm3054 = vcmp.lt.s32.totalorder %v2926, 2500
          %vm3055 = vcmp.lt.s32.totalorder %v2927, 2500
          %vm3056 = vcmp.lt.s32.totalorder %v2928, 2500
          %vm3057 = vcmp.lt.s32.totalorder %v2929, 2500
          %vm3058 = vcmp.lt.s32.totalorder %v2930, 2500
          %vm3059 = vcmp.lt.s32.totalorder %v2931, 2500
          %vm3060 = vcmp.lt.s32.totalorder %v2932, 2500
          %vm3061 = vcmp.lt.s32.totalorder %v2933, 2500
          %vm3062 = vcmp.lt.s32.totalorder %v2934, 2500
          %vm3063 = vcmp.lt.s32.totalorder %v2935, 2500
          %vm3064 = vcmp.lt.s32.totalorder %v2936, 2500
          %vm3065 = vcmp.lt.s32.totalorder %v2937, 2500
          %vm3066 = vcmp.lt.s32.totalorder %v2938, 2500
          %vm3067 = vcmp.lt.s32.totalorder %v2939, 2500
          %vm3068 = vcmp.lt.s32.totalorder %v2940, 2500
          %vm3069 = vcmp.lt.s32.totalorder %v2941, 2500
          %vm3070 = vcmp.lt.s32.totalorder %v2942, 2500
          %vm3071 = vcmp.lt.s32.totalorder %v2943, 2500
          %vm3072 = vcmp.lt.s32.totalorder %v2944, 2500
          %vm3073 = vcmp.lt.s32.totalorder %v2945, 2500
          %vm3074 = vcmp.lt.s32.totalorder %v2946, 2500
          %vm3075 = vcmp.lt.s32.totalorder %v2947, 2500
          %vm3076 = vcmp.lt.s32.totalorder %v2948, 2500
          %vm3077 = vcmp.lt.s32.totalorder %v2949, 2500
          %vm3078 = vcmp.lt.s32.totalorder %v2950, 2500
          %v3079 = vsel %vm2951, 1, 0
          %v3080 = vsel %vm2952, 1, 0
          %v3081 = vsel %vm2953, 1, 0
          %v3082 = vsel %vm2954, 1, 0
          %v3083 = vsel %vm2955, 1, 0
          %v3084 = vsel %vm2956, 1, 0
          %v3085 = vsel %vm2957, 1, 0
          %v3086 = vsel %vm2958, 1, 0
          %v3087 = vsel %vm2959, 1, 0
          %v3088 = vsel %vm2960, 1, 0
          %v3089 = vsel %vm2961, 1, 0
          %v3090 = vsel %vm2962, 1, 0
          %v3091 = vsel %vm2963, 1, 0
          %v3092 = vsel %vm2964, 1, 0
          %v3093 = vsel %vm2965, 1, 0
          %v3094 = vsel %vm2966, 1, 0
          %v3095 = vsel %vm2967, 1, 0
          %v3096 = vsel %vm2968, 1, 0
          %v3097 = vsel %vm2969, 1, 0
          %v3098 = vsel %vm2970, 1, 0
          %v3099 = vsel %vm2971, 1, 0
          %v3100 = vsel %vm2972, 1, 0
          %v3101 = vsel %vm2973, 1, 0
          %v3102 = vsel %vm2974, 1, 0
          %v3103 = vsel %vm2975, 1, 0
          %v3104 = vsel %vm2976, 1, 0
          %v3105 = vsel %vm2977, 1, 0
          %v3106 = vsel %vm2978, 1, 0
          %v3107 = vsel %vm2979, 1, 0
          %v3108 = vsel %vm2980, 1, 0
          %v3109 = vsel %vm2981, 1, 0
          %v3110 = vsel %vm2982, 1, 0
          %v3111 = vsel %vm2983, 1, 0
          %v3112 = vsel %vm2984, 1, 0
          %v3113 = vsel %vm2985, 1, 0
          %v3114 = vsel %vm2986, 1, 0
          %v3115 = vsel %vm2987, 1, 0
          %v3116 = vsel %vm2988, 1, 0
          %v3117 = vsel %vm2989, 1, 0
          %v3118 = vsel %vm2990, 1, 0
          %v3119 = vsel %vm2991, 1, 0
          %v3120 = vsel %vm2992, 1, 0
          %v3121 = vsel %vm2993, 1, 0
          %v3122 = vsel %vm2994, 1, 0
          %v3123 = vsel %vm2995, 1, 0
          %v3124 = vsel %vm2996, 1, 0
          %v3125 = vsel %vm2997, 1, 0
          %v3126 = vsel %vm2998, 1, 0
          %v3127 = vsel %vm2999, 1, 0
          %v3128 = vsel %vm3000, 1, 0
          %v3129 = vsel %vm3001, 1, 0
          %v3130 = vsel %vm3002, 1, 0
          %v3131 = vsel %vm3003, 1, 0
          %v3132 = vsel %vm3004, 1, 0
          %v3133 = vsel %vm3005, 1, 0
          %v3134 = vsel %vm3006, 1, 0
          %v3135 = vsel %vm3007, 1, 0
          %v3136 = vsel %vm3008, 1, 0
          %v3137 = vsel %vm3009, 1, 0
          %v3138 = vsel %vm3010, 1, 0
          %v3139 = vsel %vm3011, 1, 0
          %v3140 = vsel %vm3012, 1, 0
          %v3141 = vsel %vm3013, 1, 0
          %v3142 = vsel %vm3014, 1, 0
          %v3143 = vsel %vm3015, 1, 0
          %v3144 = vsel %vm3016, 1, 0
          %v3145 = vsel %vm3017, 1, 0
          %v3146 = vsel %vm3018, 1, 0
          %v3147 = vsel %vm3019, 1, 0
          %v3148 = vsel %vm3020, 1, 0
          %v3149 = vsel %vm3021, 1, 0
          %v3150 = vsel %vm3022, 1, 0
          %v3151 = vsel %vm3023, 1, 0
          %v3152 = vsel %vm3024, 1, 0
          %v3153 = vsel %vm3025, 1, 0
          %v3154 = vsel %vm3026, 1, 0
          %v3155 = vsel %vm3027, 1, 0
          %v3156 = vsel %vm3028, 1, 0
          %v3157 = vsel %vm3029, 1, 0
          %v3158 = vsel %vm3030, 1, 0
          %v3159 = vsel %vm3031, 1, 0
          %v3160 = vsel %vm3032, 1, 0
          %v3161 = vsel %vm3033, 1, 0
          %v3162 = vsel %vm3034, 1, 0
          %v3163 = vsel %vm3035, 1, 0
          %v3164 = vsel %vm3036, 1, 0
          %v3165 = vsel %vm3037, 1, 0
          %v3166 = vsel %vm3038, 1, 0
          %v3167 = vsel %vm3039, 1, 0
          %v3168 = vsel %vm3040, 1, 0
          %v3169 = vsel %vm3041, 1, 0
          %v3170 = vsel %vm3042, 1, 0
          %v3171 = vsel %vm3043, 1, 0
          %v3172 = vsel %vm3044, 1, 0
          %v3173 = vsel %vm3045, 1, 0
          %v3174 = vsel %vm3046, 1, 0
          %v3175 = vsel %vm3047, 1, 0
          %v3176 = vsel %vm3048, 1, 0
          %v3177 = vsel %vm3049, 1, 0
          %v3178 = vsel %vm3050, 1, 0
          %v3179 = vsel %vm3051, 1, 0
          %v3180 = vsel %vm3052, 1, 0
          %v3181 = vsel %vm3053, 1, 0
          %v3182 = vsel %vm3054, 1, 0
          %v3183 = vsel %vm3055, 1, 0
          %v3184 = vsel %vm3056, 1, 0
          %v3185 = vsel %vm3057, 1, 0
          %v3186 = vsel %vm3058, 1, 0
          %v3187 = vsel %vm3059, 1, 0
          %v3188 = vsel %vm3060, 1, 0
          %v3189 = vsel %vm3061, 1, 0
          %v3190 = vsel %vm3062, 1, 0
          %v3191 = vsel %vm3063, 1, 0
          %v3192 = vsel %vm3064, 1, 0
          %v3193 = vsel %vm3065, 1, 0
          %v3194 = vsel %vm3066, 1, 0
          %v3195 = vsel %vm3067, 1, 0
          %v3196 = vsel %vm3068, 1, 0
          %v3197 = vsel %vm3069, 1, 0
          %v3198 = vsel %vm3070, 1, 0
          %v3199 = vsel %vm3071, 1, 0
          %v3200 = vsel %vm3072, 1, 0
          %v3201 = vsel %vm3073, 1, 0
          %v3202 = vsel %vm3074, 1, 0
          %v3203 = vsel %vm3075, 1, 0
          %v3204 = vsel %vm3076, 1, 0
          %v3205 = vsel %vm3077, 1, 0
          %v3206 = vsel %vm3078, 1, 0
          %vm3207 = vcmp.eq.s32.totalorder %v3079, 1
          %vm3208 = vcmp.eq.s32.totalorder %v3080, 1
          %vm3209 = vcmp.eq.s32.totalorder %v3081, 1
          %vm3210 = vcmp.eq.s32.totalorder %v3082, 1
          %vm3211 = vcmp.eq.s32.totalorder %v3083, 1
          %vm3212 = vcmp.eq.s32.totalorder %v3084, 1
          %vm3213 = vcmp.eq.s32.totalorder %v3085, 1
          %vm3214 = vcmp.eq.s32.totalorder %v3086, 1
          %vm3215 = vcmp.eq.s32.totalorder %v3087, 1
          %vm3216 = vcmp.eq.s32.totalorder %v3088, 1
          %vm3217 = vcmp.eq.s32.totalorder %v3089, 1
          %vm3218 = vcmp.eq.s32.totalorder %v3090, 1
          %vm3219 = vcmp.eq.s32.totalorder %v3091, 1
          %vm3220 = vcmp.eq.s32.totalorder %v3092, 1
          %vm3221 = vcmp.eq.s32.totalorder %v3093, 1
          %vm3222 = vcmp.eq.s32.totalorder %v3094, 1
          %vm3223 = vcmp.eq.s32.totalorder %v3095, 1
          %vm3224 = vcmp.eq.s32.totalorder %v3096, 1
          %vm3225 = vcmp.eq.s32.totalorder %v3097, 1
          %vm3226 = vcmp.eq.s32.totalorder %v3098, 1
          %vm3227 = vcmp.eq.s32.totalorder %v3099, 1
          %vm3228 = vcmp.eq.s32.totalorder %v3100, 1
          %vm3229 = vcmp.eq.s32.totalorder %v3101, 1
          %vm3230 = vcmp.eq.s32.totalorder %v3102, 1
          %vm3231 = vcmp.eq.s32.totalorder %v3103, 1
          %vm3232 = vcmp.eq.s32.totalorder %v3104, 1
          %vm3233 = vcmp.eq.s32.totalorder %v3105, 1
          %vm3234 = vcmp.eq.s32.totalorder %v3106, 1
          %vm3235 = vcmp.eq.s32.totalorder %v3107, 1
          %vm3236 = vcmp.eq.s32.totalorder %v3108, 1
          %vm3237 = vcmp.eq.s32.totalorder %v3109, 1
          %vm3238 = vcmp.eq.s32.totalorder %v3110, 1
          %vm3239 = vcmp.eq.s32.totalorder %v3111, 1
          %vm3240 = vcmp.eq.s32.totalorder %v3112, 1
          %vm3241 = vcmp.eq.s32.totalorder %v3113, 1
          %vm3242 = vcmp.eq.s32.totalorder %v3114, 1
          %vm3243 = vcmp.eq.s32.totalorder %v3115, 1
          %vm3244 = vcmp.eq.s32.totalorder %v3116, 1
          %vm3245 = vcmp.eq.s32.totalorder %v3117, 1
          %vm3246 = vcmp.eq.s32.totalorder %v3118, 1
          %vm3247 = vcmp.eq.s32.totalorder %v3119, 1
          %vm3248 = vcmp.eq.s32.totalorder %v3120, 1
          %vm3249 = vcmp.eq.s32.totalorder %v3121, 1
          %vm3250 = vcmp.eq.s32.totalorder %v3122, 1
          %vm3251 = vcmp.eq.s32.totalorder %v3123, 1
          %vm3252 = vcmp.eq.s32.totalorder %v3124, 1
          %vm3253 = vcmp.eq.s32.totalorder %v3125, 1
          %vm3254 = vcmp.eq.s32.totalorder %v3126, 1
          %vm3255 = vcmp.eq.s32.totalorder %v3127, 1
          %vm3256 = vcmp.eq.s32.totalorder %v3128, 1
          %vm3257 = vcmp.eq.s32.totalorder %v3129, 1
          %vm3258 = vcmp.eq.s32.totalorder %v3130, 1
          %vm3259 = vcmp.eq.s32.totalorder %v3131, 1
          %vm3260 = vcmp.eq.s32.totalorder %v3132, 1
          %vm3261 = vcmp.eq.s32.totalorder %v3133, 1
          %vm3262 = vcmp.eq.s32.totalorder %v3134, 1
          %vm3263 = vcmp.eq.s32.totalorder %v3135, 1
          %vm3264 = vcmp.eq.s32.totalorder %v3136, 1
          %vm3265 = vcmp.eq.s32.totalorder %v3137, 1
          %vm3266 = vcmp.eq.s32.totalorder %v3138, 1
          %vm3267 = vcmp.eq.s32.totalorder %v3139, 1
          %vm3268 = vcmp.eq.s32.totalorder %v3140, 1
          %vm3269 = vcmp.eq.s32.totalorder %v3141, 1
          %vm3270 = vcmp.eq.s32.totalorder %v3142, 1
          %vm3271 = vcmp.eq.s32.totalorder %v3143, 1
          %vm3272 = vcmp.eq.s32.totalorder %v3144, 1
          %vm3273 = vcmp.eq.s32.totalorder %v3145, 1
          %vm3274 = vcmp.eq.s32.totalorder %v3146, 1
          %vm3275 = vcmp.eq.s32.totalorder %v3147, 1
          %vm3276 = vcmp.eq.s32.totalorder %v3148, 1
          %vm3277 = vcmp.eq.s32.totalorder %v3149, 1
          %vm3278 = vcmp.eq.s32.totalorder %v3150, 1
          %vm3279 = vcmp.eq.s32.totalorder %v3151, 1
          %vm3280 = vcmp.eq.s32.totalorder %v3152, 1
          %vm3281 = vcmp.eq.s32.totalorder %v3153, 1
          %vm3282 = vcmp.eq.s32.totalorder %v3154, 1
          %vm3283 = vcmp.eq.s32.totalorder %v3155, 1
          %vm3284 = vcmp.eq.s32.totalorder %v3156, 1
          %vm3285 = vcmp.eq.s32.totalorder %v3157, 1
          %vm3286 = vcmp.eq.s32.totalorder %v3158, 1
          %vm3287 = vcmp.eq.s32.totalorder %v3159, 1
          %vm3288 = vcmp.eq.s32.totalorder %v3160, 1
          %vm3289 = vcmp.eq.s32.totalorder %v3161, 1
          %vm3290 = vcmp.eq.s32.totalorder %v3162, 1
          %vm3291 = vcmp.eq.s32.totalorder %v3163, 1
          %vm3292 = vcmp.eq.s32.totalorder %v3164, 1
          %vm3293 = vcmp.eq.s32.totalorder %v3165, 1
          %vm3294 = vcmp.eq.s32.totalorder %v3166, 1
          %vm3295 = vcmp.eq.s32.totalorder %v3167, 1
          %vm3296 = vcmp.eq.s32.totalorder %v3168, 1
          %vm3297 = vcmp.eq.s32.totalorder %v3169, 1
          %vm3298 = vcmp.eq.s32.totalorder %v3170, 1
          %vm3299 = vcmp.eq.s32.totalorder %v3171, 1
          %vm3300 = vcmp.eq.s32.totalorder %v3172, 1
          %vm3301 = vcmp.eq.s32.totalorder %v3173, 1
          %vm3302 = vcmp.eq.s32.totalorder %v3174, 1
          %vm3303 = vcmp.eq.s32.totalorder %v3175, 1
          %vm3304 = vcmp.eq.s32.totalorder %v3176, 1
          %vm3305 = vcmp.eq.s32.totalorder %v3177, 1
          %vm3306 = vcmp.eq.s32.totalorder %v3178, 1
          %vm3307 = vcmp.eq.s32.totalorder %v3179, 1
          %vm3308 = vcmp.eq.s32.totalorder %v3180, 1
          %vm3309 = vcmp.eq.s32.totalorder %v3181, 1
          %vm3310 = vcmp.eq.s32.totalorder %v3182, 1
          %vm3311 = vcmp.eq.s32.totalorder %v3183, 1
          %vm3312 = vcmp.eq.s32.totalorder %v3184, 1
          %vm3313 = vcmp.eq.s32.totalorder %v3185, 1
          %vm3314 = vcmp.eq.s32.totalorder %v3186, 1
          %vm3315 = vcmp.eq.s32.totalorder %v3187, 1
          %vm3316 = vcmp.eq.s32.totalorder %v3188, 1
          %vm3317 = vcmp.eq.s32.totalorder %v3189, 1
          %vm3318 = vcmp.eq.s32.totalorder %v3190, 1
          %vm3319 = vcmp.eq.s32.totalorder %v3191, 1
          %vm3320 = vcmp.eq.s32.totalorder %v3192, 1
          %vm3321 = vcmp.eq.s32.totalorder %v3193, 1
          %vm3322 = vcmp.eq.s32.totalorder %v3194, 1
          %vm3323 = vcmp.eq.s32.totalorder %v3195, 1
          %vm3324 = vcmp.eq.s32.totalorder %v3196, 1
          %vm3325 = vcmp.eq.s32.totalorder %v3197, 1
          %vm3326 = vcmp.eq.s32.totalorder %v3198, 1
          %vm3327 = vcmp.eq.s32.totalorder %v3199, 1
          %vm3328 = vcmp.eq.s32.totalorder %v3200, 1
          %vm3329 = vcmp.eq.s32.totalorder %v3201, 1
          %vm3330 = vcmp.eq.s32.totalorder %v3202, 1
          %vm3331 = vcmp.eq.s32.totalorder %v3203, 1
          %vm3332 = vcmp.eq.s32.totalorder %v3204, 1
          %vm3333 = vcmp.eq.s32.totalorder %v3205, 1
          %vm3334 = vcmp.eq.s32.totalorder %v3206, 1
          %v3335 = vsel %vm3207, %v2292, 0.0
          %v3336 = vsel %vm3208, %v2293, 0.0
          %v3337 = vsel %vm3209, %v2294, 0.0
          %v3338 = vsel %vm3210, %v2295, 0.0
          %v3339 = vsel %vm3211, %v2296, 0.0
          %v3340 = vsel %vm3212, %v2297, 0.0
          %v3341 = vsel %vm3213, %v2298, 0.0
          %v3342 = vsel %vm3214, %v2299, 0.0
          %v3343 = vsel %vm3215, %v2300, 0.0
          %v3344 = vsel %vm3216, %v2301, 0.0
          %v3345 = vsel %vm3217, %v2302, 0.0
          %v3346 = vsel %vm3218, %v2303, 0.0
          %v3347 = vsel %vm3219, %v2304, 0.0
          %v3348 = vsel %vm3220, %v2305, 0.0
          %v3349 = vsel %vm3221, %v2306, 0.0
          %v3350 = vsel %vm3222, %v2307, 0.0
          %v3351 = vsel %vm3223, %v2308, 0.0
          %v3352 = vsel %vm3224, %v2309, 0.0
          %v3353 = vsel %vm3225, %v2310, 0.0
          %v3354 = vsel %vm3226, %v2311, 0.0
          %v3355 = vsel %vm3227, %v2312, 0.0
          %v3356 = vsel %vm3228, %v2313, 0.0
          %v3357 = vsel %vm3229, %v2314, 0.0
          %v3358 = vsel %vm3230, %v2315, 0.0
          %v3359 = vsel %vm3231, %v2316, 0.0
          %v3360 = vsel %vm3232, %v2317, 0.0
          %v3361 = vsel %vm3233, %v2318, 0.0
          %v3362 = vsel %vm3234, %v2319, 0.0
          %v3363 = vsel %vm3235, %v2320, 0.0
          %v3364 = vsel %vm3236, %v2321, 0.0
          %v3365 = vsel %vm3237, %v2322, 0.0
          %v3366 = vsel %vm3238, %v2323, 0.0
          %v3367 = vsel %vm3239, %v2324, 0.0
          %v3368 = vsel %vm3240, %v2325, 0.0
          %v3369 = vsel %vm3241, %v2326, 0.0
          %v3370 = vsel %vm3242, %v2327, 0.0
          %v3371 = vsel %vm3243, %v2328, 0.0
          %v3372 = vsel %vm3244, %v2329, 0.0
          %v3373 = vsel %vm3245, %v2330, 0.0
          %v3374 = vsel %vm3246, %v2331, 0.0
          %v3375 = vsel %vm3247, %v2332, 0.0
          %v3376 = vsel %vm3248, %v2333, 0.0
          %v3377 = vsel %vm3249, %v2334, 0.0
          %v3378 = vsel %vm3250, %v2335, 0.0
          %v3379 = vsel %vm3251, %v2336, 0.0
          %v3380 = vsel %vm3252, %v2337, 0.0
          %v3381 = vsel %vm3253, %v2338, 0.0
          %v3382 = vsel %vm3254, %v2339, 0.0
          %v3383 = vsel %vm3255, %v2340, 0.0
          %v3384 = vsel %vm3256, %v2341, 0.0
          %v3385 = vsel %vm3257, %v2342, 0.0
          %v3386 = vsel %vm3258, %v2343, 0.0
          %v3387 = vsel %vm3259, %v2344, 0.0
          %v3388 = vsel %vm3260, %v2345, 0.0
          %v3389 = vsel %vm3261, %v2346, 0.0
          %v3390 = vsel %vm3262, %v2347, 0.0
          %v3391 = vsel %vm3263, %v2348, 0.0
          %v3392 = vsel %vm3264, %v2349, 0.0
          %v3393 = vsel %vm3265, %v2350, 0.0
          %v3394 = vsel %vm3266, %v2351, 0.0
          %v3395 = vsel %vm3267, %v2352, 0.0
          %v3396 = vsel %vm3268, %v2353, 0.0
          %v3397 = vsel %vm3269, %v2354, 0.0
          %v3398 = vsel %vm3270, %v2355, 0.0
          %v3399 = vsel %vm3271, %v2356, 0.0
          %v3400 = vsel %vm3272, %v2357, 0.0
          %v3401 = vsel %vm3273, %v2358, 0.0
          %v3402 = vsel %vm3274, %v2359, 0.0
          %v3403 = vsel %vm3275, %v2360, 0.0
          %v3404 = vsel %vm3276, %v2361, 0.0
          %v3405 = vsel %vm3277, %v2362, 0.0
          %v3406 = vsel %vm3278, %v2363, 0.0
          %v3407 = vsel %vm3279, %v2364, 0.0
          %v3408 = vsel %vm3280, %v2365, 0.0
          %v3409 = vsel %vm3281, %v2366, 0.0
          %v3410 = vsel %vm3282, %v2367, 0.0
          %v3411 = vsel %vm3283, %v2368, 0.0
          %v3412 = vsel %vm3284, %v2369, 0.0
          %v3413 = vsel %vm3285, %v2370, 0.0
          %v3414 = vsel %vm3286, %v2371, 0.0
          %v3415 = vsel %vm3287, %v2372, 0.0
          %v3416 = vsel %vm3288, %v2373, 0.0
          %v3417 = vsel %vm3289, %v2374, 0.0
          %v3418 = vsel %vm3290, %v2375, 0.0
          %v3419 = vsel %vm3291, %v2376, 0.0
          %v3420 = vsel %vm3292, %v2377, 0.0
          %v3421 = vsel %vm3293, %v2378, 0.0
          %v3422 = vsel %vm3294, %v2379, 0.0
          %v3423 = vsel %vm3295, %v2380, 0.0
          %v3424 = vsel %vm3296, %v2381, 0.0
          %v3425 = vsel %vm3297, %v2382, 0.0
          %v3426 = vsel %vm3298, %v2383, 0.0
          %v3427 = vsel %vm3299, %v2384, 0.0
          %v3428 = vsel %vm3300, %v2385, 0.0
          %v3429 = vsel %vm3301, %v2386, 0.0
          %v3430 = vsel %vm3302, %v2387, 0.0
          %v3431 = vsel %vm3303, %v2388, 0.0
          %v3432 = vsel %vm3304, %v2389, 0.0
          %v3433 = vsel %vm3305, %v2390, 0.0
          %v3434 = vsel %vm3306, %v2391, 0.0
          %v3435 = vsel %vm3307, %v2392, 0.0
          %v3436 = vsel %vm3308, %v2393, 0.0
          %v3437 = vsel %vm3309, %v2394, 0.0
          %v3438 = vsel %vm3310, %v2395, 0.0
          %v3439 = vsel %vm3311, %v2396, 0.0
          %v3440 = vsel %vm3312, %v2397, 0.0
          %v3441 = vsel %vm3313, %v2398, 0.0
          %v3442 = vsel %vm3314, %v2399, 0.0
          %v3443 = vsel %vm3315, %v2400, 0.0
          %v3444 = vsel %vm3316, %v2401, 0.0
          %v3445 = vsel %vm3317, %v2402, 0.0
          %v3446 = vsel %vm3318, %v2403, 0.0
          %v3447 = vsel %vm3319, %v2404, 0.0
          %v3448 = vsel %vm3320, %v2405, 0.0
          %v3449 = vsel %vm3321, %v2406, 0.0
          %v3450 = vsel %vm3322, %v2407, 0.0
          %v3451 = vsel %vm3323, %v2408, 0.0
          %v3452 = vsel %vm3324, %v2409, 0.0
          %v3453 = vsel %vm3325, %v2410, 0.0
          %v3454 = vsel %vm3326, %v2411, 0.0
          %v3455 = vsel %vm3327, %v2412, 0.0
          %v3456 = vsel %vm3328, %v2413, 0.0
          %v3457 = vsel %vm3329, %v2414, 0.0
          %v3458 = vsel %vm3330, %v2415, 0.0
          %v3459 = vsel %vm3331, %v2416, 0.0
          %v3460 = vsel %vm3332, %v2417, 0.0
          %v3461 = vsel %vm3333, %v2418, 0.0
          %v3462 = vsel %vm3334, %v2419, 0.0
          %v3463 = vsel %vm3207, %v2292, -inf
          %v3464 = vsel %vm3208, %v2293, -inf
          %v3465 = vsel %vm3209, %v2294, -inf
          %v3466 = vsel %vm3210, %v2295, -inf
          %v3467 = vsel %vm3211, %v2296, -inf
          %v3468 = vsel %vm3212, %v2297, -inf
          %v3469 = vsel %vm3213, %v2298, -inf
          %v3470 = vsel %vm3214, %v2299, -inf
          %v3471 = vsel %vm3215, %v2300, -inf
          %v3472 = vsel %vm3216, %v2301, -inf
          %v3473 = vsel %vm3217, %v2302, -inf
          %v3474 = vsel %vm3218, %v2303, -inf
          %v3475 = vsel %vm3219, %v2304, -inf
          %v3476 = vsel %vm3220, %v2305, -inf
          %v3477 = vsel %vm3221, %v2306, -inf
          %v3478 = vsel %vm3222, %v2307, -inf
          %v3479 = vsel %vm3223, %v2308, -inf
          %v3480 = vsel %vm3224, %v2309, -inf
          %v3481 = vsel %vm3225, %v2310, -inf
          %v3482 = vsel %vm3226, %v2311, -inf
          %v3483 = vsel %vm3227, %v2312, -inf
          %v3484 = vsel %vm3228, %v2313, -inf
          %v3485 = vsel %vm3229, %v2314, -inf
          %v3486 = vsel %vm3230, %v2315, -inf
          %v3487 = vsel %vm3231, %v2316, -inf
          %v3488 = vsel %vm3232, %v2317, -inf
          %v3489 = vsel %vm3233, %v2318, -inf
          %v3490 = vsel %vm3234, %v2319, -inf
          %v3491 = vsel %vm3235, %v2320, -inf
          %v3492 = vsel %vm3236, %v2321, -inf
          %v3493 = vsel %vm3237, %v2322, -inf
          %v3494 = vsel %vm3238, %v2323, -inf
          %v3495 = vsel %vm3239, %v2324, -inf
          %v3496 = vsel %vm3240, %v2325, -inf
          %v3497 = vsel %vm3241, %v2326, -inf
          %v3498 = vsel %vm3242, %v2327, -inf
          %v3499 = vsel %vm3243, %v2328, -inf
          %v3500 = vsel %vm3244, %v2329, -inf
          %v3501 = vsel %vm3245, %v2330, -inf
          %v3502 = vsel %vm3246, %v2331, -inf
          %v3503 = vsel %vm3247, %v2332, -inf
          %v3504 = vsel %vm3248, %v2333, -inf
          %v3505 = vsel %vm3249, %v2334, -inf
          %v3506 = vsel %vm3250, %v2335, -inf
          %v3507 = vsel %vm3251, %v2336, -inf
          %v3508 = vsel %vm3252, %v2337, -inf
          %v3509 = vsel %vm3253, %v2338, -inf
          %v3510 = vsel %vm3254, %v2339, -inf
          %v3511 = vsel %vm3255, %v2340, -inf
          %v3512 = vsel %vm3256, %v2341, -inf
          %v3513 = vsel %vm3257, %v2342, -inf
          %v3514 = vsel %vm3258, %v2343, -inf
          %v3515 = vsel %vm3259, %v2344, -inf
          %v3516 = vsel %vm3260, %v2345, -inf
          %v3517 = vsel %vm3261, %v2346, -inf
          %v3518 = vsel %vm3262, %v2347, -inf
          %v3519 = vsel %vm3263, %v2348, -inf
          %v3520 = vsel %vm3264, %v2349, -inf
          %v3521 = vsel %vm3265, %v2350, -inf
          %v3522 = vsel %vm3266, %v2351, -inf
          %v3523 = vsel %vm3267, %v2352, -inf
          %v3524 = vsel %vm3268, %v2353, -inf
          %v3525 = vsel %vm3269, %v2354, -inf
          %v3526 = vsel %vm3270, %v2355, -inf
          %v3527 = vsel %vm3271, %v2356, -inf
          %v3528 = vsel %vm3272, %v2357, -inf
          %v3529 = vsel %vm3273, %v2358, -inf
          %v3530 = vsel %vm3274, %v2359, -inf
          %v3531 = vsel %vm3275, %v2360, -inf
          %v3532 = vsel %vm3276, %v2361, -inf
          %v3533 = vsel %vm3277, %v2362, -inf
          %v3534 = vsel %vm3278, %v2363, -inf
          %v3535 = vsel %vm3279, %v2364, -inf
          %v3536 = vsel %vm3280, %v2365, -inf
          %v3537 = vsel %vm3281, %v2366, -inf
          %v3538 = vsel %vm3282, %v2367, -inf
          %v3539 = vsel %vm3283, %v2368, -inf
          %v3540 = vsel %vm3284, %v2369, -inf
          %v3541 = vsel %vm3285, %v2370, -inf
          %v3542 = vsel %vm3286, %v2371, -inf
          %v3543 = vsel %vm3287, %v2372, -inf
          %v3544 = vsel %vm3288, %v2373, -inf
          %v3545 = vsel %vm3289, %v2374, -inf
          %v3546 = vsel %vm3290, %v2375, -inf
          %v3547 = vsel %vm3291, %v2376, -inf
          %v3548 = vsel %vm3292, %v2377, -inf
          %v3549 = vsel %vm3293, %v2378, -inf
          %v3550 = vsel %vm3294, %v2379, -inf
          %v3551 = vsel %vm3295, %v2380, -inf
          %v3552 = vsel %vm3296, %v2381, -inf
          %v3553 = vsel %vm3297, %v2382, -inf
          %v3554 = vsel %vm3298, %v2383, -inf
          %v3555 = vsel %vm3299, %v2384, -inf
          %v3556 = vsel %vm3300, %v2385, -inf
          %v3557 = vsel %vm3301, %v2386, -inf
          %v3558 = vsel %vm3302, %v2387, -inf
          %v3559 = vsel %vm3303, %v2388, -inf
          %v3560 = vsel %vm3304, %v2389, -inf
          %v3561 = vsel %vm3305, %v2390, -inf
          %v3562 = vsel %vm3306, %v2391, -inf
          %v3563 = vsel %vm3307, %v2392, -inf
          %v3564 = vsel %vm3308, %v2393, -inf
          %v3565 = vsel %vm3309, %v2394, -inf
          %v3566 = vsel %vm3310, %v2395, -inf
          %v3567 = vsel %vm3311, %v2396, -inf
          %v3568 = vsel %vm3312, %v2397, -inf
          %v3569 = vsel %vm3313, %v2398, -inf
          %v3570 = vsel %vm3314, %v2399, -inf
          %v3571 = vsel %vm3315, %v2400, -inf
          %v3572 = vsel %vm3316, %v2401, -inf
          %v3573 = vsel %vm3317, %v2402, -inf
          %v3574 = vsel %vm3318, %v2403, -inf
          %v3575 = vsel %vm3319, %v2404, -inf
          %v3576 = vsel %vm3320, %v2405, -inf
          %v3577 = vsel %vm3321, %v2406, -inf
          %v3578 = vsel %vm3322, %v2407, -inf
          %v3579 = vsel %vm3323, %v2408, -inf
          %v3580 = vsel %vm3324, %v2409, -inf
          %v3581 = vsel %vm3325, %v2410, -inf
          %v3582 = vsel %vm3326, %v2411, -inf
          %v3583 = vsel %vm3327, %v2412, -inf
          %v3584 = vsel %vm3328, %v2413, -inf
          %v3585 = vsel %vm3329, %v2414, -inf
          %v3586 = vsel %vm3330, %v2415, -inf
          %v3587 = vsel %vm3331, %v2416, -inf
          %v3588 = vsel %vm3332, %v2417, -inf
          %v3589 = vsel %vm3333, %v2418, -inf
          %v3590 = vsel %vm3334, %v2419, -inf
          %v3591 = vld [vmem:[#allocation2] sm:$0xff]
          %v3592 = vadd.f32 %v3335, %v3336
          %v3593 = vadd.f32 %v3592, %v3337
          %v3594 = vadd.f32 %v3593, %v3338
          %v3595 = vadd.f32 %v3594, %v3339
          %v3596 = vadd.f32 %v3595, %v3340
          %v3597 = vadd.f32 %v3596, %v3341
          %v3598 = vadd.f32 %v3597, %v3342
          %v3599 = vadd.f32 %v3598, %v3343
          %v3600 = vadd.f32 %v3599, %v3344
          %v3601 = vadd.f32 %v3600, %v3345
          %v3602 = vadd.f32 %v3601, %v3346
          %v3603 = vadd.f32 %v3602, %v3347
          %v3604 = vadd.f32 %v3603, %v3348
          %v3605 = vadd.f32 %v3604, %v3349
          %v3606 = vadd.f32 %v3605, %v3350
          %v3607 = vadd.f32 %v3606, %v3351
          %v3608 = vadd.f32 %v3607, %v3352
          %v3609 = vadd.f32 %v3608, %v3353
          %v3610 = vadd.f32 %v3609, %v3354
          %v3611 = vadd.f32 %v3610, %v3355
          %v3612 = vadd.f32 %v3611, %v3356
          %v3613 = vadd.f32 %v3612, %v3357
          %v3614 = vadd.f32 %v3613, %v3358
          %v3615 = vadd.f32 %v3614, %v3359
          %v3616 = vadd.f32 %v3615, %v3360
          %v3617 = vadd.f32 %v3616, %v3361
          %v3618 = vadd.f32 %v3617, %v3362
          %v3619 = vadd.f32 %v3618, %v3363
          %v3620 = vadd.f32 %v3619, %v3364
          %v3621 = vadd.f32 %v3620, %v3365
          %v3622 = vadd.f32 %v3621, %v3366
          %v3623 = vadd.f32 %v3622, %v3367
          %v3624 = vadd.f32 %v3623, %v3368
          %v3625 = vadd.f32 %v3624, %v3369
          %v3626 = vadd.f32 %v3625, %v3370
          %v3627 = vadd.f32 %v3626, %v3371
          %v3628 = vadd.f32 %v3627, %v3372
          %v3629 = vadd.f32 %v3628, %v3373
          %v3630 = vadd.f32 %v3629, %v3374
          %v3631 = vadd.f32 %v3630, %v3375
          %v3632 = vadd.f32 %v3631, %v3376
          %v3633 = vadd.f32 %v3632, %v3377
          %v3634 = vadd.f32 %v3633, %v3378
          %v3635 = vadd.f32 %v3634, %v3379
          %v3636 = vadd.f32 %v3635, %v3380
          %v3637 = vadd.f32 %v3636, %v3381
          %v3638 = vadd.f32 %v3637, %v3382
          %v3639 = vadd.f32 %v3638, %v3383
          %v3640 = vadd.f32 %v3639, %v3384
          %v3641 = vadd.f32 %v3640, %v3385
          %v3642 = vadd.f32 %v3641, %v3386
          %v3643 = vadd.f32 %v3642, %v3387
          %v3644 = vadd.f32 %v3643, %v3388
          %v3645 = vadd.f32 %v3644, %v3389
          %v3646 = vadd.f32 %v3645, %v3390
          %v3647 = vadd.f32 %v3646, %v3391
          %v3648 = vadd.f32 %v3647, %v3392
          %v3649 = vadd.f32 %v3648, %v3393
          %v3650 = vadd.f32 %v3649, %v3394
          %v3651 = vadd.f32 %v3650, %v3395
          %v3652 = vadd.f32 %v3651, %v3396
          %v3653 = vadd.f32 %v3652, %v3397
          %v3654 = vadd.f32 %v3653, %v3398
          %v3655 = vadd.f32 %v3654, %v3399
          %v3656 = vadd.f32 %v3655, %v3400
          %v3657 = vadd.f32 %v3656, %v3401
          %v3658 = vadd.f32 %v3657, %v3402
          %v3659 = vadd.f32 %v3658, %v3403
          %v3660 = vadd.f32 %v3659, %v3404
          %v3661 = vadd.f32 %v3660, %v3405
          %v3662 = vadd.f32 %v3661, %v3406
          %v3663 = vadd.f32 %v3662, %v3407
          %v3664 = vadd.f32 %v3663, %v3408
          %v3665 = vadd.f32 %v3664, %v3409
          %v3666 = vadd.f32 %v3665, %v3410
          %v3667 = vadd.f32 %v3666, %v3411
          %v3668 = vadd.f32 %v3667, %v3412
          %v3669 = vadd.f32 %v3668, %v3413
          %v3670 = vadd.f32 %v3669, %v3414
          %v3671 = vadd.f32 %v3670, %v3415
          %v3672 = vadd.f32 %v3671, %v3416
          %v3673 = vadd.f32 %v3672, %v3417
          %v3674 = vadd.f32 %v3673, %v3418
          %v3675 = vadd.f32 %v3674, %v3419
          %v3676 = vadd.f32 %v3675, %v3420
          %v3677 = vadd.f32 %v3676, %v3421
          %v3678 = vadd.f32 %v3677, %v3422
          %v3679 = vadd.f32 %v3678, %v3423
          %v3680 = vadd.f32 %v3679, %v3424
          %v3681 = vadd.f32 %v3680, %v3425
          %v3682 = vadd.f32 %v3681, %v3426
          %v3683 = vadd.f32 %v3682, %v3427
          %v3684 = vadd.f32 %v3683, %v3428
          %v3685 = vadd.f32 %v3684, %v3429
          %v3686 = vadd.f32 %v3685, %v3430
          %v3687 = vadd.f32 %v3686, %v3431
          %v3688 = vadd.f32 %v3687, %v3432
          %v3689 = vadd.f32 %v3688, %v3433
          %v3690 = vadd.f32 %v3689, %v3434
          %v3691 = vadd.f32 %v3690, %v3435
          %v3692 = vadd.f32 %v3691, %v3436
          %v3693 = vadd.f32 %v3692, %v3437
          %v3694 = vadd.f32 %v3693, %v3438
          %v3695 = vadd.f32 %v3694, %v3439
          %v3696 = vadd.f32 %v3695, %v3440
          %v3697 = vadd.f32 %v3696, %v3441
          %v3698 = vadd.f32 %v3697, %v3442
          %v3699 = vadd.f32 %v3698, %v3443
          %v3700 = vadd.f32 %v3699, %v3444
          %v3701 = vadd.f32 %v3700, %v3445
          %v3702 = vadd.f32 %v3701, %v3446
          %v3703 = vadd.f32 %v3702, %v3447
          %v3704 = vadd.f32 %v3703, %v3448
          %v3705 = vadd.f32 %v3704, %v3449
          %v3706 = vadd.f32 %v3705, %v3450
          %v3707 = vadd.f32 %v3706, %v3451
          %v3708 = vadd.f32 %v3707, %v3452
          %v3709 = vadd.f32 %v3708, %v3453
          %v3710 = vadd.f32 %v3709, %v3454
          %v3711 = vadd.f32 %v3710, %v3455
          %v3712 = vadd.f32 %v3711, %v3456
          %v3713 = vadd.f32 %v3712, %v3457
          %v3714 = vadd.f32 %v3713, %v3458
          %v3715 = vadd.f32 %v3714, %v3459
          %v3716 = vadd.f32 %v3715, %v3460
          %v3717 = vadd.f32 %v3716, %v3461
          %v3718 = vadd.f32 %v3717, %v3462
          %v3719 = vadd.f32 %v3591, %v3718
          %3720 = vst [vmem:[#allocation2] sm:$0xff] %v3719
          %v3721 = vld [vmem:[#allocation3] sm:$0xff]
          %v3722 = vmax.f32 %v3463, %v3467
          %v3723 = vmax.f32 %v3464, %v3468
          %v3724 = vmax.f32 %v3465, %v3469
          %v3725 = vmax.f32 %v3466, %v3470
          %v3726 = vmax.f32 %v3722, %v3471
          %v3727 = vmax.f32 %v3723, %v3472
          %v3728 = vmax.f32 %v3724, %v3473
          %v3729 = vmax.f32 %v3725, %v3474
          %v3730 = vmax.f32 %v3726, %v3475
          %v3731 = vmax.f32 %v3727, %v3476
          %v3732 = vmax.f32 %v3728, %v3477
          %v3733 = vmax.f32 %v3729, %v3478
          %v3734 = vmax.f32 %v3730, %v3479
          %v3735 = vmax.f32 %v3731, %v3480
          %v3736 = vmax.f32 %v3732, %v3481
          %v3737 = vmax.f32 %v3733, %v3482
          %v3738 = vmax.f32 %v3734, %v3483
          %v3739 = vmax.f32 %v3735, %v3484
          %v3740 = vmax.f32 %v3736, %v3485
          %v3741 = vmax.f32 %v3737, %v3486
          %v3742 = vmax.f32 %v3738, %v3487
          %v3743 = vmax.f32 %v3739, %v3488
          %v3744 = vmax.f32 %v3740, %v3489
          %v3745 = vmax.f32 %v3741, %v3490
          %v3746 = vmax.f32 %v3742, %v3491
          %v3747 = vmax.f32 %v3743, %v3492
          %v3748 = vmax.f32 %v3744, %v3493
          %v3749 = vmax.f32 %v3745, %v3494
          %v3750 = vmax.f32 %v3746, %v3495
          %v3751 = vmax.f32 %v3747, %v3496
          %v3752 = vmax.f32 %v3748, %v3497
          %v3753 = vmax.f32 %v3749, %v3498
          %v3754 = vmax.f32 %v3750, %v3499
          %v3755 = vmax.f32 %v3751, %v3500
          %v3756 = vmax.f32 %v3752, %v3501
          %v3757 = vmax.f32 %v3753, %v3502
          %v3758 = vmax.f32 %v3754, %v3503
          %v3759 = vmax.f32 %v3755, %v3504
          %v3760 = vmax.f32 %v3756, %v3505
          %v3761 = vmax.f32 %v3757, %v3506
          %v3762 = vmax.f32 %v3758, %v3507
          %v3763 = vmax.f32 %v3759, %v3508
          %v3764 = vmax.f32 %v3760, %v3509
          %v3765 = vmax.f32 %v3761, %v3510
          %v3766 = vmax.f32 %v3762, %v3511
          %v3767 = vmax.f32 %v3763, %v3512
          %v3768 = vmax.f32 %v3764, %v3513
          %v3769 = vmax.f32 %v3765, %v3514
          %v3770 = vmax.f32 %v3766, %v3515
          %v3771 = vmax.f32 %v3767, %v3516
          %v3772 = vmax.f32 %v3768, %v3517
          %v3773 = vmax.f32 %v3769, %v3518
          %v3774 = vmax.f32 %v3770, %v3519
          %v3775 = vmax.f32 %v3771, %v3520
          %v3776 = vmax.f32 %v3772, %v3521
          %v3777 = vmax.f32 %v3773, %v3522
          %v3778 = vmax.f32 %v3774, %v3523
          %v3779 = vmax.f32 %v3775, %v3524
          %v3780 = vmax.f32 %v3776, %v3525
          %v3781 = vmax.f32 %v3777, %v3526
          %v3782 = vmax.f32 %v3778, %v3527
          %v3783 = vmax.f32 %v3779, %v3528
          %v3784 = vmax.f32 %v3780, %v3529
          %v3785 = vmax.f32 %v3781, %v3530
          %v3786 = vmax.f32 %v3782, %v3531
          %v3787 = vmax.f32 %v3783, %v3532
          %v3788 = vmax.f32 %v3784, %v3533
          %v3789 = vmax.f32 %v3785, %v3534
          %v3790 = vmax.f32 %v3786, %v3535
          %v3791 = vmax.f32 %v3787, %v3536
          %v3792 = vmax.f32 %v3788, %v3537
          %v3793 = vmax.f32 %v3789, %v3538
          %v3794 = vmax.f32 %v3790, %v3539
          %v3795 = vmax.f32 %v3791, %v3540
          %v3796 = vmax.f32 %v3792, %v3541
          %v3797 = vmax.f32 %v3793, %v3542
          %v3798 = vmax.f32 %v3794, %v3543
          %v3799 = vmax.f32 %v3795, %v3544
          %v3800 = vmax.f32 %v3796, %v3545
          %v3801 = vmax.f32 %v3797, %v3546
          %v3802 = vmax.f32 %v3798, %v3547
          %v3803 = vmax.f32 %v3799, %v3548
          %v3804 = vmax.f32 %v3800, %v3549
          %v3805 = vmax.f32 %v3801, %v3550
          %v3806 = vmax.f32 %v3802, %v3551
          %v3807 = vmax.f32 %v3803, %v3552
          %v3808 = vmax.f32 %v3804, %v3553
          %v3809 = vmax.f32 %v3805, %v3554
          %v3810 = vmax.f32 %v3806, %v3555
          %v3811 = vmax.f32 %v3807, %v3556
          %v3812 = vmax.f32 %v3808, %v3557
          %v3813 = vmax.f32 %v3809, %v3558
          %v3814 = vmax.f32 %v3810, %v3559
          %v3815 = vmax.f32 %v3811, %v3560
          %v3816 = vmax.f32 %v3812, %v3561
          %v3817 = vmax.f32 %v3813, %v3562
          %v3818 = vmax.f32 %v3814, %v3563
          %v3819 = vmax.f32 %v3815, %v3564
          %v3820 = vmax.f32 %v3816, %v3565
          %v3821 = vmax.f32 %v3817, %v3566
          %v3822 = vmax.f32 %v3818, %v3567
          %v3823 = vmax.f32 %v3819, %v3568
          %v3824 = vmax.f32 %v3820, %v3569
          %v3825 = vmax.f32 %v3821, %v3570
          %v3826 = vmax.f32 %v3822, %v3571
          %v3827 = vmax.f32 %v3823, %v3572
          %v3828 = vmax.f32 %v3824, %v3573
          %v3829 = vmax.f32 %v3825, %v3574
          %v3830 = vmax.f32 %v3826, %v3575
          %v3831 = vmax.f32 %v3827, %v3576
          %v3832 = vmax.f32 %v3828, %v3577
          %v3833 = vmax.f32 %v3829, %v3578
          %v3834 = vmax.f32 %v3830, %v3579
          %v3835 = vmax.f32 %v3831, %v3580
          %v3836 = vmax.f32 %v3832, %v3581
          %v3837 = vmax.f32 %v3833, %v3582
          %v3838 = vmax.f32 %v3834, %v3583
          %v3839 = vmax.f32 %v3835, %v3584
          %v3840 = vmax.f32 %v3836, %v3585
          %v3841 = vmax.f32 %v3837, %v3586
          %v3842 = vmax.f32 %v3838, %v3587
          %v3843 = vmax.f32 %v3839, %v3588
          %v3844 = vmax.f32 %v3840, %v3589
          %v3845 = vmax.f32 %v3841, %v3590
          %v3846 = vmax.f32 %v3842, %v3843
          %v3847 = vmax.f32 %v3844, %v3845
          %v3848 = vmax.f32 %v3846, %v3847
          %v3849 = vmax.f32 %v3721, %v3848
          %3850 = vst [vmem:[#allocation3] sm:$0xff] %v3849
        $region64: #{tpu_custom_call.1} parent=39 // pred_fallthru
          _
        %p3851 = scmp.eq.s32.totalorder %s33, 1
        // Predicated region
        $region65: #{tpu_custom_call.1} parent=39 // pred_check
          %p3852 = pneg %p3851
        $region66: #{tpu_custom_call.1} parent=39 // pred_check_branch
          %3854 = sbr.rel (%p3852) target = $region68
        $region67: #{tpu_custom_call.1} parent=39 // pred_region
          %v3855 = vld [vmem:[#allocation2] sm:$0xff]
          %3856 = vst [vmem:[%s332] sm:$0xff] %v3855
          %v3857 = vld [vmem:[#allocation3] sm:$0xff]
          %3858 = vst [vmem:[%s339] sm:$0xff] %v3857
        $region68: #{tpu_custom_call.1} parent=39 // pred_fallthru
          _
        %s3859 = sand.u32 %s166, 1
        %s3860 = scalar_lea.sflag [#allocation6], %s3859
        %s3861 = sand.u32 %s166, 1
        %s3862 = smul.addr %s3861, 8
        %s3863 = scalar_lea.vmem [#allocation10], %s3862
        %s3864 = sand.u32 %s192, 1
        %s3865 = scalar_lea.sflag [#allocation12], %s3864
        %s3866 = sand.u32 %s192, 1
        %s3867 = smul.addr %s3866, 8
        %s3868 = scalar_lea.vmem [#allocation11], %s3867
        // Predicated region
        $region69: #{tpu_custom_call.1} parent=39 // pred_check
          %p3869 = pneg %p176
        $region70: #{tpu_custom_call.1} parent=39 // pred_check_branch
          %3871 = sbr.rel (%p3869) target = $region72
        $region71: #{tpu_custom_call.1} parent=39 // pred_region
          %s3873 = ssub.s32 128, 128
          %3874 = vsyncadd %s3860, %s3873
          %s3875 = smul.addr %s32, 128
          %s3876 = scalar_lea.hbm %s5, %s3875
          %s3878 = sshll.u32 %s3863, 4
          %s3879 = int_to_ptr.vmem [resolvable:$true] %s3878
          %3881 = dma.vmem_to_hbm [thread:$0]  %s3879, 128, %s3876, %s3860
        $region72: #{tpu_custom_call.1} parent=39 // pred_fallthru
          _
        // Predicated region
        $region73: #{tpu_custom_call.1} parent=39 // pred_check
          %p3882 = pneg %p202
        $region74: #{tpu_custom_call.1} parent=39 // pred_check_branch
          %3884 = sbr.rel (%p3882) target = $region76
        $region75: #{tpu_custom_call.1} parent=39 // pred_region
          %s3886 = ssub.s32 128, 128
          %3887 = vsyncadd %s3865, %s3886
          %s3888 = smul.addr %s32, 128
          %s3889 = scalar_lea.hbm %s6, %s3888
          %s3891 = sshll.u32 %s3868, 4
          %s3892 = int_to_ptr.vmem [resolvable:$true] %s3891
          %3894 = dma.vmem_to_hbm [thread:$0]  %s3892, 128, %s3889, %s3865
        $region76: #{tpu_custom_call.1} parent=39 // pred_fallthru
          _
      $region40: #{tpu_custom_call.1} parent=5 // pred_fallthru
        _
      %p3895 = scmp.le.s32.totalorder 2, %s23
      // Predicated region
      $region77: #{tpu_custom_call.1} parent=5 // pred_check
        %p3896 = pneg %p3895
      $region78: #{tpu_custom_call.1} parent=5 // pred_check_branch
        %3898 = sbr.rel (%p3896) target = $region80
      $region79: #{tpu_custom_call.1} parent=5 // pred_region
        %s3899 = ssub.s32 %s23, 2
        // Predicated region
        $region81: #{tpu_custom_call.1} parent=79 // pred_check
          %p3900 = pneg %p182
        $region82: #{tpu_custom_call.1} parent=79 // pred_check_branch
          %3902 = sbr.rel (%p3900) target = $region84
        $region83: #{tpu_custom_call.1} parent=79 // pred_region
          %s3903 = sand.u32 %s167, 1
          %s3904 = scalar_lea.sflag [#allocation6], %s3903
          %s3905 = sand.u32 %s167, 1
          %s3906 = smul.addr %s3905, 8
          %s3907 = scalar_lea.vmem [#allocation10], %s3906
          %3908 = dma.done %s3904, 128
        $region84: #{tpu_custom_call.1} parent=79 // pred_fallthru
          _
        // Predicated region
        $region85: #{tpu_custom_call.1} parent=79 // pred_check
          %p3909 = pneg %p208
        $region86: #{tpu_custom_call.1} parent=79 // pred_check_branch
          %3911 = sbr.rel (%p3909) target = $region88
        $region87: #{tpu_custom_call.1} parent=79 // pred_region
          %s3912 = sand.u32 %s193, 1
          %s3913 = scalar_lea.sflag [#allocation12], %s3912
          %s3914 = sand.u32 %s193, 1
          %s3915 = smul.addr %s3914, 8
          %s3916 = scalar_lea.vmem [#allocation11], %s3915
          %3917 = dma.done %s3913, 128
        $region88: #{tpu_custom_call.1} parent=79 // pred_fallthru
          _
      $region80: #{tpu_custom_call.1} parent=5 // pred_fallthru
        _
    $region6: #{tpu_custom_call.1} parent=1 // loop_footer
      %s27 = sadd.s32 1, %s23
    $region7: #{tpu_custom_call.1} parent=1 // loop_footer_branch
      %22 = sbr.rel target = $region3
    $region8: #{tpu_custom_call.1} parent=1 // loop_exit
      _
    %3918 = vsyncpa [#allocation5], 1
    %s3919 = scalar_lea.sflag [#allocation5], 1
    %3920 = vsyncpa %s3919, 1
    %3921 = vsyncpa [#allocation8], 1
    %3922 = vsyncpa [#allocation6], 1
    %s3923 = scalar_lea.sflag [#allocation6], 1
    %3924 = vsyncpa %s3923, 1
    %3925 = vsyncpa [#allocation12], 1
    %s3926 = scalar_lea.sflag [#allocation12], 1
    %3927 = vsyncpa %s3926, 1

</llo_original>
